<compile_context>
chip_gen: v5e
topology: v5e:2x2
jax: 0.10.0
libtpu: 0.0.40
codegen_flags: <defaults>
</compile_context>

<pallas_src>
import functools

import jax
import jax.numpy as jnp
from jax.experimental import pallas as pl
from jax.experimental.pallas import tpu as pltpu

_VMEM_LIMIT = 32 * 1024 * 1024


def _round_up(a, b):
    return (a + b - 1) // b * b


def _pick_h_tile(h, n, max_rows=32):
    """Largest divisor of h (<= max_rows) so the conv grid has >=2 row blocks
    whenever possible (megacore on v7x)."""
    limit = max_rows if n >= 2 else max(1, min(max_rows, (h + 1) // 2))
    t = 1
    for cand in range(1, h + 1):
        if h % cand == 0 and cand <= limit:
            t = cand
    return t


def _pick_cout_tile(c):
    if c <= 256:
        return c
    for t in (512, 256, 128):
        if c % t == 0:
            return t
    return c


def _pick_row_tile(m, max_tile=1024):
    mp = _round_up(m, 8)
    t = min(max_tile, mp)
    if mp > 8:                      # >= 2 blocks so both v7x cores get work
        t = min(t, _round_up((mp + 1) // 2, 8))
    return t, _round_up(mp, t)


# ----------------------------- conv 3x3 kernel -----------------------------

def _conv3x3_kernel(a_ref, w_ref, o_ref, *, wpad):
    """3x3 conv as 9 shifted-row-window matmuls accumulated in VMEM.

    a_ref: (rb, cin)       f32  flattened padded halo block, row-major over
                                (padded_rows, padded_cols) of one row tile.
    w_ref: (9, cin, tco)   bf16 tap-major weights (t = ki*3 + kj).
    o_ref: (rows_out, tco) f32  rows_out = th*(W+2) "extended" outputs; the
                                2 junk columns per row are sliced off in glue.
    """
    rows_out = o_ref.shape[0]
    acc = jnp.zeros(o_ref.shape, jnp.float32)
    for t in range(9):
        ki, kj = divmod(t, 3)
        d = ki * wpad + kj                          # static row offset of tap t
        a = a_ref[d:d + rows_out, :].astype(jnp.bfloat16)
        acc = acc + jnp.dot(a, w_ref[t], preferred_element_type=jnp.float32)
    o_ref[...] = acc.astype(o_ref.dtype)


def conv3x3(x, w_hwio):
    """Conv2d(k=3, stride=1, padding=1) on NHWC activations, HWIO weights.

    No bias: it is exactly cancelled by the training-mode BatchNorm that
    follows in DoubleConv.
    """
    n, h, w, cin = x.shape
    cout = w_hwio.shape[-1]
    cinp = _round_up(cin, 8)
    th = _pick_h_tile(h, n)
    nhb = h // th
    wp = w + 2
    rows_out = th * wp
    # +2 rows: the junk outputs of the last row read 2 rows past the block.
    rb = _round_up((th + 2) * wp + 2, 8)

    x_pad = jnp.pad(x, ((0, 0), (1, 1), (1, 1), (0, cinp - cin)))
    if nhb == 1:
        blocks = x_pad[:, None]                     # (n, 1, h+2, w+2, cinp)
    else:
        blocks = jnp.stack(
            [x_pad[:, b * th:b * th + th + 2] for b in range(nhb)], axis=1)
    a = blocks.reshape(n * nhb, (th + 2) * wp, cinp)
    a = jnp.pad(a, ((0, 0), (0, rb - (th + 2) * wp), (0, 0)))
    a = a.astype(jnp.float32)

    wk = jnp.pad(w_hwio.reshape(9, cin, cout),
                 ((0, 0), (0, cinp - cin), (0, 0))).astype(jnp.bfloat16)

    tco = _pick_cout_tile(cout)
    ncb = cout // tco

    out = pl.pallas_call(
        functools.partial(_conv3x3_kernel, wpad=wp),
        out_shape=jax.ShapeDtypeStruct((n * nhb, rows_out, cout), jnp.float32),
        grid_spec=pltpu.PrefetchScalarGridSpec(
            num_scalar_prefetch=0,
            grid=(n * nhb, ncb),
            in_specs=[
                pl.BlockSpec((None, rb, cinp), lambda i, j: (i, 0, 0)),
                pl.BlockSpec((9, cinp, tco), lambda i, j: (0, 0, j)),
            ],
            out_specs=pl.BlockSpec((None, rows_out, tco),
                                   lambda i, j: (i, 0, j)),
        ),
        compiler_params=pltpu.CompilerParams(
            dimension_semantics=("parallel", "parallel"),
            vmem_limit_bytes=_VMEM_LIMIT),
    )(a, wk)

    out = out.reshape(n, nhb, th, wp, cout)[:, :, :, :w, :]
    return out.reshape(n, h, w, cout)


# ------------------------- BatchNorm + ReLU kernels ------------------------

def _bn_stats_kernel(x_ref, o_ref):
    x = x_ref[...].astype(jnp.float32)
    s = jnp.sum(x, axis=0, keepdims=True)
    ss = jnp.sum(x * x, axis=0, keepdims=True)
    o_ref[...] = jnp.concatenate([s, ss], axis=0)   # (2, C): sum, sumsq


def _bn_apply_kernel(x_ref, scale_ref, shift_ref, o_ref):
    x = x_ref[...].astype(jnp.float32)
    y = jnp.maximum(x * scale_ref[...] + shift_ref[...], 0.0)
    o_ref[...] = y.astype(o_ref.dtype)


def batchnorm_relu(x, gamma, beta, *, eps=1e-5, out_dtype=jnp.float32):
    """Training-mode BatchNorm2d (batch stats, biased var) + ReLU on NHWC."""
    n, h, w, c = x.shape
    m = n * h * w
    x2 = x.reshape(m, c)
    tm, mp = _pick_row_tile(m)
    if mp != m:
        x2 = jnp.pad(x2, ((0, mp - m), (0, 0)))     # zero rows: harmless sums
    nb = mp // tm

    # Pass 1: per-block partial sum / sum-of-squares (parallel, pipelined).
    stats = pl.pallas_call(
        _bn_stats_kernel,
        out_shape=jax.ShapeDtypeStruct((nb, 2, c), jnp.float32),
        grid_spec=pltpu.PrefetchScalarGridSpec(
            num_scalar_prefetch=0,
            grid=(nb,),
            in_specs=[pl.BlockSpec((tm, c), lambda i: (i, 0))],
            out_specs=pl.BlockSpec((None, 2, c), lambda i: (i, 0, 0)),
        ),
        compiler_params=pltpu.CompilerParams(
            dimension_semantics=("parallel",),
            vmem_limit_bytes=_VMEM_LIMIT),
    )(x2)

    total = jnp.sum(stats, axis=0)                  # (2, c)
    mean = total[0] / m
    var = jnp.maximum(total[1] / m - mean * mean, 0.0)   # biased (torch train)
    scale = gamma * jax.lax.rsqrt(var + eps)
    shift = beta - mean * scale

    # Pass 2: normalize + ReLU, row-tiled.
    y = pl.pallas_call(
        _bn_apply_kernel,
        out_shape=jax.ShapeDtypeStruct((mp, c), out_dtype),
        grid_spec=pltpu.PrefetchScalarGridSpec(
            num_scalar_prefetch=0,
            grid=(nb,),
            in_specs=[
                pl.BlockSpec((tm, c), lambda i: (i, 0)),
                pl.BlockSpec((1, c), lambda i: (0, 0)),
                pl.BlockSpec((1, c), lambda i: (0, 0)),
            ],
            out_specs=pl.BlockSpec((tm, c), lambda i: (i, 0)),
        ),
        compiler_params=pltpu.CompilerParams(
            dimension_semantics=("parallel",),
            vmem_limit_bytes=_VMEM_LIMIT),
    )(x2, scale.reshape(1, c).astype(jnp.float32),
      shift.reshape(1, c).astype(jnp.float32))

    return y[:m].reshape(n, h, w, c)


# ------------------------------- DoubleConv ---------------------------------

def double_conv(x, params):
    y = conv3x3(x, params["w1"])
    # intermediate activation stored bf16 (halves HBM write/read of it)
    y = batchnorm_relu(y, params["g1"], params["be1"], out_dtype=jnp.bfloat16)
    y = conv3x3(y, params["w2"])
    y = batchnorm_relu(y, params["g2"], params["be2"], out_dtype=jnp.float32)
    return y


def init_double_conv(key, cin, cout):
    k1, k2 = jax.random.split(key)
    s1 = (2.0 / (9 * cin)) ** 0.5
    s2 = (2.0 / (9 * cout)) ** 0.5
    return {
        "w1": jax.random.normal(k1, (3, 3, cin, cout), jnp.float32) * s1,
        "g1": jnp.ones((cout,), jnp.float32),
        "be1": jnp.zeros((cout,), jnp.float32),
        "w2": jax.random.normal(k2, (3, 3, cout, cout), jnp.float32) * s2,
        "g2": jnp.ones((cout,), jnp.float32),
        "be2": jnp.zeros((cout,), jnp.float32),
    }


# --------------------------- pure-JAX reference -----------------------------

def reference_double_conv(x, params, eps=1e-5):
    """Mirrors the kernel numerics: bf16 conv operands, f32 accumulation,
    training-mode BN (biased var), bf16 intermediate activation."""
    def conv(xx, ww):
        return jax.lax.conv_general_dilated(
            xx.astype(jnp.bfloat16), ww.astype(jnp.bfloat16),
            window_strides=(1, 1), padding="SAME",
            dimension_numbers=("NHWC", "HWIO", "NHWC"),
            preferred_element_type=jnp.float32)

    def bn_relu(xx, g, b):
        mean = jnp.mean(xx, axis=(0, 1, 2))
        var = jnp.mean(xx * xx, axis=(0, 1, 2)) - mean * mean
        return jnp.maximum((xx - mean) * (g * jax.lax.rsqrt(var + eps)) + b,
                           0.0)

    y = bn_relu(conv(x, params["w1"]), params["g1"], params["be1"])
    y = y.astype(jnp.bfloat16)
    y = bn_relu(conv(y, params["w2"]), params["g2"], params["be2"])
    return y


if __name__ == "__main__":
    key = jax.random.PRNGKey(0)
    kx, kp = jax.random.split(key)
    n, in_ch, hh, ww = 2, 4, 16, 16
    out_ch = 64

    # torch DoubleConv input is NCHW (2, 4, 16, 16); we compute in NHWC.
    x_nchw = jax.random.normal(kx, (n, in_ch, hh, ww), jnp.float32)
    x = jnp.transpose(x_nchw, (0, 2, 3, 1))
    params = init_double_conv(kp, in_ch, out_ch)

    fwd = jax.jit(double_conv)
    y = fwd(x, params)
    jax.block_until_ready(y)

    assert y.shape == (n, hh, ww, out_ch)
    assert bool(jnp.all(y >= 0.0))                  # ReLU output

    y_ref = reference_double_conv(x, params)
    err = float(jnp.max(jnp.abs(y - y_ref)))
    assert err < 1e-1, f"max abs error vs reference: {err}"
    print("KERNEL_OK")
</pallas_src>

<mosaic_0001>
module attributes {stable_mosaic.version = 11 : i64} {
  func.func @_conv3x3_kernel(%arg0: i32, %arg1: i32, %arg2: memref<1x328x8xf32, #tpu.memory_space<vmem>>, %arg3: memref<9x8x64xbf16, #tpu.memory_space<vmem>>, %arg4: memref<1x288x64xf32, #tpu.memory_space<vmem>>) attributes {dimension_semantics = [#tpu.dimension_semantics<parallel>, #tpu.dimension_semantics<parallel>], iteration_bounds = array<i64: 2, 1>, scalar_prefetch = 0 : i64, scratch_operands = 0 : i64, tpu.core_type = #tpu.core_type<tc>, window_params = [{transform_indices = @transform_0, window_bounds = array<i64: 1, 328, 8>}, {transform_indices = @transform_1, window_bounds = array<i64: 9, 8, 64>}, {transform_indices = @transform_2, window_bounds = array<i64: 1, 288, 64>}]} {
    %cst = arith.constant 0.000000e+00 : f32
    %0 = vector.broadcast %cst : f32 to vector<288x64xf32>
    %c0 = arith.constant 0 : index
    %c0_0 = arith.constant 0 : index
    %c0_1 = arith.constant 0 : index
    %1 = vector.load %arg2[%c0, %c0_0, %c0_1] : memref<1x328x8xf32, #tpu.memory_space<vmem>>, vector<1x288x8xf32>
    %2 = vector.shape_cast %1 : vector<1x288x8xf32> to vector<288x8xf32>
    %3 = arith.truncf %2 : vector<288x8xf32> to vector<288x8xbf16>
    %c0_2 = arith.constant 0 : index
    %c0_3 = arith.constant 0 : index
    %c0_4 = arith.constant 0 : index
    %4 = vector.load %arg3[%c0_2, %c0_3, %c0_4] : memref<9x8x64xbf16, #tpu.memory_space<vmem>>, vector<1x8x64xbf16>
    %5 = vector.shape_cast %4 : vector<1x8x64xbf16> to vector<8x64xbf16>
    %cst_5 = arith.constant dense<0.000000e+00> : vector<288x64xf32>
    %6 = tpu.matmul %3, %5, %cst_5 {dimension_numbers = #tpu.dot_dimension_numbers<[1], [0], [0], [1], [0, 0, 1, 1], [], []>} : vector<288x8xbf16>, vector<8x64xbf16>, vector<288x64xf32> -> vector<288x64xf32>
    %7 = arith.addf %0, %6 : vector<288x64xf32>
    %c0_6 = arith.constant 0 : index
    %c1 = arith.constant 1 : index
    %c0_7 = arith.constant 0 : index
    %8 = vector.load %arg2[%c0_6, %c1, %c0_7] : memref<1x328x8xf32, #tpu.memory_space<vmem>>, vector<1x288x8xf32>
    %9 = vector.shape_cast %8 : vector<1x288x8xf32> to vector<288x8xf32>
    %10 = arith.truncf %9 : vector<288x8xf32> to vector<288x8xbf16>
    %c1_8 = arith.constant 1 : index
    %c0_9 = arith.constant 0 : index
    %c0_10 = arith.constant 0 : index
    %11 = vector.load %arg3[%c1_8, %c0_9, %c0_10] : memref<9x8x64xbf16, #tpu.memory_space<vmem>>, vector<1x8x64xbf16>
    %12 = vector.shape_cast %11 : vector<1x8x64xbf16> to vector<8x64xbf16>
    %cst_11 = arith.constant dense<0.000000e+00> : vector<288x64xf32>
    %13 = tpu.matmul %10, %12, %cst_11 {dimension_numbers = #tpu.dot_dimension_numbers<[1], [0], [0], [1], [0, 0, 1, 1], [], []>} : vector<288x8xbf16>, vector<8x64xbf16>, vector<288x64xf32> -> vector<288x64xf32>
    %14 = arith.addf %7, %13 : vector<288x64xf32>
    %c0_12 = arith.constant 0 : index
    %c2 = arith.constant 2 : index
    %c0_13 = arith.constant 0 : index
    %15 = vector.load %arg2[%c0_12, %c2, %c0_13] : memref<1x328x8xf32, #tpu.memory_space<vmem>>, vector<1x288x8xf32>
    %16 = vector.shape_cast %15 : vector<1x288x8xf32> to vector<288x8xf32>
    %17 = arith.truncf %16 : vector<288x8xf32> to vector<288x8xbf16>
    %c2_14 = arith.constant 2 : index
    %c0_15 = arith.constant 0 : index
    %c0_16 = arith.constant 0 : index
    %18 = vector.load %arg3[%c2_14, %c0_15, %c0_16] : memref<9x8x64xbf16, #tpu.memory_space<vmem>>, vector<1x8x64xbf16>
    %19 = vector.shape_cast %18 : vector<1x8x64xbf16> to vector<8x64xbf16>
    %cst_17 = arith.constant dense<0.000000e+00> : vector<288x64xf32>
    %20 = tpu.matmul %17, %19, %cst_17 {dimension_numbers = #tpu.dot_dimension_numbers<[1], [0], [0], [1], [0, 0, 1, 1], [], []>} : vector<288x8xbf16>, vector<8x64xbf16>, vector<288x64xf32> -> vector<288x64xf32>
    %21 = arith.addf %14, %20 : vector<288x64xf32>
    %c0_18 = arith.constant 0 : index
    %c18 = arith.constant 18 : index
    %c0_19 = arith.constant 0 : index
    %22 = vector.load %arg2[%c0_18, %c18, %c0_19] : memref<1x328x8xf32, #tpu.memory_space<vmem>>, vector<1x288x8xf32>
    %23 = vector.shape_cast %22 : vector<1x288x8xf32> to vector<288x8xf32>
    %24 = arith.truncf %23 : vector<288x8xf32> to vector<288x8xbf16>
    %c3 = arith.constant 3 : index
    %c0_20 = arith.constant 0 : index
    %c0_21 = arith.constant 0 : index
    %25 = vector.load %arg3[%c3, %c0_20, %c0_21] : memref<9x8x64xbf16, #tpu.memory_space<vmem>>, vector<1x8x64xbf16>
    %26 = vector.shape_cast %25 : vector<1x8x64xbf16> to vector<8x64xbf16>
    %cst_22 = arith.constant dense<0.000000e+00> : vector<288x64xf32>
    %27 = tpu.matmul %24, %26, %cst_22 {dimension_numbers = #tpu.dot_dimension_numbers<[1], [0], [0], [1], [0, 0, 1, 1], [], []>} : vector<288x8xbf16>, vector<8x64xbf16>, vector<288x64xf32> -> vector<288x64xf32>
    %28 = arith.addf %21, %27 : vector<288x64xf32>
    %c0_23 = arith.constant 0 : index
    %c19 = arith.constant 19 : index
    %c0_24 = arith.constant 0 : index
    %29 = vector.load %arg2[%c0_23, %c19, %c0_24] : memref<1x328x8xf32, #tpu.memory_space<vmem>>, vector<1x288x8xf32>
    %30 = vector.shape_cast %29 : vector<1x288x8xf32> to vector<288x8xf32>
    %31 = arith.truncf %30 : vector<288x8xf32> to vector<288x8xbf16>
    %c4 = arith.constant 4 : index
    %c0_25 = arith.constant 0 : index
    %c0_26 = arith.constant 0 : index
    %32 = vector.load %arg3[%c4, %c0_25, %c0_26] : memref<9x8x64xbf16, #tpu.memory_space<vmem>>, vector<1x8x64xbf16>
    %33 = vector.shape_cast %32 : vector<1x8x64xbf16> to vector<8x64xbf16>
    %cst_27 = arith.constant dense<0.000000e+00> : vector<288x64xf32>
    %34 = tpu.matmul %31, %33, %cst_27 {dimension_numbers = #tpu.dot_dimension_numbers<[1], [0], [0], [1], [0, 0, 1, 1], [], []>} : vector<288x8xbf16>, vector<8x64xbf16>, vector<288x64xf32> -> vector<288x64xf32>
    %35 = arith.addf %28, %34 : vector<288x64xf32>
    %c0_28 = arith.constant 0 : index
    %c20 = arith.constant 20 : index
    %c0_29 = arith.constant 0 : index
    %36 = vector.load %arg2[%c0_28, %c20, %c0_29] : memref<1x328x8xf32, #tpu.memory_space<vmem>>, vector<1x288x8xf32>
    %37 = vector.shape_cast %36 : vector<1x288x8xf32> to vector<288x8xf32>
    %38 = arith.truncf %37 : vector<288x8xf32> to vector<288x8xbf16>
    %c5 = arith.constant 5 : index
    %c0_30 = arith.constant 0 : index
    %c0_31 = arith.constant 0 : index
    %39 = vector.load %arg3[%c5, %c0_30, %c0_31] : memref<9x8x64xbf16, #tpu.memory_space<vmem>>, vector<1x8x64xbf16>
    %40 = vector.shape_cast %39 : vector<1x8x64xbf16> to vector<8x64xbf16>
    %cst_32 = arith.constant dense<0.000000e+00> : vector<288x64xf32>
    %41 = tpu.matmul %38, %40, %cst_32 {dimension_numbers = #tpu.dot_dimension_numbers<[1], [0], [0], [1], [0, 0, 1, 1], [], []>} : vector<288x8xbf16>, vector<8x64xbf16>, vector<288x64xf32> -> vector<288x64xf32>
    %42 = arith.addf %35, %41 : vector<288x64xf32>
    %c0_33 = arith.constant 0 : index
    %c36 = arith.constant 36 : index
    %c0_34 = arith.constant 0 : index
    %43 = vector.load %arg2[%c0_33, %c36, %c0_34] : memref<1x328x8xf32, #tpu.memory_space<vmem>>, vector<1x288x8xf32>
    %44 = vector.shape_cast %43 : vector<1x288x8xf32> to vector<288x8xf32>
    %45 = arith.truncf %44 : vector<288x8xf32> to vector<288x8xbf16>
    %c6 = arith.constant 6 : index
    %c0_35 = arith.constant 0 : index
    %c0_36 = arith.constant 0 : index
    %46 = vector.load %arg3[%c6, %c0_35, %c0_36] : memref<9x8x64xbf16, #tpu.memory_space<vmem>>, vector<1x8x64xbf16>
    %47 = vector.shape_cast %46 : vector<1x8x64xbf16> to vector<8x64xbf16>
    %cst_37 = arith.constant dense<0.000000e+00> : vector<288x64xf32>
    %48 = tpu.matmul %45, %47, %cst_37 {dimension_numbers = #tpu.dot_dimension_numbers<[1], [0], [0], [1], [0, 0, 1, 1], [], []>} : vector<288x8xbf16>, vector<8x64xbf16>, vector<288x64xf32> -> vector<288x64xf32>
    %49 = arith.addf %42, %48 : vector<288x64xf32>
    %c0_38 = arith.constant 0 : index
    %c37 = arith.constant 37 : index
    %c0_39 = arith.constant 0 : index
    %50 = vector.load %arg2[%c0_38, %c37, %c0_39] : memref<1x328x8xf32, #tpu.memory_space<vmem>>, vector<1x288x8xf32>
    %51 = vector.shape_cast %50 : vector<1x288x8xf32> to vector<288x8xf32>
    %52 = arith.truncf %51 : vector<288x8xf32> to vector<288x8xbf16>
    %c7 = arith.constant 7 : index
    %c0_40 = arith.constant 0 : index
    %c0_41 = arith.constant 0 : index
    %53 = vector.load %arg3[%c7, %c0_40, %c0_41] : memref<9x8x64xbf16, #tpu.memory_space<vmem>>, vector<1x8x64xbf16>
    %54 = vector.shape_cast %53 : vector<1x8x64xbf16> to vector<8x64xbf16>
    %cst_42 = arith.constant dense<0.000000e+00> : vector<288x64xf32>
    %55 = tpu.matmul %52, %54, %cst_42 {dimension_numbers = #tpu.dot_dimension_numbers<[1], [0], [0], [1], [0, 0, 1, 1], [], []>} : vector<288x8xbf16>, vector<8x64xbf16>, vector<288x64xf32> -> vector<288x64xf32>
    %56 = arith.addf %49, %55 : vector<288x64xf32>
    %c0_43 = arith.constant 0 : index
    %c38 = arith.constant 38 : index
    %c0_44 = arith.constant 0 : index
    %57 = vector.load %arg2[%c0_43, %c38, %c0_44] : memref<1x328x8xf32, #tpu.memory_space<vmem>>, vector<1x288x8xf32>
    %58 = vector.shape_cast %57 : vector<1x288x8xf32> to vector<288x8xf32>
    %59 = arith.truncf %58 : vector<288x8xf32> to vector<288x8xbf16>
    %c8 = arith.constant 8 : index
    %c0_45 = arith.constant 0 : index
    %c0_46 = arith.constant 0 : index
    %60 = vector.load %arg3[%c8, %c0_45, %c0_46] : memref<9x8x64xbf16, #tpu.memory_space<vmem>>, vector<1x8x64xbf16>
    %61 = vector.shape_cast %60 : vector<1x8x64xbf16> to vector<8x64xbf16>
    %cst_47 = arith.constant dense<0.000000e+00> : vector<288x64xf32>
    %62 = tpu.matmul %59, %61, %cst_47 {dimension_numbers = #tpu.dot_dimension_numbers<[1], [0], [0], [1], [0, 0, 1, 1], [], []>} : vector<288x8xbf16>, vector<8x64xbf16>, vector<288x64xf32> -> vector<288x64xf32>
    %63 = arith.addf %56, %62 : vector<288x64xf32>
    %c0_48 = arith.constant 0 : index
    %c0_49 = arith.constant 0 : index
    %c0_50 = arith.constant 0 : index
    %64 = vector.load %arg4[%c0_48, %c0_49, %c0_50] : memref<1x288x64xf32, #tpu.memory_space<vmem>>, vector<1x288x64xf32>
    %65 = vector.shape_cast %64 : vector<1x288x64xf32> to vector<288x64xf32>
    %66 = vector.shape_cast %63 : vector<288x64xf32> to vector<1x288x64xf32>
    tpu.vector_store %arg4[%c0_48, %c0_49, %c0_50], %66 {strides = array<i32>} : memref<1x288x64xf32, #tpu.memory_space<vmem>>, vector<1x288x64xf32>,
    return
  }
  func.func @transform_0(%arg0: i32, %arg1: i32) -> (i32, i32, i32) {
    %c0_i32 = arith.constant 0 : i32
    %c0_i32_0 = arith.constant 0 : i32
    %c0_i32_1 = arith.constant 0 : i32
    return %arg0, %c0_i32, %c0_i32_0 : i32, i32, i32
  }
  func.func @transform_1(%arg0: i32, %arg1: i32) -> (i32, i32, i32) {
    %c0_i32 = arith.constant 0 : i32
    %c0_i32_0 = arith.constant 0 : i32
    %c0_i32_1 = arith.constant 0 : i32
    return %c0_i32, %c0_i32_0, %arg1 : i32, i32, i32
  }
  func.func @transform_2(%arg0: i32, %arg1: i32) -> (i32, i32, i32) {
    %c0_i32 = arith.constant 0 : i32
    %c0_i32_0 = arith.constant 0 : i32
    return %arg0, %c0_i32, %arg1 : i32, i32, i32
  }
}

module attributes {stable_mosaic.version = 11 : i64} {
  func.func @_bn_stats_kernel(%arg0: i32, %arg1: memref<256x64xf32, #tpu.memory_space<vmem>>, %arg2: memref<1x2x64xf32, #tpu.memory_space<vmem>>) attributes {dimension_semantics = [#tpu.dimension_semantics<parallel>], iteration_bounds = array<i64: 2>, scalar_prefetch = 0 : i64, scratch_operands = 0 : i64, tpu.core_type = #tpu.core_type<tc>, window_params = [{transform_indices = @transform_0, window_bounds = array<i64: 256, 64>}, {transform_indices = @transform_1, window_bounds = array<i64: 1, 2, 64>}]} {
    %c0 = arith.constant 0 : index
    %c0_0 = arith.constant 0 : index
    %0 = vector.load %arg1[%c0, %c0_0] : memref<256x64xf32, #tpu.memory_space<vmem>>, vector<256x64xf32>
    %cst = arith.constant dense<0.000000e+00> : vector<64xf32>
    %1 = vector.multi_reduction <add>, %0, %cst [0] : vector<256x64xf32> to vector<64xf32>
    %2 = vector.shape_cast %1 : vector<64xf32> to vector<1x64xf32>
    %3 = arith.mulf %0, %0 : vector<256x64xf32>
    %cst_1 = arith.constant dense<0.000000e+00> : vector<64xf32>
    %4 = vector.multi_reduction <add>, %3, %cst_1 [0] : vector<256x64xf32> to vector<64xf32>
    %5 = vector.shape_cast %4 : vector<64xf32> to vector<1x64xf32>
    %6 = tpu.concatenate %2, %5 in 0 : vector<1x64xf32>, vector<1x64xf32> -> vector<2x64xf32>
    %c0_2 = arith.constant 0 : index
    %c0_3 = arith.constant 0 : index
    %c0_4 = arith.constant 0 : index
    %7 = vector.load %arg2[%c0_2, %c0_3, %c0_4] : memref<1x2x64xf32, #tpu.memory_space<vmem>>, vector<1x2x64xf32>
    %8 = vector.shape_cast %7 : vector<1x2x64xf32> to vector<2x64xf32>
    %9 = vector.shape_cast %6 : vector<2x64xf32> to vector<1x2x64xf32>
    tpu.vector_store %arg2[%c0_2, %c0_3, %c0_4], %9 {strides = array<i32>} : memref<1x2x64xf32, #tpu.memory_space<vmem>>, vector<1x2x64xf32>,
    return
  }
  func.func @transform_0(%arg0: i32) -> (i32, i32) {
    %c0_i32 = arith.constant 0 : i32
    %c0_i32_0 = arith.constant 0 : i32
    return %arg0, %c0_i32 : i32, i32
  }
  func.func @transform_1(%arg0: i32) -> (i32, i32, i32) {
    %c0_i32 = arith.constant 0 : i32
    %c0_i32_0 = arith.constant 0 : i32
    %c0_i32_1 = arith.constant 0 : i32
    return %arg0, %c0_i32, %c0_i32_0 : i32, i32, i32
  }
}

module attributes {stable_mosaic.version = 11 : i64} {
  func.func @_bn_apply_kernel(%arg0: i32, %arg1: memref<256x64xf32, #tpu.memory_space<vmem>>, %arg2: memref<1x64xf32, #tpu.memory_space<vmem>>, %arg3: memref<1x64xf32, #tpu.memory_space<vmem>>, %arg4: memref<256x64xbf16, #tpu.memory_space<vmem>>) attributes {dimension_semantics = [#tpu.dimension_semantics<parallel>], iteration_bounds = array<i64: 2>, scalar_prefetch = 0 : i64, scratch_operands = 0 : i64, tpu.core_type = #tpu.core_type<tc>, window_params = [{transform_indices = @transform_0, window_bounds = array<i64: 256, 64>}, {pipeline_mode = #tpu.pipeline_mode<synchronous>, transform_indices = @transform_1, window_bounds = array<i64: 1, 64>}, {pipeline_mode = #tpu.pipeline_mode<synchronous>, transform_indices = @transform_2, window_bounds = array<i64: 1, 64>}, {transform_indices = @transform_3, window_bounds = array<i64: 256, 64>}]} {
    %c0 = arith.constant 0 : index
    %c0_0 = arith.constant 0 : index
    %0 = vector.load %arg1[%c0, %c0_0] : memref<256x64xf32, #tpu.memory_space<vmem>>, vector<256x64xf32>
    %c0_1 = arith.constant 0 : index
    %c0_2 = arith.constant 0 : index
    %1 = vector.load %arg2[%c0_1, %c0_2] : memref<1x64xf32, #tpu.memory_space<vmem>>, vector<1x64xf32>
    %2 = vector.broadcast %1 : vector<1x64xf32> to vector<256x64xf32>
    %3 = arith.mulf %0, %2 : vector<256x64xf32>
    %c0_3 = arith.constant 0 : index
    %c0_4 = arith.constant 0 : index
    %4 = vector.load %arg3[%c0_3, %c0_4] : memref<1x64xf32, #tpu.memory_space<vmem>>, vector<1x64xf32>
    %5 = vector.broadcast %4 : vector<1x64xf32> to vector<256x64xf32>
    %6 = arith.addf %3, %5 : vector<256x64xf32>
    %cst = arith.constant 0.000000e+00 : f32
    %7 = vector.broadcast %cst : f32 to vector<256x64xf32>
    %8 = arith.maximumf %6, %7 : vector<256x64xf32>
    %9 = arith.truncf %8 : vector<256x64xf32> to vector<256x64xbf16>
    %c0_5 = arith.constant 0 : index
    %c0_6 = arith.constant 0 : index
    %10 = vector.load %arg4[%c0_5, %c0_6] : memref<256x64xbf16, #tpu.memory_space<vmem>>, vector<256x64xbf16>
    tpu.vector_store %arg4[%c0_5, %c0_6], %9 {strides = array<i32>} : memref<256x64xbf16, #tpu.memory_space<vmem>>, vector<256x64xbf16>,
    return
  }
  func.func @transform_0(%arg0: i32) -> (i32, i32) {
    %c0_i32 = arith.constant 0 : i32
    %c0_i32_0 = arith.constant 0 : i32
    return %arg0, %c0_i32 : i32, i32
  }
  func.func @transform_1(%arg0: i32) -> (i32, i32) {
    %c0_i32 = arith.constant 0 : i32
    %c0_i32_0 = arith.constant 0 : i32
    %c0_i32_1 = arith.constant 0 : i32
    return %c0_i32, %c0_i32_0 : i32, i32
  }
  func.func @transform_2(%arg0: i32) -> (i32, i32) {
    %c0_i32 = arith.constant 0 : i32
    %c0_i32_0 = arith.constant 0 : i32
    %c0_i32_1 = arith.constant 0 : i32
    return %c0_i32, %c0_i32_0 : i32, i32
  }
  func.func @transform_3(%arg0: i32) -> (i32, i32) {
    %c0_i32 = arith.constant 0 : i32
    %c0_i32_0 = arith.constant 0 : i32
    return %arg0, %c0_i32 : i32, i32
  }
}

module attributes {stable_mosaic.version = 11 : i64} {
  func.func @_conv3x3_kernel(%arg0: i32, %arg1: i32, %arg2: memref<1x328x64xf32, #tpu.memory_space<vmem>>, %arg3: memref<9x64x64xbf16, #tpu.memory_space<vmem>>, %arg4: memref<1x288x64xf32, #tpu.memory_space<vmem>>) attributes {dimension_semantics = [#tpu.dimension_semantics<parallel>, #tpu.dimension_semantics<parallel>], iteration_bounds = array<i64: 2, 1>, scalar_prefetch = 0 : i64, scratch_operands = 0 : i64, tpu.core_type = #tpu.core_type<tc>, window_params = [{transform_indices = @transform_0, window_bounds = array<i64: 1, 328, 64>}, {transform_indices = @transform_1, window_bounds = array<i64: 9, 64, 64>}, {transform_indices = @transform_2, window_bounds = array<i64: 1, 288, 64>}]} {
    %cst = arith.constant 0.000000e+00 : f32
    %0 = vector.broadcast %cst : f32 to vector<288x64xf32>
    %c0 = arith.constant 0 : index
    %c0_0 = arith.constant 0 : index
    %c0_1 = arith.constant 0 : index
    %1 = vector.load %arg2[%c0, %c0_0, %c0_1] : memref<1x328x64xf32, #tpu.memory_space<vmem>>, vector<1x288x64xf32>
    %2 = vector.shape_cast %1 : vector<1x288x64xf32> to vector<288x64xf32>
    %3 = arith.truncf %2 : vector<288x64xf32> to vector<288x64xbf16>
    %c0_2 = arith.constant 0 : index
    %c0_3 = arith.constant 0 : index
    %c0_4 = arith.constant 0 : index
    %4 = vector.load %arg3[%c0_2, %c0_3, %c0_4] : memref<9x64x64xbf16, #tpu.memory_space<vmem>>, vector<1x64x64xbf16>
    %5 = vector.shape_cast %4 : vector<1x64x64xbf16> to vector<64x64xbf16>
    %cst_5 = arith.constant dense<0.000000e+00> : vector<288x64xf32>
    %6 = tpu.matmul %3, %5, %cst_5 {dimension_numbers = #tpu.dot_dimension_numbers<[1], [0], [0], [1], [0, 0, 1, 1], [], []>} : vector<288x64xbf16>, vector<64x64xbf16>, vector<288x64xf32> -> vector<288x64xf32>
    %7 = arith.addf %0, %6 : vector<288x64xf32>
    %c0_6 = arith.constant 0 : index
    %c1 = arith.constant 1 : index
    %c0_7 = arith.constant 0 : index
    %8 = vector.load %arg2[%c0_6, %c1, %c0_7] : memref<1x328x64xf32, #tpu.memory_space<vmem>>, vector<1x288x64xf32>
    %9 = vector.shape_cast %8 : vector<1x288x64xf32> to vector<288x64xf32>
    %10 = arith.truncf %9 : vector<288x64xf32> to vector<288x64xbf16>
    %c1_8 = arith.constant 1 : index
    %c0_9 = arith.constant 0 : index
    %c0_10 = arith.constant 0 : index
    %11 = vector.load %arg3[%c1_8, %c0_9, %c0_10] : memref<9x64x64xbf16, #tpu.memory_space<vmem>>, vector<1x64x64xbf16>
    %12 = vector.shape_cast %11 : vector<1x64x64xbf16> to vector<64x64xbf16>
    %cst_11 = arith.constant dense<0.000000e+00> : vector<288x64xf32>
    %13 = tpu.matmul %10, %12, %cst_11 {dimension_numbers = #tpu.dot_dimension_numbers<[1], [0], [0], [1], [0, 0, 1, 1], [], []>} : vector<288x64xbf16>, vector<64x64xbf16>, vector<288x64xf32> -> vector<288x64xf32>
    %14 = arith.addf %7, %13 : vector<288x64xf32>
    %c0_12 = arith.constant 0 : index
    %c2 = arith.constant 2 : index
    %c0_13 = arith.constant 0 : index
    %15 = vector.load %arg2[%c0_12, %c2, %c0_13] : memref<1x328x64xf32, #tpu.memory_space<vmem>>, vector<1x288x64xf32>
    %16 = vector.shape_cast %15 : vector<1x288x64xf32> to vector<288x64xf32>
    %17 = arith.truncf %16 : vector<288x64xf32> to vector<288x64xbf16>
    %c2_14 = arith.constant 2 : index
    %c0_15 = arith.constant 0 : index
    %c0_16 = arith.constant 0 : index
    %18 = vector.load %arg3[%c2_14, %c0_15, %c0_16] : memref<9x64x64xbf16, #tpu.memory_space<vmem>>, vector<1x64x64xbf16>
    %19 = vector.shape_cast %18 : vector<1x64x64xbf16> to vector<64x64xbf16>
    %cst_17 = arith.constant dense<0.000000e+00> : vector<288x64xf32>
    %20 = tpu.matmul %17, %19, %cst_17 {dimension_numbers = #tpu.dot_dimension_numbers<[1], [0], [0], [1], [0, 0, 1, 1], [], []>} : vector<288x64xbf16>, vector<64x64xbf16>, vector<288x64xf32> -> vector<288x64xf32>
    %21 = arith.addf %14, %20 : vector<288x64xf32>
    %c0_18 = arith.constant 0 : index
    %c18 = arith.constant 18 : index
    %c0_19 = arith.constant 0 : index
    %22 = vector.load %arg2[%c0_18, %c18, %c0_19] : memref<1x328x64xf32, #tpu.memory_space<vmem>>, vector<1x288x64xf32>
    %23 = vector.shape_cast %22 : vector<1x288x64xf32> to vector<288x64xf32>
    %24 = arith.truncf %23 : vector<288x64xf32> to vector<288x64xbf16>
    %c3 = arith.constant 3 : index
    %c0_20 = arith.constant 0 : index
    %c0_21 = arith.constant 0 : index
    %25 = vector.load %arg3[%c3, %c0_20, %c0_21] : memref<9x64x64xbf16, #tpu.memory_space<vmem>>, vector<1x64x64xbf16>
    %26 = vector.shape_cast %25 : vector<1x64x64xbf16> to vector<64x64xbf16>
    %cst_22 = arith.constant dense<0.000000e+00> : vector<288x64xf32>
    %27 = tpu.matmul %24, %26, %cst_22 {dimension_numbers = #tpu.dot_dimension_numbers<[1], [0], [0], [1], [0, 0, 1, 1], [], []>} : vector<288x64xbf16>, vector<64x64xbf16>, vector<288x64xf32> -> vector<288x64xf32>
    %28 = arith.addf %21, %27 : vector<288x64xf32>
    %c0_23 = arith.constant 0 : index
    %c19 = arith.constant 19 : index
    %c0_24 = arith.constant 0 : index
    %29 = vector.load %arg2[%c0_23, %c19, %c0_24] : memref<1x328x64xf32, #tpu.memory_space<vmem>>, vector<1x288x64xf32>
    %30 = vector.shape_cast %29 : vector<1x288x64xf32> to vector<288x64xf32>
    %31 = arith.truncf %30 : vector<288x64xf32> to vector<288x64xbf16>
    %c4 = arith.constant 4 : index
    %c0_25 = arith.constant 0 : index
    %c0_26 = arith.constant 0 : index
    %32 = vector.load %arg3[%c4, %c0_25, %c0_26] : memref<9x64x64xbf16, #tpu.memory_space<vmem>>, vector<1x64x64xbf16>
    %33 = vector.shape_cast %32 : vector<1x64x64xbf16> to vector<64x64xbf16>
    %cst_27 = arith.constant dense<0.000000e+00> : vector<288x64xf32>
    %34 = tpu.matmul %31, %33, %cst_27 {dimension_numbers = #tpu.dot_dimension_numbers<[1], [0], [0], [1], [0, 0, 1, 1], [], []>} : vector<288x64xbf16>, vector<64x64xbf16>, vector<288x64xf32> -> vector<288x64xf32>
    %35 = arith.addf %28, %34 : vector<288x64xf32>
    %c0_28 = arith.constant 0 : index
    %c20 = arith.constant 20 : index
    %c0_29 = arith.constant 0 : index
    %36 = vector.load %arg2[%c0_28, %c20, %c0_29] : memref<1x328x64xf32, #tpu.memory_space<vmem>>, vector<1x288x64xf32>
    %37 = vector.shape_cast %36 : vector<1x288x64xf32> to vector<288x64xf32>
    %38 = arith.truncf %37 : vector<288x64xf32> to vector<288x64xbf16>
    %c5 = arith.constant 5 : index
    %c0_30 = arith.constant 0 : index
    %c0_31 = arith.constant 0 : index
    %39 = vector.load %arg3[%c5, %c0_30, %c0_31] : memref<9x64x64xbf16, #tpu.memory_space<vmem>>, vector<1x64x64xbf16>
    %40 = vector.shape_cast %39 : vector<1x64x64xbf16> to vector<64x64xbf16>
    %cst_32 = arith.constant dense<0.000000e+00> : vector<288x64xf32>
    %41 = tpu.matmul %38, %40, %cst_32 {dimension_numbers = #tpu.dot_dimension_numbers<[1], [0], [0], [1], [0, 0, 1, 1], [], []>} : vector<288x64xbf16>, vector<64x64xbf16>, vector<288x64xf32> -> vector<288x64xf32>
    %42 = arith.addf %35, %41 : vector<288x64xf32>
    %c0_33 = arith.constant 0 : index
    %c36 = arith.constant 36 : index
    %c0_34 = arith.constant 0 : index
    %43 = vector.load %arg2[%c0_33, %c36, %c0_34] : memref<1x328x64xf32, #tpu.memory_space<vmem>>, vector<1x288x64xf32>
    %44 = vector.shape_cast %43 : vector<1x288x64xf32> to vector<288x64xf32>
    %45 = arith.truncf %44 : vector<288x64xf32> to vector<288x64xbf16>
    %c6 = arith.constant 6 : index
    %c0_35 = arith.constant 0 : index
    %c0_36 = arith.constant 0 : index
    %46 = vector.load %arg3[%c6, %c0_35, %c0_36] : memref<9x64x64xbf16, #tpu.memory_space<vmem>>, vector<1x64x64xbf16>
    %47 = vector.shape_cast %46 : vector<1x64x64xbf16> to vector<64x64xbf16>
    %cst_37 = arith.constant dense<0.000000e+00> : vector<288x64xf32>
    %48 = tpu.matmul %45, %47, %cst_37 {dimension_numbers = #tpu.dot_dimension_numbers<[1], [0], [0], [1], [0, 0, 1, 1], [], []>} : vector<288x64xbf16>, vector<64x64xbf16>, vector<288x64xf32> -> vector<288x64xf32>
    %49 = arith.addf %42, %48 : vector<288x64xf32>
    %c0_38 = arith.constant 0 : index
    %c37 = arith.constant 37 : index
    %c0_39 = arith.constant 0 : index
    %50 = vector.load %arg2[%c0_38, %c37, %c0_39] : memref<1x328x64xf32, #tpu.memory_space<vmem>>, vector<1x288x64xf32>
    %51 = vector.shape_cast %50 : vector<1x288x64xf32> to vector<288x64xf32>
    %52 = arith.truncf %51 : vector<288x64xf32> to vector<288x64xbf16>
    %c7 = arith.constant 7 : index
    %c0_40 = arith.constant 0 : index
    %c0_41 = arith.constant 0 : index
    %53 = vector.load %arg3[%c7, %c0_40, %c0_41] : memref<9x64x64xbf16, #tpu.memory_space<vmem>>, vector<1x64x64xbf16>
    %54 = vector.shape_cast %53 : vector<1x64x64xbf16> to vector<64x64xbf16>
    %cst_42 = arith.constant dense<0.000000e+00> : vector<288x64xf32>
    %55 = tpu.matmul %52, %54, %cst_42 {dimension_numbers = #tpu.dot_dimension_numbers<[1], [0], [0], [1], [0, 0, 1, 1], [], []>} : vector<288x64xbf16>, vector<64x64xbf16>, vector<288x64xf32> -> vector<288x64xf32>
    %56 = arith.addf %49, %55 : vector<288x64xf32>
    %c0_43 = arith.constant 0 : index
    %c38 = arith.constant 38 : index
    %c0_44 = arith.constant 0 : index
    %57 = vector.load %arg2[%c0_43, %c38, %c0_44] : memref<1x328x64xf32, #tpu.memory_space<vmem>>, vector<1x288x64xf32>
    %58 = vector.shape_cast %57 : vector<1x288x64xf32> to vector<288x64xf32>
    %59 = arith.truncf %58 : vector<288x64xf32> to vector<288x64xbf16>
    %c8 = arith.constant 8 : index
    %c0_45 = arith.constant 0 : index
    %c0_46 = arith.constant 0 : index
    %60 = vector.load %arg3[%c8, %c0_45, %c0_46] : memref<9x64x64xbf16, #tpu.memory_space<vmem>>, vector<1x64x64xbf16>
    %61 = vector.shape_cast %60 : vector<1x64x64xbf16> to vector<64x64xbf16>
    %cst_47 = arith.constant dense<0.000000e+00> : vector<288x64xf32>
    %62 = tpu.matmul %59, %61, %cst_47 {dimension_numbers = #tpu.dot_dimension_numbers<[1], [0], [0], [1], [0, 0, 1, 1], [], []>} : vector<288x64xbf16>, vector<64x64xbf16>, vector<288x64xf32> -> vector<288x64xf32>
    %63 = arith.addf %56, %62 : vector<288x64xf32>
    %c0_48 = arith.constant 0 : index
    %c0_49 = arith.constant 0 : index
    %c0_50 = arith.constant 0 : index
    %64 = vector.load %arg4[%c0_48, %c0_49, %c0_50] : memref<1x288x64xf32, #tpu.memory_space<vmem>>, vector<1x288x64xf32>
    %65 = vector.shape_cast %64 : vector<1x288x64xf32> to vector<288x64xf32>
    %66 = vector.shape_cast %63 : vector<288x64xf32> to vector<1x288x64xf32>
    tpu.vector_store %arg4[%c0_48, %c0_49, %c0_50], %66 {strides = array<i32>} : memref<1x288x64xf32, #tpu.memory_space<vmem>>, vector<1x288x64xf32>,
    return
  }
  func.func @transform_0(%arg0: i32, %arg1: i32) -> (i32, i32, i32) {
    %c0_i32 = arith.constant 0 : i32
    %c0_i32_0 = arith.constant 0 : i32
    %c0_i32_1 = arith.constant 0 : i32
    return %arg0, %c0_i32, %c0_i32_0 : i32, i32, i32
  }
  func.func @transform_1(%arg0: i32, %arg1: i32) -> (i32, i32, i32) {
    %c0_i32 = arith.constant 0 : i32
    %c0_i32_0 = arith.constant 0 : i32
    %c0_i32_1 = arith.constant 0 : i32
    return %c0_i32, %c0_i32_0, %arg1 : i32, i32, i32
  }
  func.func @transform_2(%arg0: i32, %arg1: i32) -> (i32, i32, i32) {
    %c0_i32 = arith.constant 0 : i32
    %c0_i32_0 = arith.constant 0 : i32
    return %arg0, %c0_i32, %arg1 : i32, i32, i32
  }
}

module attributes {stable_mosaic.version = 11 : i64} {
  func.func @_bn_apply_kernel(%arg0: i32, %arg1: memref<256x64xf32, #tpu.memory_space<vmem>>, %arg2: memref<1x64xf32, #tpu.memory_space<vmem>>, %arg3: memref<1x64xf32, #tpu.memory_space<vmem>>, %arg4: memref<256x64xf32, #tpu.memory_space<vmem>>) attributes {dimension_semantics = [#tpu.dimension_semantics<parallel>], iteration_bounds = array<i64: 2>, scalar_prefetch = 0 : i64, scratch_operands = 0 : i64, tpu.core_type = #tpu.core_type<tc>, window_params = [{transform_indices = @transform_0, window_bounds = array<i64: 256, 64>}, {pipeline_mode = #tpu.pipeline_mode<synchronous>, transform_indices = @transform_1, window_bounds = array<i64: 1, 64>}, {pipeline_mode = #tpu.pipeline_mode<synchronous>, transform_indices = @transform_2, window_bounds = array<i64: 1, 64>}, {transform_indices = @transform_3, window_bounds = array<i64: 256, 64>}]} {
    %c0 = arith.constant 0 : index
    %c0_0 = arith.constant 0 : index
    %0 = vector.load %arg1[%c0, %c0_0] : memref<256x64xf32, #tpu.memory_space<vmem>>, vector<256x64xf32>
    %c0_1 = arith.constant 0 : index
    %c0_2 = arith.constant 0 : index
    %1 = vector.load %arg2[%c0_1, %c0_2] : memref<1x64xf32, #tpu.memory_space<vmem>>, vector<1x64xf32>
    %2 = vector.broadcast %1 : vector<1x64xf32> to vector<256x64xf32>
    %3 = arith.mulf %0, %2 : vector<256x64xf32>
    %c0_3 = arith.constant 0 : index
    %c0_4 = arith.constant 0 : index
    %4 = vector.load %arg3[%c0_3, %c0_4] : memref<1x64xf32, #tpu.memory_space<vmem>>, vector<1x64xf32>
    %5 = vector.broadcast %4 : vector<1x64xf32> to vector<256x64xf32>
    %6 = arith.addf %3, %5 : vector<256x64xf32>
    %cst = arith.constant 0.000000e+00 : f32
    %7 = vector.broadcast %cst : f32 to vector<256x64xf32>
    %8 = arith.maximumf %6, %7 : vector<256x64xf32>
    %c0_5 = arith.constant 0 : index
    %c0_6 = arith.constant 0 : index
    %9 = vector.load %arg4[%c0_5, %c0_6] : memref<256x64xf32, #tpu.memory_space<vmem>>, vector<256x64xf32>
    tpu.vector_store %arg4[%c0_5, %c0_6], %8 {strides = array<i32>} : memref<256x64xf32, #tpu.memory_space<vmem>>, vector<256x64xf32>,
    return
  }
  func.func @transform_0(%arg0: i32) -> (i32, i32) {
    %c0_i32 = arith.constant 0 : i32
    %c0_i32_0 = arith.constant 0 : i32
    return %arg0, %c0_i32 : i32, i32
  }
  func.func @transform_1(%arg0: i32) -> (i32, i32) {
    %c0_i32 = arith.constant 0 : i32
    %c0_i32_0 = arith.constant 0 : i32
    %c0_i32_1 = arith.constant 0 : i32
    return %c0_i32, %c0_i32_0 : i32, i32
  }
  func.func @transform_2(%arg0: i32) -> (i32, i32) {
    %c0_i32 = arith.constant 0 : i32
    %c0_i32_0 = arith.constant 0 : i32
    %c0_i32_1 = arith.constant 0 : i32
    return %c0_i32, %c0_i32_0 : i32, i32
  }
  func.func @transform_3(%arg0: i32) -> (i32, i32) {
    %c0_i32 = arith.constant 0 : i32
    %c0_i32_0 = arith.constant 0 : i32
    return %arg0, %c0_i32 : i32, i32
  }
}

</mosaic_0001>

<llo_original>
// kernel: double_conv.7
$region0: #{double_conv.7}
  #allocation0 [shape = 'u32[]', space=smem, size = 0x4, offset = 0x4, fixed_abs, tag = 'smem constant byte address 0x4 - core index']
  #allocation1 [shape = 'u32[72,128]{1,0:T(1,128)}', space=vmem, size = 0x9000, scoped, tag = 'internal scratch']
  %s0 = inlined_call_operand.vmem [shape: f32[512,64], index: 0, kind: input, shape index: {}]
  %s1 = inlined_call_operand.vmem [shape: f32[2,2,64], index: 1, kind: output, shape index: {}]
  %s2 = sld [smem:[#allocation0]]
  $region37: #{double_conv.7} parent=0
    _
  %s4 = ssub.s32 1, %s2
  %s5 = scalar_select 0, %s4, %s2
  loop: start=0, step=1, limit=4
  $region2: #{double_conv.7} parent=0 // loop_pre_header
    _
  $region3: #{double_conv.7} parent=0 // loop_header
    %s7 = sphi 0, %s11
    %p8 = scmp.ge.s32.totalorder %s7, 4
    %s17 = sphi 0, %s19
    %s20 = sphi 0, %s17
    %s21 = sphi 0, %s20
    %s37 = sphi 0, %s21
    %s43 = sphi 0, %s45
    %s46 = sphi 0, %s43
    %s47 = sphi 0, %s46
    %s63 = sphi 0, %s47
  $region4: #{double_conv.7} parent=0 // loop_header_branch
    %10 = sbr.rel (%p8) target = $region8
  $region5: #{double_conv.7} parent=0 // loop_body
    %s12 = ssub.s32 %s7, 1
    %s13 = ssub.s32 %s7, 2
    %s14 = sadd.s32 %s7, 1
    %s15 = ssub.s32 %s7, %s14
    %p16 = scmp.eq.s32.totalorder %s15, 0
    %s18 = sadd.s32 %s17, 1
    %s19 = scalar_select %p16, %s17, %s18
    %p22 = pneg %p16
    %p23 = scmp.eq.s32.totalorder %s7, 1
    %p24 = por %p22, %p23
    %p25 = scmp.ne.s32.totalorder %s17, %s20
    %p26 = scmp.eq.s32.totalorder %s7, 0
    %p27 = por %p25, %p26
    %p28 = scmp.ne.s32.totalorder %s17, %s20
    %p29 = scmp.eq.s32.totalorder %s12, 1
    %p30 = por %p28, %p29
    %p31 = scmp.ne.s32.totalorder %s20, %s21
    %p32 = scmp.eq.s32.totalorder %s12, 0
    %p33 = por %p31, %p32
    %p34 = scmp.ne.s32.totalorder %s20, %s21
    %p35 = scmp.eq.s32.totalorder %s13, 1
    %p36 = por %p34, %p35
    %p38 = scmp.ne.s32.totalorder %s21, %s37
    %p39 = scmp.eq.s32.totalorder %s13, 0
    %p40 = por %p38, %p39
    %s41 = ssub.s32 %s7, %s14
    %p42 = scmp.eq.s32.totalorder %s41, 0
    %s44 = sadd.s32 %s43, 1
    %s45 = scalar_select %p42, %s43, %s44
    %p48 = pneg %p42
    %p49 = scmp.eq.s32.totalorder %s7, 1
    %p50 = por %p48, %p49
    %p51 = scmp.ne.s32.totalorder %s43, %s46
    %p52 = scmp.eq.s32.totalorder %s7, 0
    %p53 = por %p51, %p52
    %p54 = scmp.ne.s32.totalorder %s43, %s46
    %p55 = scmp.eq.s32.totalorder %s12, 1
    %p56 = por %p54, %p55
    %p57 = scmp.ne.s32.totalorder %s46, %s47
    %p58 = scmp.eq.s32.totalorder %s12, 0
    %p59 = por %p57, %p58
    %p60 = scmp.ne.s32.totalorder %s46, %s47
    %p61 = scmp.eq.s32.totalorder %s13, 1
    %p62 = por %p60, %p61
    %p64 = scmp.ne.s32.totalorder %s47, %s63
    %p65 = scmp.eq.s32.totalorder %s13, 0
    %p66 = por %p64, %p65
    %p67 = scmp.le.s32.totalorder 1, %s7
    %p68 = scmp.lt.s32.totalorder %s7, 3
    %p69 = pnand %p67, %p68
    %p70 = pneg %p69
    // Predicated region
    $region9: #{double_conv.7} parent=5 // pred_check
      _
    $region10: #{double_conv.7} parent=5 // pred_check_branch
      %72 = sbr.rel (%p69) target = $region12
    $region11: #{double_conv.7} parent=5 // pred_region
      %s73 = ssub.s32 %s7, 1
    $region12: #{double_conv.7} parent=5 // pred_fallthru
      _
    %p74 = scmp.lt.s32.totalorder %s7, 2
    // Predicated region
    $region13: #{double_conv.7} parent=5 // pred_check
      %p75 = pneg %p74
    $region14: #{double_conv.7} parent=5 // pred_check_branch
      %77 = sbr.rel (%p75) target = $region16
    $region15: #{double_conv.7} parent=5 // pred_region
      // Predicated region
      $region17: #{double_conv.7} parent=15 // pred_check
        %p78 = pneg %p27
      $region18: #{double_conv.7} parent=15 // pred_check_branch
        %80 = sbr.rel (%p78) target = $region20
      $region19: #{double_conv.7} parent=15 // pred_region
        %s81 = smul.u32 32, %s7
        %p82 = scmp.lt.s32.totalorder %s81, 63
        %s83 = scalar_select %p82, %s81, 63
        %s84 = smul.addr %s83, 8
        %s85 = scalar_lea.vmem %s0, %s84
        %s86 = smul.u32 32, %s7
      $region20: #{double_conv.7} parent=15 // pred_fallthru
        _
    $region16: #{double_conv.7} parent=5 // pred_fallthru
      _
    %p87 = scmp.le.s32.totalorder 1, %s7
    %p88 = scmp.lt.s32.totalorder %s7, 3
    %p89 = pnand %p87, %p88
    %p90 = pneg %p89
    // Predicated region
    $region21: #{double_conv.7} parent=5 // pred_check
      _
    $region22: #{double_conv.7} parent=5 // pred_check_branch
      %92 = sbr.rel (%p89) target = $region24
    $region23: #{double_conv.7} parent=5 // pred_region
      %s93 = ssub.s32 %s7, 1
      %s94 = smul.u32 32, %s12
      %p95 = scmp.lt.s32.totalorder %s94, 63
      %s96 = scalar_select %p95, %s94, 63
      %s97 = smul.addr %s96, 8
      %s98 = scalar_lea.vmem %s0, %s97
      %p99 = pneg %p33
      %p100 = pneg %p30
      %p101 = pneg %p59
      %p102 = pneg %p56
      %p103 = scmp.lt.s32.totalorder %s12, 1
      %s104 = scalar_select %p103, %s12, 1
      %s105 = smul.addr %s104, 2
      %s106 = scalar_lea.vmem %s1, %s105
      %s107 = smul.u32 32, %s12
      %p108 = scmp.lt.s32.totalorder %s107, 63
      %s109 = scalar_select %p108, %s107, 63
      %s110 = smul.addr %s109, 8
      %s111 = scalar_lea.vmem %s0, %s110
      %s112 = smul.u32 32, %s12
      %p113 = scmp.lt.s32.totalorder %s12, 1
      %s114 = scalar_select %p113, %s12, 1
      %s115 = smul.addr %s114, 2
      %s116 = scalar_lea.vmem %s1, %s115
      %v117 = vld [vmem:[%s111] sm:$0xff]
      %v118 = vld [vmem:[%s111 + $0x8] sm:$0xff]
      %v119 = vld [vmem:[%s111 + $0x10] sm:$0xff]
      %v120 = vld [vmem:[%s111 + $0x18] sm:$0xff]
      %v121 = vld [vmem:[%s111 + $0x20] sm:$0xff]
      %v122 = vld [vmem:[%s111 + $0x28] sm:$0xff]
      %v123 = vld [vmem:[%s111 + $0x30] sm:$0xff]
      %v124 = vld [vmem:[%s111 + $0x38] sm:$0xff]
      %v125 = vld [vmem:[%s111 + $0x40] sm:$0xff]
      %v126 = vld [vmem:[%s111 + $0x48] sm:$0xff]
      %v127 = vld [vmem:[%s111 + $0x50] sm:$0xff]
      %v128 = vld [vmem:[%s111 + $0x58] sm:$0xff]
      %v129 = vld [vmem:[%s111 + $0x60] sm:$0xff]
      %v130 = vld [vmem:[%s111 + $0x68] sm:$0xff]
      %v131 = vld [vmem:[%s111 + $0x70] sm:$0xff]
      %v132 = vld [vmem:[%s111 + $0x78] sm:$0xff]
      %v133 = vld [vmem:[%s111 + $0x80] sm:$0xff]
      %v134 = vld [vmem:[%s111 + $0x88] sm:$0xff]
      %v135 = vld [vmem:[%s111 + $0x90] sm:$0xff]
      %v136 = vld [vmem:[%s111 + $0x98] sm:$0xff]
      %v137 = vld [vmem:[%s111 + $0xa0] sm:$0xff]
      %v138 = vld [vmem:[%s111 + $0xa8] sm:$0xff]
      %v139 = vld [vmem:[%s111 + $0xb0] sm:$0xff]
      %v140 = vld [vmem:[%s111 + $0xb8] sm:$0xff]
      %v141 = vld [vmem:[%s111 + $0xc0] sm:$0xff]
      %v142 = vld [vmem:[%s111 + $0xc8] sm:$0xff]
      %v143 = vld [vmem:[%s111 + $0xd0] sm:$0xff]
      %v144 = vld [vmem:[%s111 + $0xd8] sm:$0xff]
      %v145 = vld [vmem:[%s111 + $0xe0] sm:$0xff]
      %v146 = vld [vmem:[%s111 + $0xe8] sm:$0xff]
      %v147 = vld [vmem:[%s111 + $0xf0] sm:$0xff]
      %v148 = vld [vmem:[%s111 + $0xf8] sm:$0xff]
      %vm149 = vcmask 523264
      %v150 = vsel %vm149, %v117, 0.0
      %v151 = vsel %vm149, %v118, 0.0
      %v152 = vadd.f32 %v150, %v151
      %v153 = vsel %vm149, %v119, 0.0
      %v154 = vadd.f32 %v152, %v153
      %v155 = vsel %vm149, %v120, 0.0
      %v156 = vadd.f32 %v154, %v155
      %v157 = vsel %vm149, %v121, 0.0
      %v158 = vadd.f32 %v156, %v157
      %v159 = vsel %vm149, %v122, 0.0
      %v160 = vadd.f32 %v158, %v159
      %v161 = vsel %vm149, %v123, 0.0
      %v162 = vadd.f32 %v160, %v161
      %v163 = vsel %vm149, %v124, 0.0
      %v164 = vadd.f32 %v162, %v163
      %v165 = vsel %vm149, %v125, 0.0
      %v166 = vadd.f32 %v164, %v165
      %v167 = vsel %vm149, %v126, 0.0
      %v168 = vadd.f32 %v166, %v167
      %v169 = vsel %vm149, %v127, 0.0
      %v170 = vadd.f32 %v168, %v169
      %v171 = vsel %vm149, %v128, 0.0
      %v172 = vadd.f32 %v170, %v171
      %v173 = vsel %vm149, %v129, 0.0
      %v174 = vadd.f32 %v172, %v173
      %v175 = vsel %vm149, %v130, 0.0
      %v176 = vadd.f32 %v174, %v175
      %v177 = vsel %vm149, %v131, 0.0
      %v178 = vadd.f32 %v176, %v177
      %v179 = vsel %vm149, %v132, 0.0
      %v180 = vadd.f32 %v178, %v179
      %v181 = vsel %vm149, %v133, 0.0
      %v182 = vadd.f32 %v180, %v181
      %v183 = vsel %vm149, %v134, 0.0
      %v184 = vadd.f32 %v182, %v183
      %v185 = vsel %vm149, %v135, 0.0
      %v186 = vadd.f32 %v184, %v185
      %v187 = vsel %vm149, %v136, 0.0
      %v188 = vadd.f32 %v186, %v187
      %v189 = vsel %vm149, %v137, 0.0
      %v190 = vadd.f32 %v188, %v189
      %v191 = vsel %vm149, %v138, 0.0
      %v192 = vadd.f32 %v190, %v191
      %v193 = vsel %vm149, %v139, 0.0
      %v194 = vadd.f32 %v192, %v193
      %v195 = vsel %vm149, %v140, 0.0
      %v196 = vadd.f32 %v194, %v195
      %v197 = vsel %vm149, %v141, 0.0
      %v198 = vadd.f32 %v196, %v197
      %v199 = vsel %vm149, %v142, 0.0
      %v200 = vadd.f32 %v198, %v199
      %v201 = vsel %vm149, %v143, 0.0
      %v202 = vadd.f32 %v200, %v201
      %v203 = vsel %vm149, %v144, 0.0
      %v204 = vadd.f32 %v202, %v203
      %v205 = vsel %vm149, %v145, 0.0
      %v206 = vadd.f32 %v204, %v205
      %v207 = vsel %vm149, %v146, 0.0
      %v208 = vadd.f32 %v206, %v207
      %v209 = vsel %vm149, %v147, 0.0
      %v210 = vadd.f32 %v208, %v209
      %v211 = vsel %vm149, %v148, 0.0
      %v212 = vadd.f32 %v210, %v211
      %v213 = vrot.slane %v212, 4
      %v214 = vadd.f32 %v212, %v213
      %v215 = vrot.slane %v214, 2
      %v216 = vadd.f32 %v214, %v215
      %v217 = vrot.slane %v216, 1
      %v218 = vadd.f32 %v216, %v217
      %v219 = vmul.f32 %v117, %v117
      %v220 = vmul.f32 %v118, %v118
      %v221 = vmul.f32 %v119, %v119
      %v222 = vmul.f32 %v120, %v120
      %v223 = vmul.f32 %v121, %v121
      %v224 = vmul.f32 %v122, %v122
      %v225 = vmul.f32 %v123, %v123
      %v226 = vmul.f32 %v124, %v124
      %v227 = vmul.f32 %v125, %v125
      %v228 = vmul.f32 %v126, %v126
      %v229 = vmul.f32 %v127, %v127
      %v230 = vmul.f32 %v128, %v128
      %v231 = vmul.f32 %v129, %v129
      %v232 = vmul.f32 %v130, %v130
      %v233 = vmul.f32 %v131, %v131
      %v234 = vmul.f32 %v132, %v132
      %v235 = vmul.f32 %v133, %v133
      %v236 = vmul.f32 %v134, %v134
      %v237 = vmul.f32 %v135, %v135
      %v238 = vmul.f32 %v136, %v136
      %v239 = vmul.f32 %v137, %v137
      %v240 = vmul.f32 %v138, %v138
      %v241 = vmul.f32 %v139, %v139
      %v242 = vmul.f32 %v140, %v140
      %v243 = vmul.f32 %v141, %v141
      %v244 = vmul.f32 %v142, %v142
      %v245 = vmul.f32 %v143, %v143
      %v246 = vmul.f32 %v144, %v144
      %v247 = vmul.f32 %v145, %v145
      %v248 = vmul.f32 %v146, %v146
      %v249 = vmul.f32 %v147, %v147
      %v250 = vmul.f32 %v148, %v148
      %v251 = vsel %vm149, %v219, 0.0
      %v252 = vsel %vm149, %v220, 0.0
      %v253 = vadd.f32 %v251, %v252
      %v254 = vsel %vm149, %v221, 0.0
      %v255 = vadd.f32 %v253, %v254
      %v256 = vsel %vm149, %v222, 0.0
      %v257 = vadd.f32 %v255, %v256
      %v258 = vsel %vm149, %v223, 0.0
      %v259 = vadd.f32 %v257, %v258
      %v260 = vsel %vm149, %v224, 0.0
      %v261 = vadd.f32 %v259, %v260
      %v262 = vsel %vm149, %v225, 0.0
      %v263 = vadd.f32 %v261, %v262
      %v264 = vsel %vm149, %v226, 0.0
      %v265 = vadd.f32 %v263, %v264
      %v266 = vsel %vm149, %v227, 0.0
      %v267 = vadd.f32 %v265, %v266
      %v268 = vsel %vm149, %v228, 0.0
      %v269 = vadd.f32 %v267, %v268
      %v270 = vsel %vm149, %v229, 0.0
      %v271 = vadd.f32 %v269, %v270
      %v272 = vsel %vm149, %v230, 0.0
      %v273 = vadd.f32 %v271, %v272
      %v274 = vsel %vm149, %v231, 0.0
      %v275 = vadd.f32 %v273, %v274
      %v276 = vsel %vm149, %v232, 0.0
      %v277 = vadd.f32 %v275, %v276
      %v278 = vsel %vm149, %v233, 0.0
      %v279 = vadd.f32 %v277, %v278
      %v280 = vsel %vm149, %v234, 0.0
      %v281 = vadd.f32 %v279, %v280
      %v282 = vsel %vm149, %v235, 0.0
      %v283 = vadd.f32 %v281, %v282
      %v284 = vsel %vm149, %v236, 0.0
      %v285 = vadd.f32 %v283, %v284
      %v286 = vsel %vm149, %v237, 0.0
      %v287 = vadd.f32 %v285, %v286
      %v288 = vsel %vm149, %v238, 0.0
      %v289 = vadd.f32 %v287, %v288
      %v290 = vsel %vm149, %v239, 0.0
      %v291 = vadd.f32 %v289, %v290
      %v292 = vsel %vm149, %v240, 0.0
      %v293 = vadd.f32 %v291, %v292
      %v294 = vsel %vm149, %v241, 0.0
      %v295 = vadd.f32 %v293, %v294
      %v296 = vsel %vm149, %v242, 0.0
      %v297 = vadd.f32 %v295, %v296
      %v298 = vsel %vm149, %v243, 0.0
      %v299 = vadd.f32 %v297, %v298
      %v300 = vsel %vm149, %v244, 0.0
      %v301 = vadd.f32 %v299, %v300
      %v302 = vsel %vm149, %v245, 0.0
      %v303 = vadd.f32 %v301, %v302
      %v304 = vsel %vm149, %v246, 0.0
      %v305 = vadd.f32 %v303, %v304
      %v306 = vsel %vm149, %v247, 0.0
      %v307 = vadd.f32 %v305, %v306
      %v308 = vsel %vm149, %v248, 0.0
      %v309 = vadd.f32 %v307, %v308
      %v310 = vsel %vm149, %v249, 0.0
      %v311 = vadd.f32 %v309, %v310
      %v312 = vsel %vm149, %v250, 0.0
      %v313 = vadd.f32 %v311, %v312
      %v314 = vrot.slane %v313, 4
      %v315 = vadd.f32 %v313, %v314
      %v316 = vrot.slane %v315, 2
      %v317 = vadd.f32 %v315, %v316
      %v318 = vrot.slane %v317, 1
      %v319 = vadd.f32 %v317, %v318
      %vm320 = vcmask 1040384
      %v321 = vsel %vm320, %v218, %v319
      %vm322 = vcmask 517120
      %323 = vst.msk [vmem:[%s116] sm:$0x3] %vm322, %v321
      %p324 = scmp.lt.s32.totalorder %s12, 1
      %s325 = scalar_select %p324, %s12, 1
      %s326 = smul.addr %s325, 2
      %s327 = scalar_lea.vmem %s1, %s326
      // Predicated region
      $region25: #{double_conv.7} parent=23 // pred_check
        %p328 = pneg %p56
      $region26: #{double_conv.7} parent=23 // pred_check_branch
        %330 = sbr.rel (%p328) target = $region28
      $region27: #{double_conv.7} parent=23 // pred_region
        _
      $region28: #{double_conv.7} parent=23 // pred_fallthru
        _
    $region24: #{double_conv.7} parent=5 // pred_fallthru
      _
    %p331 = scmp.le.s32.totalorder 2, %s7
    // Predicated region
    $region29: #{double_conv.7} parent=5 // pred_check
      %p332 = pneg %p331
    $region30: #{double_conv.7} parent=5 // pred_check_branch
      %334 = sbr.rel (%p332) target = $region32
    $region31: #{double_conv.7} parent=5 // pred_region
      %s335 = ssub.s32 %s7, 2
      // Predicated region
      $region33: #{double_conv.7} parent=31 // pred_check
        %p336 = pneg %p62
      $region34: #{double_conv.7} parent=31 // pred_check_branch
        %338 = sbr.rel (%p336) target = $region36
      $region35: #{double_conv.7} parent=31 // pred_region
        %p339 = scmp.lt.s32.totalorder %s13, 1
        %s340 = scalar_select %p339, %s13, 1
        %s341 = smul.addr %s340, 2
        %s342 = scalar_lea.vmem %s1, %s341
      $region36: #{double_conv.7} parent=31 // pred_fallthru
        _
    $region32: #{double_conv.7} parent=5 // pred_fallthru
      _
  $region6: #{double_conv.7} parent=0 // loop_footer
    %s11 = sadd.s32 1, %s7
  $region7: #{double_conv.7} parent=0 // loop_footer_branch
    %6 = sbr.rel target = $region3
  $region8: #{double_conv.7} parent=0 // loop_exit
    _

// kernel: double_conv.8
$region0: #{double_conv.8}
  #allocation0 [shape = 'u32[]', space=smem, size = 0x4, offset = 0x4, fixed_abs, tag = 'smem constant byte address 0x4 - core index']
  #allocation1 [shape = 'u32[72,128]{1,0:T(1,128)}', space=vmem, size = 0x9000, scoped, tag = 'internal scratch']
  %s0 = inlined_call_operand.vmem [shape: f32[512,64], index: 0, kind: input, shape index: {}]
  %s1 = inlined_call_operand.vmem [shape: f32[1,64], index: 1, kind: input, shape index: {}]
  %s2 = inlined_call_operand.vmem [shape: f32[1,64], index: 2, kind: input, shape index: {}]
  %s3 = inlined_call_operand.vmem [shape: bf16[512,64], index: 3, kind: output, shape index: {}]
  %s4 = sld [smem:[#allocation0]]
  $region45: #{double_conv.8} parent=0
    _
  %s6 = ssub.s32 1, %s4
  %s7 = scalar_select 0, %s6, %s4
  loop: start=0, step=1, limit=4
  $region2: #{double_conv.8} parent=0 // loop_pre_header
    _
  $region3: #{double_conv.8} parent=0 // loop_header
    %s9 = sphi 0, %s13
    %p10 = scmp.ge.s32.totalorder %s9, 4
    %s19 = sphi 0, %s21
    %s22 = sphi 0, %s19
    %s23 = sphi 0, %s22
    %s39 = sphi 0, %s23
    %s43 = sphi 0, %s43
    %s45 = sphi 0, %s43
    %s46 = sphi 0, %s45
    %s60 = sphi 0, %s46
    %s64 = sphi 0, %s64
    %s66 = sphi 0, %s64
    %s67 = sphi 0, %s66
    %s81 = sphi 0, %s67
    %s87 = sphi 0, %s89
    %s90 = sphi 0, %s87
    %s91 = sphi 0, %s90
    %s107 = sphi 0, %s91
  $region4: #{double_conv.8} parent=0 // loop_header_branch
    %12 = sbr.rel (%p10) target = $region8
  $region5: #{double_conv.8} parent=0 // loop_body
    %s14 = ssub.s32 %s9, 1
    %s15 = ssub.s32 %s9, 2
    %s16 = sadd.s32 %s9, 1
    %s17 = ssub.s32 %s9, %s16
    %p18 = scmp.eq.s32.totalorder %s17, 0
    %s20 = sadd.s32 %s19, 1
    %s21 = scalar_select %p18, %s19, %s20
    %p24 = pneg %p18
    %p25 = scmp.eq.s32.totalorder %s9, 1
    %p26 = por %p24, %p25
    %p27 = scmp.ne.s32.totalorder %s19, %s22
    %p28 = scmp.eq.s32.totalorder %s9, 0
    %p29 = por %p27, %p28
    %p30 = scmp.ne.s32.totalorder %s19, %s22
    %p31 = scmp.eq.s32.totalorder %s14, 1
    %p32 = por %p30, %p31
    %p33 = scmp.ne.s32.totalorder %s22, %s23
    %p34 = scmp.eq.s32.totalorder %s14, 0
    %p35 = por %p33, %p34
    %p36 = scmp.ne.s32.totalorder %s22, %s23
    %p37 = scmp.eq.s32.totalorder %s15, 1
    %p38 = por %p36, %p37
    %p40 = scmp.ne.s32.totalorder %s23, %s39
    %p41 = scmp.eq.s32.totalorder %s15, 0
    %p42 = por %p40, %p41
    %s44 = sadd.s32 %s43, 1
    %p47 = scmp.eq.s32.totalorder %s9, 1
    %p48 = scmp.ne.s32.totalorder %s43, %s45
    %p49 = scmp.eq.s32.totalorder %s9, 0
    %p50 = por %p48, %p49
    %p51 = scmp.ne.s32.totalorder %s43, %s45
    %p52 = scmp.eq.s32.totalorder %s14, 1
    %p53 = por %p51, %p52
    %p54 = scmp.ne.s32.totalorder %s45, %s46
    %p55 = scmp.eq.s32.totalorder %s14, 0
    %p56 = por %p54, %p55
    %p57 = scmp.ne.s32.totalorder %s45, %s46
    %p58 = scmp.eq.s32.totalorder %s15, 1
    %p59 = por %p57, %p58
    %p61 = scmp.ne.s32.totalorder %s46, %s60
    %p62 = scmp.eq.s32.totalorder %s15, 0
    %p63 = por %p61, %p62
    %s65 = sadd.s32 %s64, 1
    %p68 = scmp.eq.s32.totalorder %s9, 1
    %p69 = scmp.ne.s32.totalorder %s64, %s66
    %p70 = scmp.eq.s32.totalorder %s9, 0
    %p71 = por %p69, %p70
    %p72 = scmp.ne.s32.totalorder %s64, %s66
    %p73 = scmp.eq.s32.totalorder %s14, 1
    %p74 = por %p72, %p73
    %p75 = scmp.ne.s32.totalorder %s66, %s67
    %p76 = scmp.eq.s32.totalorder %s14, 0
    %p77 = por %p75, %p76
    %p78 = scmp.ne.s32.totalorder %s66, %s67
    %p79 = scmp.eq.s32.totalorder %s15, 1
    %p80 = por %p78, %p79
    %p82 = scmp.ne.s32.totalorder %s67, %s81
    %p83 = scmp.eq.s32.totalorder %s15, 0
    %p84 = por %p82, %p83
    %s85 = ssub.s32 %s9, %s16
    %p86 = scmp.eq.s32.totalorder %s85, 0
    %s88 = sadd.s32 %s87, 1
    %s89 = scalar_select %p86, %s87, %s88
    %p92 = pneg %p86
    %p93 = scmp.eq.s32.totalorder %s9, 1
    %p94 = por %p92, %p93
    %p95 = scmp.ne.s32.totalorder %s87, %s90
    %p96 = scmp.eq.s32.totalorder %s9, 0
    %p97 = por %p95, %p96
    %p98 = scmp.ne.s32.totalorder %s87, %s90
    %p99 = scmp.eq.s32.totalorder %s14, 1
    %p100 = por %p98, %p99
    %p101 = scmp.ne.s32.totalorder %s90, %s91
    %p102 = scmp.eq.s32.totalorder %s14, 0
    %p103 = por %p101, %p102
    %p104 = scmp.ne.s32.totalorder %s90, %s91
    %p105 = scmp.eq.s32.totalorder %s15, 1
    %p106 = por %p104, %p105
    %p108 = scmp.ne.s32.totalorder %s91, %s107
    %p109 = scmp.eq.s32.totalorder %s15, 0
    %p110 = por %p108, %p109
    %p111 = scmp.le.s32.totalorder 1, %s9
    %p112 = scmp.lt.s32.totalorder %s9, 3
    %p113 = pnand %p111, %p112
    %p114 = pneg %p113
    // Predicated region
    $region9: #{double_conv.8} parent=5 // pred_check
      _
    $region10: #{double_conv.8} parent=5 // pred_check_branch
      %116 = sbr.rel (%p113) target = $region12
    $region11: #{double_conv.8} parent=5 // pred_region
      %s117 = ssub.s32 %s9, 1
      // Predicated region
      $region13: #{double_conv.8} parent=11 // pred_check
        %p118 = pneg %p56
      $region14: #{double_conv.8} parent=11 // pred_check_branch
        %120 = sbr.rel (%p118) target = $region16
      $region15: #{double_conv.8} parent=11 // pred_region
        _
      $region16: #{double_conv.8} parent=11 // pred_fallthru
        _
      // Predicated region
      $region17: #{double_conv.8} parent=11 // pred_check
        %p121 = pneg %p77
      $region18: #{double_conv.8} parent=11 // pred_check_branch
        %123 = sbr.rel (%p121) target = $region20
      $region19: #{double_conv.8} parent=11 // pred_region
        _
      $region20: #{double_conv.8} parent=11 // pred_fallthru
        _
    $region12: #{double_conv.8} parent=5 // pred_fallthru
      _
    %p124 = scmp.lt.s32.totalorder %s9, 2
    // Predicated region
    $region21: #{double_conv.8} parent=5 // pred_check
      %p125 = pneg %p124
    $region22: #{double_conv.8} parent=5 // pred_check_branch
      %127 = sbr.rel (%p125) target = $region24
    $region23: #{double_conv.8} parent=5 // pred_region
      // Predicated region
      $region25: #{double_conv.8} parent=23 // pred_check
        %p128 = pneg %p29
      $region26: #{double_conv.8} parent=23 // pred_check_branch
        %130 = sbr.rel (%p128) target = $region28
      $region27: #{double_conv.8} parent=23 // pred_region
        %s131 = smul.u32 32, %s9
        %p132 = scmp.lt.s32.totalorder %s131, 63
        %s133 = scalar_select %p132, %s131, 63
        %s134 = smul.addr %s133, 8
        %s135 = scalar_lea.vmem %s0, %s134
        %s136 = smul.u32 32, %s9
      $region28: #{double_conv.8} parent=23 // pred_fallthru
        _
    $region24: #{double_conv.8} parent=5 // pred_fallthru
      _
    %p137 = scmp.le.s32.totalorder 1, %s9
    %p138 = scmp.lt.s32.totalorder %s9, 3
    %p139 = pnand %p137, %p138
    %p140 = pneg %p139
    // Predicated region
    $region29: #{double_conv.8} parent=5 // pred_check
      _
    $region30: #{double_conv.8} parent=5 // pred_check_branch
      %142 = sbr.rel (%p139) target = $region32
    $region31: #{double_conv.8} parent=5 // pred_region
      %s143 = ssub.s32 %s9, 1
      %s144 = smul.u32 32, %s14
      %p145 = scmp.lt.s32.totalorder %s144, 63
      %s146 = scalar_select %p145, %s144, 63
      %s147 = smul.addr %s146, 8
      %s148 = scalar_lea.vmem %s0, %s147
      %p149 = pneg %p35
      %p150 = pneg %p32
      %p151 = pneg %p56
      %p152 = pneg %p53
      %p153 = pneg %p77
      %p154 = pneg %p74
      %p155 = pneg %p103
      %p156 = pneg %p100
      %s157 = smul.u32 32, %s14
      %p158 = scmp.lt.s32.totalorder %s157, 63
      %s159 = scalar_select %p158, %s157, 63
      %s160 = smul.addr %s159, 4
      %s161 = scalar_lea.vmem %s3, %s160
      %s162 = smul.u32 32, %s14
      %p163 = scmp.lt.s32.totalorder %s162, 63
      %s164 = scalar_select %p163, %s162, 63
      %s165 = smul.addr %s164, 8
      %s166 = scalar_lea.vmem %s0, %s165
      %s167 = smul.u32 32, %s14
      %s168 = smul.u32 32, %s14
      %p169 = scmp.lt.s32.totalorder %s168, 63
      %s170 = scalar_select %p169, %s168, 63
      %s171 = smul.addr %s170, 4
      %s172 = scalar_lea.vmem %s3, %s171
      %s173 = smul.u32 32, %s14
      %v174 = vld [vmem:[%s166] sm:$0xff]
      %v175 = vld [vmem:[%s166 + $0x8] sm:$0xff]
      %v176 = vld [vmem:[%s166 + $0x10] sm:$0xff]
      %v177 = vld [vmem:[%s166 + $0x18] sm:$0xff]
      %v178 = vld [vmem:[%s166 + $0x20] sm:$0xff]
      %v179 = vld [vmem:[%s166 + $0x28] sm:$0xff]
      %v180 = vld [vmem:[%s166 + $0x30] sm:$0xff]
      %v181 = vld [vmem:[%s166 + $0x38] sm:$0xff]
      %v182 = vld [vmem:[%s166 + $0x40] sm:$0xff]
      %v183 = vld [vmem:[%s166 + $0x48] sm:$0xff]
      %v184 = vld [vmem:[%s166 + $0x50] sm:$0xff]
      %v185 = vld [vmem:[%s166 + $0x58] sm:$0xff]
      %v186 = vld [vmem:[%s166 + $0x60] sm:$0xff]
      %v187 = vld [vmem:[%s166 + $0x68] sm:$0xff]
      %v188 = vld [vmem:[%s166 + $0x70] sm:$0xff]
      %v189 = vld [vmem:[%s166 + $0x78] sm:$0xff]
      %v190 = vld [vmem:[%s166 + $0x80] sm:$0xff]
      %v191 = vld [vmem:[%s166 + $0x88] sm:$0xff]
      %v192 = vld [vmem:[%s166 + $0x90] sm:$0xff]
      %v193 = vld [vmem:[%s166 + $0x98] sm:$0xff]
      %v194 = vld [vmem:[%s166 + $0xa0] sm:$0xff]
      %v195 = vld [vmem:[%s166 + $0xa8] sm:$0xff]
      %v196 = vld [vmem:[%s166 + $0xb0] sm:$0xff]
      %v197 = vld [vmem:[%s166 + $0xb8] sm:$0xff]
      %v198 = vld [vmem:[%s166 + $0xc0] sm:$0xff]
      %v199 = vld [vmem:[%s166 + $0xc8] sm:$0xff]
      %v200 = vld [vmem:[%s166 + $0xd0] sm:$0xff]
      %v201 = vld [vmem:[%s166 + $0xd8] sm:$0xff]
      %v202 = vld [vmem:[%s166 + $0xe0] sm:$0xff]
      %v203 = vld [vmem:[%s166 + $0xe8] sm:$0xff]
      %v204 = vld [vmem:[%s166 + $0xf0] sm:$0xff]
      %v205 = vld [vmem:[%s166 + $0xf8] sm:$0xff]
      %v206 = vld [vmem:[%s1] sm:$0x1]
      %v208 = vperm.slane %v206, 0
      %v210 = vmul.f32 %v174, %v208
      %v211 = vmul.f32 %v175, %v208
      %v212 = vmul.f32 %v176, %v208
      %v213 = vmul.f32 %v177, %v208
      %v214 = vmul.f32 %v178, %v208
      %v215 = vmul.f32 %v179, %v208
      %v216 = vmul.f32 %v180, %v208
      %v217 = vmul.f32 %v181, %v208
      %v218 = vmul.f32 %v182, %v208
      %v219 = vmul.f32 %v183, %v208
      %v220 = vmul.f32 %v184, %v208
      %v221 = vmul.f32 %v185, %v208
      %v222 = vmul.f32 %v186, %v208
      %v223 = vmul.f32 %v187, %v208
      %v224 = vmul.f32 %v188, %v208
      %v225 = vmul.f32 %v189, %v208
      %v226 = vmul.f32 %v190, %v208
      %v227 = vmul.f32 %v191, %v208
      %v228 = vmul.f32 %v192, %v208
      %v229 = vmul.f32 %v193, %v208
      %v230 = vmul.f32 %v194, %v208
      %v231 = vmul.f32 %v195, %v208
      %v232 = vmul.f32 %v196, %v208
      %v233 = vmul.f32 %v197, %v208
      %v234 = vmul.f32 %v198, %v208
      %v235 = vmul.f32 %v199, %v208
      %v236 = vmul.f32 %v200, %v208
      %v237 = vmul.f32 %v201, %v208
      %v238 = vmul.f32 %v202, %v208
      %v239 = vmul.f32 %v203, %v208
      %v240 = vmul.f32 %v204, %v208
      %v241 = vmul.f32 %v205, %v208
      %v242 = vld [vmem:[%s2] sm:$0x1]
      %v244 = vperm.slane %v242, 0
      %v246 = vadd.f32 %v210, %v244
      %v247 = vadd.f32 %v211, %v244
      %v248 = vadd.f32 %v212, %v244
      %v249 = vadd.f32 %v213, %v244
      %v250 = vadd.f32 %v214, %v244
      %v251 = vadd.f32 %v215, %v244
      %v252 = vadd.f32 %v216, %v244
      %v253 = vadd.f32 %v217, %v244
      %v254 = vadd.f32 %v218, %v244
      %v255 = vadd.f32 %v219, %v244
      %v256 = vadd.f32 %v220, %v244
      %v257 = vadd.f32 %v221, %v244
      %v258 = vadd.f32 %v222, %v244
      %v259 = vadd.f32 %v223, %v244
      %v260 = vadd.f32 %v224, %v244
      %v261 = vadd.f32 %v225, %v244
      %v262 = vadd.f32 %v226, %v244
      %v263 = vadd.f32 %v227, %v244
      %v264 = vadd.f32 %v228, %v244
      %v265 = vadd.f32 %v229, %v244
      %v266 = vadd.f32 %v230, %v244
      %v267 = vadd.f32 %v231, %v244
      %v268 = vadd.f32 %v232, %v244
      %v269 = vadd.f32 %v233, %v244
      %v270 = vadd.f32 %v234, %v244
      %v271 = vadd.f32 %v235, %v244
      %v272 = vadd.f32 %v236, %v244
      %v273 = vadd.f32 %v237, %v244
      %v274 = vadd.f32 %v238, %v244
      %v275 = vadd.f32 %v239, %v244
      %v276 = vadd.f32 %v240, %v244
      %v277 = vadd.f32 %v241, %v244
      %v278 = vmax.f32 %v246, 0.0
      %v279 = vmax.f32 %v247, 0.0
      %v280 = vmax.f32 %v248, 0.0
      %v281 = vmax.f32 %v249, 0.0
      %v282 = vmax.f32 %v250, 0.0
      %v283 = vmax.f32 %v251, 0.0
      %v284 = vmax.f32 %v252, 0.0
      %v285 = vmax.f32 %v253, 0.0
      %v286 = vmax.f32 %v254, 0.0
      %v287 = vmax.f32 %v255, 0.0
      %v288 = vmax.f32 %v256, 0.0
      %v289 = vmax.f32 %v257, 0.0
      %v290 = vmax.f32 %v258, 0.0
      %v291 = vmax.f32 %v259, 0.0
      %v292 = vmax.f32 %v260, 0.0
      %v293 = vmax.f32 %v261, 0.0
      %v294 = vmax.f32 %v262, 0.0
      %v295 = vmax.f32 %v263, 0.0
      %v296 = vmax.f32 %v264, 0.0
      %v297 = vmax.f32 %v265, 0.0
      %v298 = vmax.f32 %v266, 0.0
      %v299 = vmax.f32 %v267, 0.0
      %v300 = vmax.f32 %v268, 0.0
      %v301 = vmax.f32 %v269, 0.0
      %v302 = vmax.f32 %v270, 0.0
      %v303 = vmax.f32 %v271, 0.0
      %v304 = vmax.f32 %v272, 0.0
      %v305 = vmax.f32 %v273, 0.0
      %v306 = vmax.f32 %v274, 0.0
      %v307 = vmax.f32 %v275, 0.0
      %v308 = vmax.f32 %v276, 0.0
      %v309 = vmax.f32 %v277, 0.0
      %v310 = vpack.c.bf16 %v278, %v278
      %v311 = vpack.c.bf16 %v279, %v279
      %v312 = vpack.c.bf16 %v280, %v280
      %v313 = vpack.c.bf16 %v281, %v281
      %v314 = vpack.c.bf16 %v282, %v282
      %v315 = vpack.c.bf16 %v283, %v283
      %v316 = vpack.c.bf16 %v284, %v284
      %v317 = vpack.c.bf16 %v285, %v285
      %v318 = vpack.c.bf16 %v286, %v286
      %v319 = vpack.c.bf16 %v287, %v287
      %v320 = vpack.c.bf16 %v288, %v288
      %v321 = vpack.c.bf16 %v289, %v289
      %v322 = vpack.c.bf16 %v290, %v290
      %v323 = vpack.c.bf16 %v291, %v291
      %v324 = vpack.c.bf16 %v292, %v292
      %v325 = vpack.c.bf16 %v293, %v293
      %v326 = vpack.c.bf16 %v294, %v294
      %v327 = vpack.c.bf16 %v295, %v295
      %v328 = vpack.c.bf16 %v296, %v296
      %v329 = vpack.c.bf16 %v297, %v297
      %v330 = vpack.c.bf16 %v298, %v298
      %v331 = vpack.c.bf16 %v299, %v299
      %v332 = vpack.c.bf16 %v300, %v300
      %v333 = vpack.c.bf16 %v301, %v301
      %v334 = vpack.c.bf16 %v302, %v302
      %v335 = vpack.c.bf16 %v303, %v303
      %v336 = vpack.c.bf16 %v304, %v304
      %v337 = vpack.c.bf16 %v305, %v305
      %v338 = vpack.c.bf16 %v306, %v306
      %v339 = vpack.c.bf16 %v307, %v307
      %v340 = vpack.c.bf16 %v308, %v308
      %v341 = vpack.c.bf16 %v309, %v309
      %vm342 = vcmask 519168
      %343 = vst.msk [vmem:[%s172] sm:$0xf] %vm342, %v310
      %344 = vst.msk [vmem:[%s172 + $0x4] sm:$0xf] %vm342, %v311
      %345 = vst.msk [vmem:[%s172 + $0x8] sm:$0xf] %vm342, %v312
      %346 = vst.msk [vmem:[%s172 + $0xc] sm:$0xf] %vm342, %v313
      %347 = vst.msk [vmem:[%s172 + $0x10] sm:$0xf] %vm342, %v314
      %348 = vst.msk [vmem:[%s172 + $0x14] sm:$0xf] %vm342, %v315
      %349 = vst.msk [vmem:[%s172 + $0x18] sm:$0xf] %vm342, %v316
      %350 = vst.msk [vmem:[%s172 + $0x1c] sm:$0xf] %vm342, %v317
      %351 = vst.msk [vmem:[%s172 + $0x20] sm:$0xf] %vm342, %v318
      %352 = vst.msk [vmem:[%s172 + $0x24] sm:$0xf] %vm342, %v319
      %353 = vst.msk [vmem:[%s172 + $0x28] sm:$0xf] %vm342, %v320
      %354 = vst.msk [vmem:[%s172 + $0x2c] sm:$0xf] %vm342, %v321
      %355 = vst.msk [vmem:[%s172 + $0x30] sm:$0xf] %vm342, %v322
      %356 = vst.msk [vmem:[%s172 + $0x34] sm:$0xf] %vm342, %v323
      %357 = vst.msk [vmem:[%s172 + $0x38] sm:$0xf] %vm342, %v324
      %358 = vst.msk [vmem:[%s172 + $0x3c] sm:$0xf] %vm342, %v325
      %359 = vst.msk [vmem:[%s172 + $0x40] sm:$0xf] %vm342, %v326
      %360 = vst.msk [vmem:[%s172 + $0x44] sm:$0xf] %vm342, %v327
      %361 = vst.msk [vmem:[%s172 + $0x48] sm:$0xf] %vm342, %v328
      %362 = vst.msk [vmem:[%s172 + $0x4c] sm:$0xf] %vm342, %v329
      %363 = vst.msk [vmem:[%s172 + $0x50] sm:$0xf] %vm342, %v330
      %364 = vst.msk [vmem:[%s172 + $0x54] sm:$0xf] %vm342, %v331
      %365 = vst.msk [vmem:[%s172 + $0x58] sm:$0xf] %vm342, %v332
      %366 = vst.msk [vmem:[%s172 + $0x5c] sm:$0xf] %vm342, %v333
      %367 = vst.msk [vmem:[%s172 + $0x60] sm:$0xf] %vm342, %v334
      %368 = vst.msk [vmem:[%s172 + $0x64] sm:$0xf] %vm342, %v335
      %369 = vst.msk [vmem:[%s172 + $0x68] sm:$0xf] %vm342, %v336
      %370 = vst.msk [vmem:[%s172 + $0x6c] sm:$0xf] %vm342, %v337
      %371 = vst.msk [vmem:[%s172 + $0x70] sm:$0xf] %vm342, %v338
      %372 = vst.msk [vmem:[%s172 + $0x74] sm:$0xf] %vm342, %v339
      %373 = vst.msk [vmem:[%s172 + $0x78] sm:$0xf] %vm342, %v340
      %374 = vst.msk [vmem:[%s172 + $0x7c] sm:$0xf] %vm342, %v341
      %s375 = smul.u32 32, %s14
      %p376 = scmp.lt.s32.totalorder %s375, 63
      %s377 = scalar_select %p376, %s375, 63
      %s378 = smul.addr %s377, 4
      %s379 = scalar_lea.vmem %s3, %s378
      // Predicated region
      $region33: #{double_conv.8} parent=31 // pred_check
        %p380 = pneg %p100
      $region34: #{double_conv.8} parent=31 // pred_check_branch
        %382 = sbr.rel (%p380) target = $region36
      $region35: #{double_conv.8} parent=31 // pred_region
        %s383 = smul.u32 32, %s14
      $region36: #{double_conv.8} parent=31 // pred_fallthru
        _
    $region32: #{double_conv.8} parent=5 // pred_fallthru
      _
    %p384 = scmp.le.s32.totalorder 2, %s9
    // Predicated region
    $region37: #{double_conv.8} parent=5 // pred_check
      %p385 = pneg %p384
    $region38: #{double_conv.8} parent=5 // pred_check_branch
      %387 = sbr.rel (%p385) target = $region40
    $region39: #{double_conv.8} parent=5 // pred_region
      %s388 = ssub.s32 %s9, 2
      // Predicated region
      $region41: #{double_conv.8} parent=39 // pred_check
        %p389 = pneg %p106
      $region42: #{double_conv.8} parent=39 // pred_check_branch
        %391 = sbr.rel (%p389) target = $region44
      $region43: #{double_conv.8} parent=39 // pred_region
        %s392 = smul.u32 32, %s15
        %p393 = scmp.lt.s32.totalorder %s392, 63
        %s394 = scalar_select %p393, %s392, 63
        %s395 = smul.addr %s394, 4
        %s396 = scalar_lea.vmem %s3, %s395
      $region44: #{double_conv.8} parent=39 // pred_fallthru
        _
    $region40: #{double_conv.8} parent=5 // pred_fallthru
      _
  $region6: #{double_conv.8} parent=0 // loop_footer
    %s13 = sadd.s32 1, %s9
  $region7: #{double_conv.8} parent=0 // loop_footer_branch
    %8 = sbr.rel target = $region3
  $region8: #{double_conv.8} parent=0 // loop_exit
    _

// kernel: double_conv.6
$region0: #{double_conv.6}
  #allocation0 [shape = 'u32[]', space=smem, size = 0x4, offset = 0x4, fixed_abs, tag = 'smem constant byte address 0x4 - core index']
  #allocation1 [shape = 'u32[72,128]{1,0:T(1,128)}', space=vmem, size = 0x9000, scoped, tag = 'internal scratch']
  %s0 = inlined_call_operand.vmem [shape: f32[2,328,8], index: 0, kind: input, shape index: {}]
  %s1 = inlined_call_operand.vmem [shape: bf16[9,8,64], index: 1, kind: input, shape index: {}]
  %s2 = inlined_call_operand.vmem [shape: f32[2,288,64], index: 2, kind: output, shape index: {}]
  %s3 = sld [smem:[#allocation0]]
  $region41: #{double_conv.6} parent=0
    _
  %s5 = ssub.s32 1, %s3
  %s6 = scalar_select 0, %s5, %s3
  loop: start=0, step=1, limit=4
  $region2: #{double_conv.6} parent=0 // loop_pre_header
    _
  $region3: #{double_conv.6} parent=0 // loop_header
    %s8 = sphi 0, %s12
    %p9 = scmp.ge.s32.totalorder %s8, 4
    %s15 = sphi 0, %s27
    %s16 = sphi 0, %s23
    %s17 = sphi 0, %s15
    %s18 = sphi 0, %s16
    %s19 = sphi 0, %s17
    %s20 = sphi 0, %s18
    %s30 = sphi 0, %s32
    %s33 = sphi 0, %s30
    %s34 = sphi 0, %s33
    %s50 = sphi 0, %s34
    %s56 = sphi 0, %s58
    %s59 = sphi 0, %s56
    %s60 = sphi 0, %s59
    %s76 = sphi 0, %s60
    %s84 = sphi 0, %s86
    %s87 = sphi 0, %s84
    %s88 = sphi 0, %s87
    %s104 = sphi 0, %s88
  $region4: #{double_conv.6} parent=0 // loop_header_branch
    %11 = sbr.rel (%p9) target = $region8
  $region5: #{double_conv.6} parent=0 // loop_body
    %s13 = ssub.s32 %s8, 1
    %s14 = ssub.s32 %s8, 2
    %s21 = sadd.s32 1, %s16
    %p22 = scmp.ge.s32.totalorder %s21, 1
    %s23 = scalar_select %p22, 0, %s21
    %s24 = sadd.s32 1, %s15
    %s25 = scalar_select %p22, %s24, %s15
    %p26 = scmp.ge.s32.totalorder %s25, 2
    %s27 = scalar_select %p26, 0, %s25
    %s28 = ssub.s32 %s15, %s27
    %p29 = scmp.eq.s32.totalorder %s28, 0
    %s31 = sadd.s32 %s30, 1
    %s32 = scalar_select %p29, %s30, %s31
    %p35 = pneg %p29
    %p36 = scmp.eq.s32.totalorder %s8, 1
    %p37 = por %p35, %p36
    %p38 = scmp.ne.s32.totalorder %s30, %s33
    %p39 = scmp.eq.s32.totalorder %s8, 0
    %p40 = por %p38, %p39
    %p41 = scmp.ne.s32.totalorder %s30, %s33
    %p42 = scmp.eq.s32.totalorder %s13, 1
    %p43 = por %p41, %p42
    %p44 = scmp.ne.s32.totalorder %s33, %s34
    %p45 = scmp.eq.s32.totalorder %s13, 0
    %p46 = por %p44, %p45
    %p47 = scmp.ne.s32.totalorder %s33, %s34
    %p48 = scmp.eq.s32.totalorder %s14, 1
    %p49 = por %p47, %p48
    %p51 = scmp.ne.s32.totalorder %s34, %s50
    %p52 = scmp.eq.s32.totalorder %s14, 0
    %p53 = por %p51, %p52
    %s54 = ssub.s32 %s16, %s23
    %p55 = scmp.eq.s32.totalorder %s54, 0
    %s57 = sadd.s32 %s56, 1
    %s58 = scalar_select %p55, %s56, %s57
    %p61 = pneg %p55
    %p62 = scmp.eq.s32.totalorder %s8, 1
    %p63 = por %p61, %p62
    %p64 = scmp.ne.s32.totalorder %s56, %s59
    %p65 = scmp.eq.s32.totalorder %s8, 0
    %p66 = por %p64, %p65
    %p67 = scmp.ne.s32.totalorder %s56, %s59
    %p68 = scmp.eq.s32.totalorder %s13, 1
    %p69 = por %p67, %p68
    %p70 = scmp.ne.s32.totalorder %s59, %s60
    %p71 = scmp.eq.s32.totalorder %s13, 0
    %p72 = por %p70, %p71
    %p73 = scmp.ne.s32.totalorder %s59, %s60
    %p74 = scmp.eq.s32.totalorder %s14, 1
    %p75 = por %p73, %p74
    %p77 = scmp.ne.s32.totalorder %s60, %s76
    %p78 = scmp.eq.s32.totalorder %s14, 0
    %p79 = por %p77, %p78
    %s80 = ssub.s32 %s15, %s27
    %s81 = ssub.s32 %s16, %s23
    %s82 = sor.u32 %s80, %s81
    %p83 = scmp.eq.s32.totalorder %s82, 0
    %s85 = sadd.s32 %s84, 1
    %s86 = scalar_select %p83, %s84, %s85
    %p89 = pneg %p83
    %p90 = scmp.eq.s32.totalorder %s8, 1
    %p91 = por %p89, %p90
    %p92 = scmp.ne.s32.totalorder %s84, %s87
    %p93 = scmp.eq.s32.totalorder %s8, 0
    %p94 = por %p92, %p93
    %p95 = scmp.ne.s32.totalorder %s84, %s87
    %p96 = scmp.eq.s32.totalorder %s13, 1
    %p97 = por %p95, %p96
    %p98 = scmp.ne.s32.totalorder %s87, %s88
    %p99 = scmp.eq.s32.totalorder %s13, 0
    %p100 = por %p98, %p99
    %p101 = scmp.ne.s32.totalorder %s87, %s88
    %p102 = scmp.eq.s32.totalorder %s14, 1
    %p103 = por %p101, %p102
    %p105 = scmp.ne.s32.totalorder %s88, %s104
    %p106 = scmp.eq.s32.totalorder %s14, 0
    %p107 = por %p105, %p106
    %p108 = scmp.le.s32.totalorder 1, %s8
    %p109 = scmp.lt.s32.totalorder %s8, 3
    %p110 = pnand %p108, %p109
    %p111 = pneg %p110
    // Predicated region
    $region9: #{double_conv.6} parent=5 // pred_check
      _
    $region10: #{double_conv.6} parent=5 // pred_check_branch
      %113 = sbr.rel (%p110) target = $region12
    $region11: #{double_conv.6} parent=5 // pred_region
      %s114 = ssub.s32 %s8, 1
      // Predicated region
      $region13: #{double_conv.6} parent=11 // pred_check
        %p115 = pneg %p72
      $region14: #{double_conv.6} parent=11 // pred_check_branch
        %117 = sbr.rel (%p115) target = $region16
      $region15: #{double_conv.6} parent=11 // pred_region
        %p118 = scmp.lt.s32.totalorder %s18, 0
        %s119 = scalar_select %p118, %s18, 0
        %s120 = smul.addr %s119, 4
        %s121 = scalar_lea.vmem %s1, %s120
      $region16: #{double_conv.6} parent=11 // pred_fallthru
        _
    $region12: #{double_conv.6} parent=5 // pred_fallthru
      _
    %p122 = scmp.lt.s32.totalorder %s8, 2
    // Predicated region
    $region17: #{double_conv.6} parent=5 // pred_check
      %p123 = pneg %p122
    $region18: #{double_conv.6} parent=5 // pred_check_branch
      %125 = sbr.rel (%p123) target = $region20
    $region19: #{double_conv.6} parent=5 // pred_region
      // Predicated region
      $region21: #{double_conv.6} parent=19 // pred_check
        %p126 = pneg %p40
      $region22: #{double_conv.6} parent=19 // pred_check_branch
        %128 = sbr.rel (%p126) target = $region24
      $region23: #{double_conv.6} parent=19 // pred_region
        %p129 = scmp.lt.s32.totalorder %s15, 1
        %s130 = scalar_select %p129, %s15, 1
        %s131 = smul.addr %s130, 41
        %s132 = smul.addr %s131, 8
        %s133 = scalar_lea.vmem %s0, %s132
      $region24: #{double_conv.6} parent=19 // pred_fallthru
        _
    $region20: #{double_conv.6} parent=5 // pred_fallthru
      _
    %p134 = scmp.le.s32.totalorder 1, %s8
    %p135 = scmp.lt.s32.totalorder %s8, 3
    %p136 = pnand %p134, %p135
    %p137 = pneg %p136
    // Predicated region
    $region25: #{double_conv.6} parent=5 // pred_check
      _
    $region26: #{double_conv.6} parent=5 // pred_check_branch
      %139 = sbr.rel (%p136) target = $region28
    $region27: #{double_conv.6} parent=5 // pred_region
      %s140 = ssub.s32 %s8, 1
      %p141 = scmp.lt.s32.totalorder %s17, 1
      %s142 = scalar_select %p141, %s17, 1
      %s143 = smul.addr %s142, 41
      %s144 = smul.addr %s143, 8
      %s145 = scalar_lea.vmem %s0, %s144
      %p146 = pneg %p46
      %p147 = pneg %p43
      %p148 = scmp.lt.s32.totalorder %s18, 0
      %s149 = scalar_select %p148, %s18, 0
      %s150 = smul.addr %s149, 4
      %s151 = scalar_lea.vmem %s1, %s150
      %p152 = pneg %p72
      %p153 = pneg %p69
      %p154 = pneg %p100
      %p155 = pneg %p97
      %p156 = scmp.lt.s32.totalorder %s17, 1
      %s157 = scalar_select %p156, %s17, 1
      %p158 = scmp.lt.s32.totalorder %s18, 0
      %s159 = scalar_select %p158, %s18, 0
      %s160 = smul.addr %s157, 36
      %s161 = sadd.s32 %s159, %s160
      %s162 = smul.addr %s161, 8
      %s163 = scalar_lea.vmem %s2, %s162
      %p164 = scmp.lt.s32.totalorder %s17, 1
      %s165 = scalar_select %p164, %s17, 1
      %s166 = smul.addr %s165, 41
      %s167 = smul.addr %s166, 8
      %s168 = scalar_lea.vmem %s0, %s167
      %p169 = scmp.lt.s32.totalorder %s18, 0
      %s170 = scalar_select %p169, %s18, 0
      %s171 = smul.addr %s170, 4
      %s172 = scalar_lea.vmem %s1, %s171
      %p173 = scmp.lt.s32.totalorder %s17, 1
      %s174 = scalar_select %p173, %s17, 1
      %p175 = scmp.lt.s32.totalorder %s18, 0
      %s176 = scalar_select %p175, %s18, 0
      %s177 = smul.addr %s174, 36
      %s178 = sadd.s32 %s176, %s177
      %s179 = smul.addr %s178, 8
      %s180 = scalar_lea.vmem %s2, %s179
      %v182 = vld [vmem:[%s168] sm:$0xff]
      %v183 = vld [vmem:[%s168 + $0x8] sm:$0xff]
      %v184 = vld [vmem:[%s168 + $0x10] sm:$0xff]
      %v185 = vld [vmem:[%s168 + $0x18] sm:$0xff]
      %v186 = vld [vmem:[%s168 + $0x20] sm:$0xff]
      %v187 = vld [vmem:[%s168 + $0x28] sm:$0xff]
      %v188 = vld [vmem:[%s168 + $0x30] sm:$0xff]
      %v189 = vld [vmem:[%s168 + $0x38] sm:$0xff]
      %v190 = vld [vmem:[%s168 + $0x40] sm:$0xff]
      %v191 = vld [vmem:[%s168 + $0x48] sm:$0xff]
      %v192 = vld [vmem:[%s168 + $0x50] sm:$0xff]
      %v193 = vld [vmem:[%s168 + $0x58] sm:$0xff]
      %v194 = vld [vmem:[%s168 + $0x60] sm:$0xff]
      %v195 = vld [vmem:[%s168 + $0x68] sm:$0xff]
      %v196 = vld [vmem:[%s168 + $0x70] sm:$0xff]
      %v197 = vld [vmem:[%s168 + $0x78] sm:$0xff]
      %v198 = vld [vmem:[%s168 + $0x80] sm:$0xff]
      %v199 = vld [vmem:[%s168 + $0x88] sm:$0xff]
      %v200 = vld [vmem:[%s168 + $0x90] sm:$0xff]
      %v201 = vld [vmem:[%s168 + $0x98] sm:$0xff]
      %v202 = vld [vmem:[%s168 + $0xa0] sm:$0xff]
      %v203 = vld [vmem:[%s168 + $0xa8] sm:$0xff]
      %v204 = vld [vmem:[%s168 + $0xb0] sm:$0xff]
      %v205 = vld [vmem:[%s168 + $0xb8] sm:$0xff]
      %v206 = vld [vmem:[%s168 + $0xc0] sm:$0xff]
      %v207 = vld [vmem:[%s168 + $0xc8] sm:$0xff]
      %v208 = vld [vmem:[%s168 + $0xd0] sm:$0xff]
      %v209 = vld [vmem:[%s168 + $0xd8] sm:$0xff]
      %v210 = vld [vmem:[%s168 + $0xe0] sm:$0xff]
      %v211 = vld [vmem:[%s168 + $0xe8] sm:$0xff]
      %v212 = vld [vmem:[%s168 + $0xf0] sm:$0xff]
      %v213 = vld [vmem:[%s168 + $0xf8] sm:$0xff]
      %v214 = vld [vmem:[%s168 + $0x100] sm:$0xff]
      %v215 = vld [vmem:[%s168 + $0x108] sm:$0xff]
      %v216 = vld [vmem:[%s168 + $0x110] sm:$0xff]
      %v217 = vld [vmem:[%s168 + $0x118] sm:$0xff]
      %v218 = vpack.c.bf16 %v183, %v182
      %v219 = vpack.c.bf16 %v185, %v184
      %v220 = vpack.c.bf16 %v187, %v186
      %v221 = vpack.c.bf16 %v189, %v188
      %v222 = vpack.c.bf16 %v191, %v190
      %v223 = vpack.c.bf16 %v193, %v192
      %v224 = vpack.c.bf16 %v195, %v194
      %v225 = vpack.c.bf16 %v197, %v196
      %v226 = vpack.c.bf16 %v199, %v198
      %v227 = vpack.c.bf16 %v201, %v200
      %v228 = vpack.c.bf16 %v203, %v202
      %v229 = vpack.c.bf16 %v205, %v204
      %v230 = vpack.c.bf16 %v207, %v206
      %v231 = vpack.c.bf16 %v209, %v208
      %v232 = vpack.c.bf16 %v211, %v210
      %v233 = vpack.c.bf16 %v213, %v212
      %v234 = vpack.c.bf16 %v215, %v214
      %v235 = vpack.c.bf16 %v217, %v216
      %v236 = vld [vmem:[%s172] sm:$0xf]
      %v237 = vld [vmem:[%s168 + $0x1] sm:$0xff]
      %v238 = vld [vmem:[%s168 + $0x9] sm:$0xff]
      %v239 = vld [vmem:[%s168 + $0x11] sm:$0xff]
      %v240 = vld [vmem:[%s168 + $0x19] sm:$0xff]
      %v241 = vld [vmem:[%s168 + $0x21] sm:$0xff]
      %v242 = vld [vmem:[%s168 + $0x29] sm:$0xff]
      %v243 = vld [vmem:[%s168 + $0x31] sm:$0xff]
      %v244 = vld [vmem:[%s168 + $0x39] sm:$0xff]
      %v245 = vld [vmem:[%s168 + $0x41] sm:$0xff]
      %v246 = vld [vmem:[%s168 + $0x49] sm:$0xff]
      %v247 = vld [vmem:[%s168 + $0x51] sm:$0xff]
      %v248 = vld [vmem:[%s168 + $0x59] sm:$0xff]
      %v249 = vld [vmem:[%s168 + $0x61] sm:$0xff]
      %v250 = vld [vmem:[%s168 + $0x69] sm:$0xff]
      %v251 = vld [vmem:[%s168 + $0x71] sm:$0xff]
      %v252 = vld [vmem:[%s168 + $0x79] sm:$0xff]
      %v253 = vld [vmem:[%s168 + $0x81] sm:$0xff]
      %v254 = vld [vmem:[%s168 + $0x89] sm:$0xff]
      %v255 = vld [vmem:[%s168 + $0x91] sm:$0xff]
      %v256 = vld [vmem:[%s168 + $0x99] sm:$0xff]
      %v257 = vld [vmem:[%s168 + $0xa1] sm:$0xff]
      %v258 = vld [vmem:[%s168 + $0xa9] sm:$0xff]
      %v259 = vld [vmem:[%s168 + $0xb1] sm:$0xff]
      %v260 = vld [vmem:[%s168 + $0xb9] sm:$0xff]
      %v261 = vld [vmem:[%s168 + $0xc1] sm:$0xff]
      %v262 = vld [vmem:[%s168 + $0xc9] sm:$0xff]
      %v263 = vld [vmem:[%s168 + $0xd1] sm:$0xff]
      %v264 = vld [vmem:[%s168 + $0xd9] sm:$0xff]
      %v265 = vld [vmem:[%s168 + $0xe1] sm:$0xff]
      %v266 = vld [vmem:[%s168 + $0xe9] sm:$0xff]
      %v267 = vld [vmem:[%s168 + $0xf1] sm:$0xff]
      %v268 = vld [vmem:[%s168 + $0xf9] sm:$0xff]
      %v269 = vld [vmem:[%s168 + $0x101] sm:$0xff]
      %v270 = vld [vmem:[%s168 + $0x109] sm:$0xff]
      %v271 = vld [vmem:[%s168 + $0x111] sm:$0xff]
      %v272 = vld [vmem:[%s168 + $0x119] sm:$0xff]
      %v273 = vpack.c.bf16 %v238, %v237
      %v274 = vpack.c.bf16 %v240, %v239
      %v275 = vpack.c.bf16 %v242, %v241
      %v276 = vpack.c.bf16 %v244, %v243
      %v277 = vpack.c.bf16 %v246, %v245
      %v278 = vpack.c.bf16 %v248, %v247
      %v279 = vpack.c.bf16 %v250, %v249
      %v280 = vpack.c.bf16 %v252, %v251
      %v281 = vpack.c.bf16 %v254, %v253
      %v282 = vpack.c.bf16 %v256, %v255
      %v283 = vpack.c.bf16 %v258, %v257
      %v284 = vpack.c.bf16 %v260, %v259
      %v285 = vpack.c.bf16 %v262, %v261
      %v286 = vpack.c.bf16 %v264, %v263
      %v287 = vpack.c.bf16 %v266, %v265
      %v288 = vpack.c.bf16 %v268, %v267
      %v289 = vpack.c.bf16 %v270, %v269
      %v290 = vpack.c.bf16 %v272, %v271
      %s291 = scalar_lea.vmem %s172, 4
      %v292 = vld [vmem:[%s291] sm:$0xf]
      %vm293 = vcmask 64512
      %v295 = vsel %vm293, %v273, 0
      %v298 = vsel %vm293, %v274, 0
      %v301 = vsel %vm293, %v275, 0
      %v304 = vsel %vm293, %v276, 0
      %v307 = vsel %vm293, %v277, 0
      %v310 = vsel %vm293, %v278, 0
      %v313 = vsel %vm293, %v279, 0
      %v316 = vsel %vm293, %v280, 0
      %v319 = vsel %vm293, %v281, 0
      %v322 = vsel %vm293, %v282, 0
      %v325 = vsel %vm293, %v283, 0
      %v328 = vsel %vm293, %v284, 0
      %v331 = vsel %vm293, %v285, 0
      %v334 = vsel %vm293, %v286, 0
      %v337 = vsel %vm293, %v287, 0
      %v340 = vsel %vm293, %v288, 0
      %v343 = vsel %vm293, %v289, 0
      %v346 = vsel %vm293, %v290, 0
      %vm348 = vcmask 1043456
      %v350 = vsel %vm348, %v292, 0
      %352 = vmatpush.bf16.msra.mxu0 0
      %353 = vmatpush.bf16.msra.mxu0 0
      %354 = vmatpush.bf16.msra.mxu0 0
      %355 = vmatpush.bf16.msra.mxu0 0
      %356 = vmatpush.bf16.msra.mxu0 0
      %357 = vmatpush.bf16.msra.mxu0 0
      %358 = vmatpush.bf16.msra.mxu0 0
      %359 = vmatpush.bf16.msra.mxu0 %v350
      %360 = vmatmul.bf16.gmra.mxu0 %v295
      %v361 = vpop.f32.mrf.mxu0
      %v362 = vadd.f32 0.0, %v361
      %v363 = vpop.f32.mrf.mxu0
      %v364 = vadd.f32 0.0, %v363
      %365 = vmatmul.bf16.gmra.mxu0 %v298
      %v366 = vpop.f32.mrf.mxu0
      %v367 = vadd.f32 0.0, %v366
      %v368 = vpop.f32.mrf.mxu0
      %v369 = vadd.f32 0.0, %v368
      %370 = vmatmul.bf16.gmra.mxu0 %v301
      %v371 = vpop.f32.mrf.mxu0
      %v372 = vadd.f32 0.0, %v371
      %v373 = vpop.f32.mrf.mxu0
      %v374 = vadd.f32 0.0, %v373
      %375 = vmatmul.bf16.gmra.mxu0 %v304
      %v376 = vpop.f32.mrf.mxu0
      %v377 = vadd.f32 0.0, %v376
      %v378 = vpop.f32.mrf.mxu0
      %v379 = vadd.f32 0.0, %v378
      %380 = vmatmul.bf16.gmra.mxu0 %v307
      %v381 = vpop.f32.mrf.mxu0
      %v382 = vadd.f32 0.0, %v381
      %v383 = vpop.f32.mrf.mxu0
      %v384 = vadd.f32 0.0, %v383
      %385 = vmatmul.bf16.gmra.mxu0 %v310
      %v386 = vpop.f32.mrf.mxu0
      %v387 = vadd.f32 0.0, %v386
      %v388 = vpop.f32.mrf.mxu0
      %v389 = vadd.f32 0.0, %v388
      %390 = vmatmul.bf16.gmra.mxu0 %v313
      %v391 = vpop.f32.mrf.mxu0
      %v392 = vadd.f32 0.0, %v391
      %v393 = vpop.f32.mrf.mxu0
      %v394 = vadd.f32 0.0, %v393
      %395 = vmatmul.bf16.gmra.mxu0 %v316
      %v396 = vpop.f32.mrf.mxu0
      %v397 = vadd.f32 0.0, %v396
      %v398 = vpop.f32.mrf.mxu0
      %v399 = vadd.f32 0.0, %v398
      %400 = vmatmul.bf16.gmra.mxu0 %v319
      %v401 = vpop.f32.mrf.mxu0
      %v402 = vadd.f32 0.0, %v401
      %v403 = vpop.f32.mrf.mxu0
      %v404 = vadd.f32 0.0, %v403
      %405 = vmatmul.bf16.gmra.mxu0 %v322
      %v406 = vpop.f32.mrf.mxu0
      %v407 = vadd.f32 0.0, %v406
      %v408 = vpop.f32.mrf.mxu0
      %v409 = vadd.f32 0.0, %v408
      %410 = vmatmul.bf16.gmra.mxu0 %v325
      %v411 = vpop.f32.mrf.mxu0
      %v412 = vadd.f32 0.0, %v411
      %v413 = vpop.f32.mrf.mxu0
      %v414 = vadd.f32 0.0, %v413
      %415 = vmatmul.bf16.gmra.mxu0 %v328
      %v416 = vpop.f32.mrf.mxu0
      %v417 = vadd.f32 0.0, %v416
      %v418 = vpop.f32.mrf.mxu0
      %v419 = vadd.f32 0.0, %v418
      %420 = vmatmul.bf16.gmra.mxu0 %v331
      %v421 = vpop.f32.mrf.mxu0
      %v422 = vadd.f32 0.0, %v421
      %v423 = vpop.f32.mrf.mxu0
      %v424 = vadd.f32 0.0, %v423
      %425 = vmatmul.bf16.gmra.mxu0 %v334
      %v426 = vpop.f32.mrf.mxu0
      %v427 = vadd.f32 0.0, %v426
      %v428 = vpop.f32.mrf.mxu0
      %v429 = vadd.f32 0.0, %v428
      %430 = vmatmul.bf16.gmra.mxu0 %v337
      %v431 = vpop.f32.mrf.mxu0
      %v432 = vadd.f32 0.0, %v431
      %v433 = vpop.f32.mrf.mxu0
      %v434 = vadd.f32 0.0, %v433
      %435 = vmatmul.bf16.gmra.mxu0 %v340
      %v436 = vpop.f32.mrf.mxu0
      %v437 = vadd.f32 0.0, %v436
      %v438 = vpop.f32.mrf.mxu0
      %v439 = vadd.f32 0.0, %v438
      %440 = vmatmul.bf16.gmra.mxu0 %v343
      %v441 = vpop.f32.mrf.mxu0
      %v442 = vadd.f32 0.0, %v441
      %v443 = vpop.f32.mrf.mxu0
      %v444 = vadd.f32 0.0, %v443
      %445 = vmatmul.bf16.gmra.mxu0 %v346
      %v446 = vpop.f32.mrf.mxu0
      %v447 = vadd.f32 0.0, %v446
      %v448 = vpop.f32.mrf.mxu0
      %v449 = vadd.f32 0.0, %v448
      %450 = vdwg.mxu0
      %v452 = vsel %vm293, %v218, 0
      %v455 = vsel %vm293, %v219, 0
      %v458 = vsel %vm293, %v220, 0
      %v461 = vsel %vm293, %v221, 0
      %v464 = vsel %vm293, %v222, 0
      %v467 = vsel %vm293, %v223, 0
      %v470 = vsel %vm293, %v224, 0
      %v473 = vsel %vm293, %v225, 0
      %v476 = vsel %vm293, %v226, 0
      %v479 = vsel %vm293, %v227, 0
      %v482 = vsel %vm293, %v228, 0
      %v485 = vsel %vm293, %v229, 0
      %v488 = vsel %vm293, %v230, 0
      %v491 = vsel %vm293, %v231, 0
      %v494 = vsel %vm293, %v232, 0
      %v497 = vsel %vm293, %v233, 0
      %v500 = vsel %vm293, %v234, 0
      %v503 = vsel %vm293, %v235, 0
      %v506 = vsel %vm348, %v236, 0
      %508 = vmatpush.bf16.msra.mxu0 0
      %509 = vmatpush.bf16.msra.mxu0 0
      %510 = vmatpush.bf16.msra.mxu0 0
      %511 = vmatpush.bf16.msra.mxu0 0
      %512 = vmatpush.bf16.msra.mxu0 0
      %513 = vmatpush.bf16.msra.mxu0 0
      %514 = vmatpush.bf16.msra.mxu0 0
      %515 = vmatpush.bf16.msra.mxu0 %v506
      %516 = vmatmul.bf16.gmra.mxu0 %v452
      %v517 = vpop.f32.mrf.mxu0
      %v518 = vadd.f32 %v362, %v517
      %v519 = vpop.f32.mrf.mxu0
      %v520 = vadd.f32 %v364, %v519
      %521 = vmatmul.bf16.gmra.mxu0 %v455
      %v522 = vpop.f32.mrf.mxu0
      %v523 = vadd.f32 %v367, %v522
      %v524 = vpop.f32.mrf.mxu0
      %v525 = vadd.f32 %v369, %v524
      %526 = vmatmul.bf16.gmra.mxu0 %v458
      %v527 = vpop.f32.mrf.mxu0
      %v528 = vadd.f32 %v372, %v527
      %v529 = vpop.f32.mrf.mxu0
      %v530 = vadd.f32 %v374, %v529
      %531 = vmatmul.bf16.gmra.mxu0 %v461
      %v532 = vpop.f32.mrf.mxu0
      %v533 = vadd.f32 %v377, %v532
      %v534 = vpop.f32.mrf.mxu0
      %v535 = vadd.f32 %v379, %v534
      %536 = vmatmul.bf16.gmra.mxu0 %v464
      %v537 = vpop.f32.mrf.mxu0
      %v538 = vadd.f32 %v382, %v537
      %v539 = vpop.f32.mrf.mxu0
      %v540 = vadd.f32 %v384, %v539
      %541 = vmatmul.bf16.gmra.mxu0 %v467
      %v542 = vpop.f32.mrf.mxu0
      %v543 = vadd.f32 %v387, %v542
      %v544 = vpop.f32.mrf.mxu0
      %v545 = vadd.f32 %v389, %v544
      %546 = vmatmul.bf16.gmra.mxu0 %v470
      %v547 = vpop.f32.mrf.mxu0
      %v548 = vadd.f32 %v392, %v547
      %v549 = vpop.f32.mrf.mxu0
      %v550 = vadd.f32 %v394, %v549
      %551 = vmatmul.bf16.gmra.mxu0 %v473
      %v552 = vpop.f32.mrf.mxu0
      %v553 = vadd.f32 %v397, %v552
      %v554 = vpop.f32.mrf.mxu0
      %v555 = vadd.f32 %v399, %v554
      %556 = vmatmul.bf16.gmra.mxu0 %v476
      %v557 = vpop.f32.mrf.mxu0
      %v558 = vadd.f32 %v402, %v557
      %v559 = vpop.f32.mrf.mxu0
      %v560 = vadd.f32 %v404, %v559
      %561 = vmatmul.bf16.gmra.mxu0 %v479
      %v562 = vpop.f32.mrf.mxu0
      %v563 = vadd.f32 %v407, %v562
      %v564 = vpop.f32.mrf.mxu0
      %v565 = vadd.f32 %v409, %v564
      %566 = vmatmul.bf16.gmra.mxu0 %v482
      %v567 = vpop.f32.mrf.mxu0
      %v568 = vadd.f32 %v412, %v567
      %v569 = vpop.f32.mrf.mxu0
      %v570 = vadd.f32 %v414, %v569
      %571 = vmatmul.bf16.gmra.mxu0 %v485
      %v572 = vpop.f32.mrf.mxu0
      %v573 = vadd.f32 %v417, %v572
      %v574 = vpop.f32.mrf.mxu0
      %v575 = vadd.f32 %v419, %v574
      %576 = vmatmul.bf16.gmra.mxu0 %v488
      %v577 = vpop.f32.mrf.mxu0
      %v578 = vadd.f32 %v422, %v577
      %v579 = vpop.f32.mrf.mxu0
      %v580 = vadd.f32 %v424, %v579
      %581 = vmatmul.bf16.gmra.mxu0 %v491
      %v582 = vpop.f32.mrf.mxu0
      %v583 = vadd.f32 %v427, %v582
      %v584 = vpop.f32.mrf.mxu0
      %v585 = vadd.f32 %v429, %v584
      %586 = vmatmul.bf16.gmra.mxu0 %v494
      %v587 = vpop.f32.mrf.mxu0
      %v588 = vadd.f32 %v432, %v587
      %v589 = vpop.f32.mrf.mxu0
      %v590 = vadd.f32 %v434, %v589
      %591 = vmatmul.bf16.gmra.mxu0 %v497
      %v592 = vpop.f32.mrf.mxu0
      %v593 = vadd.f32 %v437, %v592
      %v594 = vpop.f32.mrf.mxu0
      %v595 = vadd.f32 %v439, %v594
      %596 = vmatmul.bf16.gmra.mxu0 %v500
      %v597 = vpop.f32.mrf.mxu0
      %v598 = vadd.f32 %v442, %v597
      %v599 = vpop.f32.mrf.mxu0
      %v600 = vadd.f32 %v444, %v599
      %601 = vmatmul.bf16.gmra.mxu0 %v503
      %v602 = vpop.f32.mrf.mxu0
      %v603 = vadd.f32 %v447, %v602
      %v604 = vpop.f32.mrf.mxu0
      %v605 = vadd.f32 %v449, %v604
      %606 = vdwg.mxu0
      %v607 = vld [vmem:[%s168 + $0x2] sm:$0xff]
      %v608 = vld [vmem:[%s168 + $0xa] sm:$0xff]
      %v609 = vld [vmem:[%s168 + $0x12] sm:$0xff]
      %v610 = vld [vmem:[%s168 + $0x1a] sm:$0xff]
      %v611 = vld [vmem:[%s168 + $0x22] sm:$0xff]
      %v612 = vld [vmem:[%s168 + $0x2a] sm:$0xff]
      %v613 = vld [vmem:[%s168 + $0x32] sm:$0xff]
      %v614 = vld [vmem:[%s168 + $0x3a] sm:$0xff]
      %v615 = vld [vmem:[%s168 + $0x42] sm:$0xff]
      %v616 = vld [vmem:[%s168 + $0x4a] sm:$0xff]
      %v617 = vld [vmem:[%s168 + $0x52] sm:$0xff]
      %v618 = vld [vmem:[%s168 + $0x5a] sm:$0xff]
      %v619 = vld [vmem:[%s168 + $0x62] sm:$0xff]
      %v620 = vld [vmem:[%s168 + $0x6a] sm:$0xff]
      %v621 = vld [vmem:[%s168 + $0x72] sm:$0xff]
      %v622 = vld [vmem:[%s168 + $0x7a] sm:$0xff]
      %v623 = vld [vmem:[%s168 + $0x82] sm:$0xff]
      %v624 = vld [vmem:[%s168 + $0x8a] sm:$0xff]
      %v625 = vld [vmem:[%s168 + $0x92] sm:$0xff]
      %v626 = vld [vmem:[%s168 + $0x9a] sm:$0xff]
      %v627 = vld [vmem:[%s168 + $0xa2] sm:$0xff]
      %v628 = vld [vmem:[%s168 + $0xaa] sm:$0xff]
      %v629 = vld [vmem:[%s168 + $0xb2] sm:$0xff]
      %v630 = vld [vmem:[%s168 + $0xba] sm:$0xff]
      %v631 = vld [vmem:[%s168 + $0xc2] sm:$0xff]
      %v632 = vld [vmem:[%s168 + $0xca] sm:$0xff]
      %v633 = vld [vmem:[%s168 + $0xd2] sm:$0xff]
      %v634 = vld [vmem:[%s168 + $0xda] sm:$0xff]
      %v635 = vld [vmem:[%s168 + $0xe2] sm:$0xff]
      %v636 = vld [vmem:[%s168 + $0xea] sm:$0xff]
      %v637 = vld [vmem:[%s168 + $0xf2] sm:$0xff]
      %v638 = vld [vmem:[%s168 + $0xfa] sm:$0xff]
      %v639 = vld [vmem:[%s168 + $0x102] sm:$0xff]
      %v640 = vld [vmem:[%s168 + $0x10a] sm:$0xff]
      %v641 = vld [vmem:[%s168 + $0x112] sm:$0xff]
      %v642 = vld [vmem:[%s168 + $0x11a] sm:$0xff]
      %v643 = vpack.c.bf16 %v608, %v607
      %v644 = vpack.c.bf16 %v610, %v609
      %v645 = vpack.c.bf16 %v612, %v611
      %v646 = vpack.c.bf16 %v614, %v613
      %v647 = vpack.c.bf16 %v616, %v615
      %v648 = vpack.c.bf16 %v618, %v617
      %v649 = vpack.c.bf16 %v620, %v619
      %v650 = vpack.c.bf16 %v622, %v621
      %v651 = vpack.c.bf16 %v624, %v623
      %v652 = vpack.c.bf16 %v626, %v625
      %v653 = vpack.c.bf16 %v628, %v627
      %v654 = vpack.c.bf16 %v630, %v629
      %v655 = vpack.c.bf16 %v632, %v631
      %v656 = vpack.c.bf16 %v634, %v633
      %v657 = vpack.c.bf16 %v636, %v635
      %v658 = vpack.c.bf16 %v638, %v637
      %v659 = vpack.c.bf16 %v640, %v639
      %v660 = vpack.c.bf16 %v642, %v641
      %s661 = scalar_lea.vmem %s172, 8
      %v662 = vld [vmem:[%s661] sm:$0xf]
      %v664 = vsel %vm293, %v643, 0
      %v667 = vsel %vm293, %v644, 0
      %v670 = vsel %vm293, %v645, 0
      %v673 = vsel %vm293, %v646, 0
      %v676 = vsel %vm293, %v647, 0
      %v679 = vsel %vm293, %v648, 0
      %v682 = vsel %vm293, %v649, 0
      %v685 = vsel %vm293, %v650, 0
      %v688 = vsel %vm293, %v651, 0
      %v691 = vsel %vm293, %v652, 0
      %v694 = vsel %vm293, %v653, 0
      %v697 = vsel %vm293, %v654, 0
      %v700 = vsel %vm293, %v655, 0
      %v703 = vsel %vm293, %v656, 0
      %v706 = vsel %vm293, %v657, 0
      %v709 = vsel %vm293, %v658, 0
      %v712 = vsel %vm293, %v659, 0
      %v715 = vsel %vm293, %v660, 0
      %v718 = vsel %vm348, %v662, 0
      %720 = vmatpush.bf16.msra.mxu0 0
      %721 = vmatpush.bf16.msra.mxu0 0
      %722 = vmatpush.bf16.msra.mxu0 0
      %723 = vmatpush.bf16.msra.mxu0 0
      %724 = vmatpush.bf16.msra.mxu0 0
      %725 = vmatpush.bf16.msra.mxu0 0
      %726 = vmatpush.bf16.msra.mxu0 0
      %727 = vmatpush.bf16.msra.mxu0 %v718
      %728 = vmatmul.bf16.gmra.mxu0 %v664
      %v729 = vpop.f32.mrf.mxu0
      %v730 = vadd.f32 0.0, %v729
      %v731 = vpop.f32.mrf.mxu0
      %v732 = vadd.f32 0.0, %v731
      %733 = vmatmul.bf16.gmra.mxu0 %v667
      %v734 = vpop.f32.mrf.mxu0
      %v735 = vadd.f32 0.0, %v734
      %v736 = vpop.f32.mrf.mxu0
      %v737 = vadd.f32 0.0, %v736
      %738 = vmatmul.bf16.gmra.mxu0 %v670
      %v739 = vpop.f32.mrf.mxu0
      %v740 = vadd.f32 0.0, %v739
      %v741 = vpop.f32.mrf.mxu0
      %v742 = vadd.f32 0.0, %v741
      %743 = vmatmul.bf16.gmra.mxu0 %v673
      %v744 = vpop.f32.mrf.mxu0
      %v745 = vadd.f32 0.0, %v744
      %v746 = vpop.f32.mrf.mxu0
      %v747 = vadd.f32 0.0, %v746
      %748 = vmatmul.bf16.gmra.mxu0 %v676
      %v749 = vpop.f32.mrf.mxu0
      %v750 = vadd.f32 0.0, %v749
      %v751 = vpop.f32.mrf.mxu0
      %v752 = vadd.f32 0.0, %v751
      %753 = vmatmul.bf16.gmra.mxu0 %v679
      %v754 = vpop.f32.mrf.mxu0
      %v755 = vadd.f32 0.0, %v754
      %v756 = vpop.f32.mrf.mxu0
      %v757 = vadd.f32 0.0, %v756
      %758 = vmatmul.bf16.gmra.mxu0 %v682
      %v759 = vpop.f32.mrf.mxu0
      %v760 = vadd.f32 0.0, %v759
      %v761 = vpop.f32.mrf.mxu0
      %v762 = vadd.f32 0.0, %v761
      %763 = vmatmul.bf16.gmra.mxu0 %v685
      %v764 = vpop.f32.mrf.mxu0
      %v765 = vadd.f32 0.0, %v764
      %v766 = vpop.f32.mrf.mxu0
      %v767 = vadd.f32 0.0, %v766
      %768 = vmatmul.bf16.gmra.mxu0 %v688
      %v769 = vpop.f32.mrf.mxu0
      %v770 = vadd.f32 0.0, %v769
      %v771 = vpop.f32.mrf.mxu0
      %v772 = vadd.f32 0.0, %v771
      %773 = vmatmul.bf16.gmra.mxu0 %v691
      %v774 = vpop.f32.mrf.mxu0
      %v775 = vadd.f32 0.0, %v774
      %v776 = vpop.f32.mrf.mxu0
      %v777 = vadd.f32 0.0, %v776
      %778 = vmatmul.bf16.gmra.mxu0 %v694
      %v779 = vpop.f32.mrf.mxu0
      %v780 = vadd.f32 0.0, %v779
      %v781 = vpop.f32.mrf.mxu0
      %v782 = vadd.f32 0.0, %v781
      %783 = vmatmul.bf16.gmra.mxu0 %v697
      %v784 = vpop.f32.mrf.mxu0
      %v785 = vadd.f32 0.0, %v784
      %v786 = vpop.f32.mrf.mxu0
      %v787 = vadd.f32 0.0, %v786
      %788 = vmatmul.bf16.gmra.mxu0 %v700
      %v789 = vpop.f32.mrf.mxu0
      %v790 = vadd.f32 0.0, %v789
      %v791 = vpop.f32.mrf.mxu0
      %v792 = vadd.f32 0.0, %v791
      %793 = vmatmul.bf16.gmra.mxu0 %v703
      %v794 = vpop.f32.mrf.mxu0
      %v795 = vadd.f32 0.0, %v794
      %v796 = vpop.f32.mrf.mxu0
      %v797 = vadd.f32 0.0, %v796
      %798 = vmatmul.bf16.gmra.mxu0 %v706
      %v799 = vpop.f32.mrf.mxu0
      %v800 = vadd.f32 0.0, %v799
      %v801 = vpop.f32.mrf.mxu0
      %v802 = vadd.f32 0.0, %v801
      %803 = vmatmul.bf16.gmra.mxu0 %v709
      %v804 = vpop.f32.mrf.mxu0
      %v805 = vadd.f32 0.0, %v804
      %v806 = vpop.f32.mrf.mxu0
      %v807 = vadd.f32 0.0, %v806
      %808 = vmatmul.bf16.gmra.mxu0 %v712
      %v809 = vpop.f32.mrf.mxu0
      %v810 = vadd.f32 0.0, %v809
      %v811 = vpop.f32.mrf.mxu0
      %v812 = vadd.f32 0.0, %v811
      %813 = vmatmul.bf16.gmra.mxu0 %v715
      %v814 = vpop.f32.mrf.mxu0
      %v815 = vadd.f32 0.0, %v814
      %v816 = vpop.f32.mrf.mxu0
      %v817 = vadd.f32 0.0, %v816
      %818 = vdwg.mxu0
      %v819 = vadd.f32 %v518, %v730
      %v820 = vadd.f32 %v520, %v732
      %v821 = vadd.f32 %v523, %v735
      %v822 = vadd.f32 %v525, %v737
      %v823 = vadd.f32 %v528, %v740
      %v824 = vadd.f32 %v530, %v742
      %v825 = vadd.f32 %v533, %v745
      %v826 = vadd.f32 %v535, %v747
      %v827 = vadd.f32 %v538, %v750
      %v828 = vadd.f32 %v540, %v752
      %v829 = vadd.f32 %v543, %v755
      %v830 = vadd.f32 %v545, %v757
      %v831 = vadd.f32 %v548, %v760
      %v832 = vadd.f32 %v550, %v762
      %v833 = vadd.f32 %v553, %v765
      %v834 = vadd.f32 %v555, %v767
      %v835 = vadd.f32 %v558, %v770
      %v836 = vadd.f32 %v560, %v772
      %v837 = vadd.f32 %v563, %v775
      %v838 = vadd.f32 %v565, %v777
      %v839 = vadd.f32 %v568, %v780
      %v840 = vadd.f32 %v570, %v782
      %v841 = vadd.f32 %v573, %v785
      %v842 = vadd.f32 %v575, %v787
      %v843 = vadd.f32 %v578, %v790
      %v844 = vadd.f32 %v580, %v792
      %v845 = vadd.f32 %v583, %v795
      %v846 = vadd.f32 %v585, %v797
      %v847 = vadd.f32 %v588, %v800
      %v848 = vadd.f32 %v590, %v802
      %v849 = vadd.f32 %v593, %v805
      %v850 = vadd.f32 %v595, %v807
      %v851 = vadd.f32 %v598, %v810
      %v852 = vadd.f32 %v600, %v812
      %v853 = vadd.f32 %v603, %v815
      %v854 = vadd.f32 %v605, %v817
      %v855 = vld [vmem:[%s168 + $0x12] sm:$0xff]
      %v856 = vld [vmem:[%s168 + $0x1a] sm:$0xff]
      %v857 = vld [vmem:[%s168 + $0x22] sm:$0xff]
      %v858 = vld [vmem:[%s168 + $0x2a] sm:$0xff]
      %v859 = vld [vmem:[%s168 + $0x32] sm:$0xff]
      %v860 = vld [vmem:[%s168 + $0x3a] sm:$0xff]
      %v861 = vld [vmem:[%s168 + $0x42] sm:$0xff]
      %v862 = vld [vmem:[%s168 + $0x4a] sm:$0xff]
      %v863 = vld [vmem:[%s168 + $0x52] sm:$0xff]
      %v864 = vld [vmem:[%s168 + $0x5a] sm:$0xff]
      %v865 = vld [vmem:[%s168 + $0x62] sm:$0xff]
      %v866 = vld [vmem:[%s168 + $0x6a] sm:$0xff]
      %v867 = vld [vmem:[%s168 + $0x72] sm:$0xff]
      %v868 = vld [vmem:[%s168 + $0x7a] sm:$0xff]
      %v869 = vld [vmem:[%s168 + $0x82] sm:$0xff]
      %v870 = vld [vmem:[%s168 + $0x8a] sm:$0xff]
      %v871 = vld [vmem:[%s168 + $0x92] sm:$0xff]
      %v872 = vld [vmem:[%s168 + $0x9a] sm:$0xff]
      %v873 = vld [vmem:[%s168 + $0xa2] sm:$0xff]
      %v874 = vld [vmem:[%s168 + $0xaa] sm:$0xff]
      %v875 = vld [vmem:[%s168 + $0xb2] sm:$0xff]
      %v876 = vld [vmem:[%s168 + $0xba] sm:$0xff]
      %v877 = vld [vmem:[%s168 + $0xc2] sm:$0xff]
      %v878 = vld [vmem:[%s168 + $0xca] sm:$0xff]
      %v879 = vld [vmem:[%s168 + $0xd2] sm:$0xff]
      %v880 = vld [vmem:[%s168 + $0xda] sm:$0xff]
      %v881 = vld [vmem:[%s168 + $0xe2] sm:$0xff]
      %v882 = vld [vmem:[%s168 + $0xea] sm:$0xff]
      %v883 = vld [vmem:[%s168 + $0xf2] sm:$0xff]
      %v884 = vld [vmem:[%s168 + $0xfa] sm:$0xff]
      %v885 = vld [vmem:[%s168 + $0x102] sm:$0xff]
      %v886 = vld [vmem:[%s168 + $0x10a] sm:$0xff]
      %v887 = vld [vmem:[%s168 + $0x112] sm:$0xff]
      %v888 = vld [vmem:[%s168 + $0x11a] sm:$0xff]
      %v889 = vld [vmem:[%s168 + $0x122] sm:$0xff]
      %v890 = vld [vmem:[%s168 + $0x12a] sm:$0xff]
      %v891 = vpack.c.bf16 %v856, %v855
      %v892 = vpack.c.bf16 %v858, %v857
      %v893 = vpack.c.bf16 %v860, %v859
      %v894 = vpack.c.bf16 %v862, %v861
      %v895 = vpack.c.bf16 %v864, %v863
      %v896 = vpack.c.bf16 %v866, %v865
      %v897 = vpack.c.bf16 %v868, %v867
      %v898 = vpack.c.bf16 %v870, %v869
      %v899 = vpack.c.bf16 %v872, %v871
      %v900 = vpack.c.bf16 %v874, %v873
      %v901 = vpack.c.bf16 %v876, %v875
      %v902 = vpack.c.bf16 %v878, %v877
      %v903 = vpack.c.bf16 %v880, %v879
      %v904 = vpack.c.bf16 %v882, %v881
      %v905 = vpack.c.bf16 %v884, %v883
      %v906 = vpack.c.bf16 %v886, %v885
      %v907 = vpack.c.bf16 %v888, %v887
      %v908 = vpack.c.bf16 %v890, %v889
      %s909 = scalar_lea.vmem %s172, 12
      %v910 = vld [vmem:[%s909] sm:$0xf]
      %v912 = vsel %vm293, %v891, 0
      %v915 = vsel %vm293, %v892, 0
      %v918 = vsel %vm293, %v893, 0
      %v921 = vsel %vm293, %v894, 0
      %v924 = vsel %vm293, %v895, 0
      %v927 = vsel %vm293, %v896, 0
      %v930 = vsel %vm293, %v897, 0
      %v933 = vsel %vm293, %v898, 0
      %v936 = vsel %vm293, %v899, 0
      %v939 = vsel %vm293, %v900, 0
      %v942 = vsel %vm293, %v901, 0
      %v945 = vsel %vm293, %v902, 0
      %v948 = vsel %vm293, %v903, 0
      %v951 = vsel %vm293, %v904, 0
      %v954 = vsel %vm293, %v905, 0
      %v957 = vsel %vm293, %v906, 0
      %v960 = vsel %vm293, %v907, 0
      %v963 = vsel %vm293, %v908, 0
      %v966 = vsel %vm348, %v910, 0
      %968 = vmatpush.bf16.msra.mxu0 0
      %969 = vmatpush.bf16.msra.mxu0 0
      %970 = vmatpush.bf16.msra.mxu0 0
      %971 = vmatpush.bf16.msra.mxu0 0
      %972 = vmatpush.bf16.msra.mxu0 0
      %973 = vmatpush.bf16.msra.mxu0 0
      %974 = vmatpush.bf16.msra.mxu0 0
      %975 = vmatpush.bf16.msra.mxu0 %v966
      %976 = vmatmul.bf16.gmra.mxu0 %v912
      %v977 = vpop.f32.mrf.mxu0
      %v978 = vadd.f32 0.0, %v977
      %v979 = vpop.f32.mrf.mxu0
      %v980 = vadd.f32 0.0, %v979
      %981 = vmatmul.bf16.gmra.mxu0 %v915
      %v982 = vpop.f32.mrf.mxu0
      %v983 = vadd.f32 0.0, %v982
      %v984 = vpop.f32.mrf.mxu0
      %v985 = vadd.f32 0.0, %v984
      %986 = vmatmul.bf16.gmra.mxu0 %v918
      %v987 = vpop.f32.mrf.mxu0
      %v988 = vadd.f32 0.0, %v987
      %v989 = vpop.f32.mrf.mxu0
      %v990 = vadd.f32 0.0, %v989
      %991 = vmatmul.bf16.gmra.mxu0 %v921
      %v992 = vpop.f32.mrf.mxu0
      %v993 = vadd.f32 0.0, %v992
      %v994 = vpop.f32.mrf.mxu0
      %v995 = vadd.f32 0.0, %v994
      %996 = vmatmul.bf16.gmra.mxu0 %v924
      %v997 = vpop.f32.mrf.mxu0
      %v998 = vadd.f32 0.0, %v997
      %v999 = vpop.f32.mrf.mxu0
      %v1000 = vadd.f32 0.0, %v999
      %1001 = vmatmul.bf16.gmra.mxu0 %v927
      %v1002 = vpop.f32.mrf.mxu0
      %v1003 = vadd.f32 0.0, %v1002
      %v1004 = vpop.f32.mrf.mxu0
      %v1005 = vadd.f32 0.0, %v1004
      %1006 = vmatmul.bf16.gmra.mxu0 %v930
      %v1007 = vpop.f32.mrf.mxu0
      %v1008 = vadd.f32 0.0, %v1007
      %v1009 = vpop.f32.mrf.mxu0
      %v1010 = vadd.f32 0.0, %v1009
      %1011 = vmatmul.bf16.gmra.mxu0 %v933
      %v1012 = vpop.f32.mrf.mxu0
      %v1013 = vadd.f32 0.0, %v1012
      %v1014 = vpop.f32.mrf.mxu0
      %v1015 = vadd.f32 0.0, %v1014
      %1016 = vmatmul.bf16.gmra.mxu0 %v936
      %v1017 = vpop.f32.mrf.mxu0
      %v1018 = vadd.f32 0.0, %v1017
      %v1019 = vpop.f32.mrf.mxu0
      %v1020 = vadd.f32 0.0, %v1019
      %1021 = vmatmul.bf16.gmra.mxu0 %v939
      %v1022 = vpop.f32.mrf.mxu0
      %v1023 = vadd.f32 0.0, %v1022
      %v1024 = vpop.f32.mrf.mxu0
      %v1025 = vadd.f32 0.0, %v1024
      %1026 = vmatmul.bf16.gmra.mxu0 %v942
      %v1027 = vpop.f32.mrf.mxu0
      %v1028 = vadd.f32 0.0, %v1027
      %v1029 = vpop.f32.mrf.mxu0
      %v1030 = vadd.f32 0.0, %v1029
      %1031 = vmatmul.bf16.gmra.mxu0 %v945
      %v1032 = vpop.f32.mrf.mxu0
      %v1033 = vadd.f32 0.0, %v1032
      %v1034 = vpop.f32.mrf.mxu0
      %v1035 = vadd.f32 0.0, %v1034
      %1036 = vmatmul.bf16.gmra.mxu0 %v948
      %v1037 = vpop.f32.mrf.mxu0
      %v1038 = vadd.f32 0.0, %v1037
      %v1039 = vpop.f32.mrf.mxu0
      %v1040 = vadd.f32 0.0, %v1039
      %1041 = vmatmul.bf16.gmra.mxu0 %v951
      %v1042 = vpop.f32.mrf.mxu0
      %v1043 = vadd.f32 0.0, %v1042
      %v1044 = vpop.f32.mrf.mxu0
      %v1045 = vadd.f32 0.0, %v1044
      %1046 = vmatmul.bf16.gmra.mxu0 %v954
      %v1047 = vpop.f32.mrf.mxu0
      %v1048 = vadd.f32 0.0, %v1047
      %v1049 = vpop.f32.mrf.mxu0
      %v1050 = vadd.f32 0.0, %v1049
      %1051 = vmatmul.bf16.gmra.mxu0 %v957
      %v1052 = vpop.f32.mrf.mxu0
      %v1053 = vadd.f32 0.0, %v1052
      %v1054 = vpop.f32.mrf.mxu0
      %v1055 = vadd.f32 0.0, %v1054
      %1056 = vmatmul.bf16.gmra.mxu0 %v960
      %v1057 = vpop.f32.mrf.mxu0
      %v1058 = vadd.f32 0.0, %v1057
      %v1059 = vpop.f32.mrf.mxu0
      %v1060 = vadd.f32 0.0, %v1059
      %1061 = vmatmul.bf16.gmra.mxu0 %v963
      %v1062 = vpop.f32.mrf.mxu0
      %v1063 = vadd.f32 0.0, %v1062
      %v1064 = vpop.f32.mrf.mxu0
      %v1065 = vadd.f32 0.0, %v1064
      %1066 = vdwg.mxu0
      %v1067 = vadd.f32 %v819, %v978
      %v1068 = vadd.f32 %v820, %v980
      %v1069 = vadd.f32 %v821, %v983
      %v1070 = vadd.f32 %v822, %v985
      %v1071 = vadd.f32 %v823, %v988
      %v1072 = vadd.f32 %v824, %v990
      %v1073 = vadd.f32 %v825, %v993
      %v1074 = vadd.f32 %v826, %v995
      %v1075 = vadd.f32 %v827, %v998
      %v1076 = vadd.f32 %v828, %v1000
      %v1077 = vadd.f32 %v829, %v1003
      %v1078 = vadd.f32 %v830, %v1005
      %v1079 = vadd.f32 %v831, %v1008
      %v1080 = vadd.f32 %v832, %v1010
      %v1081 = vadd.f32 %v833, %v1013
      %v1082 = vadd.f32 %v834, %v1015
      %v1083 = vadd.f32 %v835, %v1018
      %v1084 = vadd.f32 %v836, %v1020
      %v1085 = vadd.f32 %v837, %v1023
      %v1086 = vadd.f32 %v838, %v1025
      %v1087 = vadd.f32 %v839, %v1028
      %v1088 = vadd.f32 %v840, %v1030
      %v1089 = vadd.f32 %v841, %v1033
      %v1090 = vadd.f32 %v842, %v1035
      %v1091 = vadd.f32 %v843, %v1038
      %v1092 = vadd.f32 %v844, %v1040
      %v1093 = vadd.f32 %v845, %v1043
      %v1094 = vadd.f32 %v846, %v1045
      %v1095 = vadd.f32 %v847, %v1048
      %v1096 = vadd.f32 %v848, %v1050
      %v1097 = vadd.f32 %v849, %v1053
      %v1098 = vadd.f32 %v850, %v1055
      %v1099 = vadd.f32 %v851, %v1058
      %v1100 = vadd.f32 %v852, %v1060
      %v1101 = vadd.f32 %v853, %v1063
      %v1102 = vadd.f32 %v854, %v1065
      %v1103 = vld [vmem:[%s168 + $0x13] sm:$0xff]
      %v1104 = vld [vmem:[%s168 + $0x1b] sm:$0xff]
      %v1105 = vld [vmem:[%s168 + $0x23] sm:$0xff]
      %v1106 = vld [vmem:[%s168 + $0x2b] sm:$0xff]
      %v1107 = vld [vmem:[%s168 + $0x33] sm:$0xff]
      %v1108 = vld [vmem:[%s168 + $0x3b] sm:$0xff]
      %v1109 = vld [vmem:[%s168 + $0x43] sm:$0xff]
      %v1110 = vld [vmem:[%s168 + $0x4b] sm:$0xff]
      %v1111 = vld [vmem:[%s168 + $0x53] sm:$0xff]
      %v1112 = vld [vmem:[%s168 + $0x5b] sm:$0xff]
      %v1113 = vld [vmem:[%s168 + $0x63] sm:$0xff]
      %v1114 = vld [vmem:[%s168 + $0x6b] sm:$0xff]
      %v1115 = vld [vmem:[%s168 + $0x73] sm:$0xff]
      %v1116 = vld [vmem:[%s168 + $0x7b] sm:$0xff]
      %v1117 = vld [vmem:[%s168 + $0x83] sm:$0xff]
      %v1118 = vld [vmem:[%s168 + $0x8b] sm:$0xff]
      %v1119 = vld [vmem:[%s168 + $0x93] sm:$0xff]
      %v1120 = vld [vmem:[%s168 + $0x9b] sm:$0xff]
      %v1121 = vld [vmem:[%s168 + $0xa3] sm:$0xff]
      %v1122 = vld [vmem:[%s168 + $0xab] sm:$0xff]
      %v1123 = vld [vmem:[%s168 + $0xb3] sm:$0xff]
      %v1124 = vld [vmem:[%s168 + $0xbb] sm:$0xff]
      %v1125 = vld [vmem:[%s168 + $0xc3] sm:$0xff]
      %v1126 = vld [vmem:[%s168 + $0xcb] sm:$0xff]
      %v1127 = vld [vmem:[%s168 + $0xd3] sm:$0xff]
      %v1128 = vld [vmem:[%s168 + $0xdb] sm:$0xff]
      %v1129 = vld [vmem:[%s168 + $0xe3] sm:$0xff]
      %v1130 = vld [vmem:[%s168 + $0xeb] sm:$0xff]
      %v1131 = vld [vmem:[%s168 + $0xf3] sm:$0xff]
      %v1132 = vld [vmem:[%s168 + $0xfb] sm:$0xff]
      %v1133 = vld [vmem:[%s168 + $0x103] sm:$0xff]
      %v1134 = vld [vmem:[%s168 + $0x10b] sm:$0xff]
      %v1135 = vld [vmem:[%s168 + $0x113] sm:$0xff]
      %v1136 = vld [vmem:[%s168 + $0x11b] sm:$0xff]
      %v1137 = vld [vmem:[%s168 + $0x123] sm:$0xff]
      %v1138 = vld [vmem:[%s168 + $0x12b] sm:$0xff]
      %v1139 = vpack.c.bf16 %v1104, %v1103
      %v1140 = vpack.c.bf16 %v1106, %v1105
      %v1141 = vpack.c.bf16 %v1108, %v1107
      %v1142 = vpack.c.bf16 %v1110, %v1109
      %v1143 = vpack.c.bf16 %v1112, %v1111
      %v1144 = vpack.c.bf16 %v1114, %v1113
      %v1145 = vpack.c.bf16 %v1116, %v1115
      %v1146 = vpack.c.bf16 %v1118, %v1117
      %v1147 = vpack.c.bf16 %v1120, %v1119
      %v1148 = vpack.c.bf16 %v1122, %v1121
      %v1149 = vpack.c.bf16 %v1124, %v1123
      %v1150 = vpack.c.bf16 %v1126, %v1125
      %v1151 = vpack.c.bf16 %v1128, %v1127
      %v1152 = vpack.c.bf16 %v1130, %v1129
      %v1153 = vpack.c.bf16 %v1132, %v1131
      %v1154 = vpack.c.bf16 %v1134, %v1133
      %v1155 = vpack.c.bf16 %v1136, %v1135
      %v1156 = vpack.c.bf16 %v1138, %v1137
      %s1157 = scalar_lea.vmem %s172, 16
      %v1158 = vld [vmem:[%s1157] sm:$0xf]
      %v1160 = vsel %vm293, %v1139, 0
      %v1163 = vsel %vm293, %v1140, 0
      %v1166 = vsel %vm293, %v1141, 0
      %v1169 = vsel %vm293, %v1142, 0
      %v1172 = vsel %vm293, %v1143, 0
      %v1175 = vsel %vm293, %v1144, 0
      %v1178 = vsel %vm293, %v1145, 0
      %v1181 = vsel %vm293, %v1146, 0
      %v1184 = vsel %vm293, %v1147, 0
      %v1187 = vsel %vm293, %v1148, 0
      %v1190 = vsel %vm293, %v1149, 0
      %v1193 = vsel %vm293, %v1150, 0
      %v1196 = vsel %vm293, %v1151, 0
      %v1199 = vsel %vm293, %v1152, 0
      %v1202 = vsel %vm293, %v1153, 0
      %v1205 = vsel %vm293, %v1154, 0
      %v1208 = vsel %vm293, %v1155, 0
      %v1211 = vsel %vm293, %v1156, 0
      %v1214 = vsel %vm348, %v1158, 0
      %1216 = vmatpush.bf16.msra.mxu0 0
      %1217 = vmatpush.bf16.msra.mxu0 0
      %1218 = vmatpush.bf16.msra.mxu0 0
      %1219 = vmatpush.bf16.msra.mxu0 0
      %1220 = vmatpush.bf16.msra.mxu0 0
      %1221 = vmatpush.bf16.msra.mxu0 0
      %1222 = vmatpush.bf16.msra.mxu0 0
      %1223 = vmatpush.bf16.msra.mxu0 %v1214
      %1224 = vmatmul.bf16.gmra.mxu0 %v1160
      %v1225 = vpop.f32.mrf.mxu0
      %v1226 = vadd.f32 0.0, %v1225
      %v1227 = vpop.f32.mrf.mxu0
      %v1228 = vadd.f32 0.0, %v1227
      %1229 = vmatmul.bf16.gmra.mxu0 %v1163
      %v1230 = vpop.f32.mrf.mxu0
      %v1231 = vadd.f32 0.0, %v1230
      %v1232 = vpop.f32.mrf.mxu0
      %v1233 = vadd.f32 0.0, %v1232
      %1234 = vmatmul.bf16.gmra.mxu0 %v1166
      %v1235 = vpop.f32.mrf.mxu0
      %v1236 = vadd.f32 0.0, %v1235
      %v1237 = vpop.f32.mrf.mxu0
      %v1238 = vadd.f32 0.0, %v1237
      %1239 = vmatmul.bf16.gmra.mxu0 %v1169
      %v1240 = vpop.f32.mrf.mxu0
      %v1241 = vadd.f32 0.0, %v1240
      %v1242 = vpop.f32.mrf.mxu0
      %v1243 = vadd.f32 0.0, %v1242
      %1244 = vmatmul.bf16.gmra.mxu0 %v1172
      %v1245 = vpop.f32.mrf.mxu0
      %v1246 = vadd.f32 0.0, %v1245
      %v1247 = vpop.f32.mrf.mxu0
      %v1248 = vadd.f32 0.0, %v1247
      %1249 = vmatmul.bf16.gmra.mxu0 %v1175
      %v1250 = vpop.f32.mrf.mxu0
      %v1251 = vadd.f32 0.0, %v1250
      %v1252 = vpop.f32.mrf.mxu0
      %v1253 = vadd.f32 0.0, %v1252
      %1254 = vmatmul.bf16.gmra.mxu0 %v1178
      %v1255 = vpop.f32.mrf.mxu0
      %v1256 = vadd.f32 0.0, %v1255
      %v1257 = vpop.f32.mrf.mxu0
      %v1258 = vadd.f32 0.0, %v1257
      %1259 = vmatmul.bf16.gmra.mxu0 %v1181
      %v1260 = vpop.f32.mrf.mxu0
      %v1261 = vadd.f32 0.0, %v1260
      %v1262 = vpop.f32.mrf.mxu0
      %v1263 = vadd.f32 0.0, %v1262
      %1264 = vmatmul.bf16.gmra.mxu0 %v1184
      %v1265 = vpop.f32.mrf.mxu0
      %v1266 = vadd.f32 0.0, %v1265
      %v1267 = vpop.f32.mrf.mxu0
      %v1268 = vadd.f32 0.0, %v1267
      %1269 = vmatmul.bf16.gmra.mxu0 %v1187
      %v1270 = vpop.f32.mrf.mxu0
      %v1271 = vadd.f32 0.0, %v1270
      %v1272 = vpop.f32.mrf.mxu0
      %v1273 = vadd.f32 0.0, %v1272
      %1274 = vmatmul.bf16.gmra.mxu0 %v1190
      %v1275 = vpop.f32.mrf.mxu0
      %v1276 = vadd.f32 0.0, %v1275
      %v1277 = vpop.f32.mrf.mxu0
      %v1278 = vadd.f32 0.0, %v1277
      %1279 = vmatmul.bf16.gmra.mxu0 %v1193
      %v1280 = vpop.f32.mrf.mxu0
      %v1281 = vadd.f32 0.0, %v1280
      %v1282 = vpop.f32.mrf.mxu0
      %v1283 = vadd.f32 0.0, %v1282
      %1284 = vmatmul.bf16.gmra.mxu0 %v1196
      %v1285 = vpop.f32.mrf.mxu0
      %v1286 = vadd.f32 0.0, %v1285
      %v1287 = vpop.f32.mrf.mxu0
      %v1288 = vadd.f32 0.0, %v1287
      %1289 = vmatmul.bf16.gmra.mxu0 %v1199
      %v1290 = vpop.f32.mrf.mxu0
      %v1291 = vadd.f32 0.0, %v1290
      %v1292 = vpop.f32.mrf.mxu0
      %v1293 = vadd.f32 0.0, %v1292
      %1294 = vmatmul.bf16.gmra.mxu0 %v1202
      %v1295 = vpop.f32.mrf.mxu0
      %v1296 = vadd.f32 0.0, %v1295
      %v1297 = vpop.f32.mrf.mxu0
      %v1298 = vadd.f32 0.0, %v1297
      %1299 = vmatmul.bf16.gmra.mxu0 %v1205
      %v1300 = vpop.f32.mrf.mxu0
      %v1301 = vadd.f32 0.0, %v1300
      %v1302 = vpop.f32.mrf.mxu0
      %v1303 = vadd.f32 0.0, %v1302
      %1304 = vmatmul.bf16.gmra.mxu0 %v1208
      %v1305 = vpop.f32.mrf.mxu0
      %v1306 = vadd.f32 0.0, %v1305
      %v1307 = vpop.f32.mrf.mxu0
      %v1308 = vadd.f32 0.0, %v1307
      %1309 = vmatmul.bf16.gmra.mxu0 %v1211
      %v1310 = vpop.f32.mrf.mxu0
      %v1311 = vadd.f32 0.0, %v1310
      %v1312 = vpop.f32.mrf.mxu0
      %v1313 = vadd.f32 0.0, %v1312
      %1314 = vdwg.mxu0
      %v1315 = vadd.f32 %v1067, %v1226
      %v1316 = vadd.f32 %v1068, %v1228
      %v1317 = vadd.f32 %v1069, %v1231
      %v1318 = vadd.f32 %v1070, %v1233
      %v1319 = vadd.f32 %v1071, %v1236
      %v1320 = vadd.f32 %v1072, %v1238
      %v1321 = vadd.f32 %v1073, %v1241
      %v1322 = vadd.f32 %v1074, %v1243
      %v1323 = vadd.f32 %v1075, %v1246
      %v1324 = vadd.f32 %v1076, %v1248
      %v1325 = vadd.f32 %v1077, %v1251
      %v1326 = vadd.f32 %v1078, %v1253
      %v1327 = vadd.f32 %v1079, %v1256
      %v1328 = vadd.f32 %v1080, %v1258
      %v1329 = vadd.f32 %v1081, %v1261
      %v1330 = vadd.f32 %v1082, %v1263
      %v1331 = vadd.f32 %v1083, %v1266
      %v1332 = vadd.f32 %v1084, %v1268
      %v1333 = vadd.f32 %v1085, %v1271
      %v1334 = vadd.f32 %v1086, %v1273
      %v1335 = vadd.f32 %v1087, %v1276
      %v1336 = vadd.f32 %v1088, %v1278
      %v1337 = vadd.f32 %v1089, %v1281
      %v1338 = vadd.f32 %v1090, %v1283
      %v1339 = vadd.f32 %v1091, %v1286
      %v1340 = vadd.f32 %v1092, %v1288
      %v1341 = vadd.f32 %v1093, %v1291
      %v1342 = vadd.f32 %v1094, %v1293
      %v1343 = vadd.f32 %v1095, %v1296
      %v1344 = vadd.f32 %v1096, %v1298
      %v1345 = vadd.f32 %v1097, %v1301
      %v1346 = vadd.f32 %v1098, %v1303
      %v1347 = vadd.f32 %v1099, %v1306
      %v1348 = vadd.f32 %v1100, %v1308
      %v1349 = vadd.f32 %v1101, %v1311
      %v1350 = vadd.f32 %v1102, %v1313
      %v1351 = vld [vmem:[%s168 + $0x14] sm:$0xff]
      %v1352 = vld [vmem:[%s168 + $0x1c] sm:$0xff]
      %v1353 = vld [vmem:[%s168 + $0x24] sm:$0xff]
      %v1354 = vld [vmem:[%s168 + $0x2c] sm:$0xff]
      %v1355 = vld [vmem:[%s168 + $0x34] sm:$0xff]
      %v1356 = vld [vmem:[%s168 + $0x3c] sm:$0xff]
      %v1357 = vld [vmem:[%s168 + $0x44] sm:$0xff]
      %v1358 = vld [vmem:[%s168 + $0x4c] sm:$0xff]
      %v1359 = vld [vmem:[%s168 + $0x54] sm:$0xff]
      %v1360 = vld [vmem:[%s168 + $0x5c] sm:$0xff]
      %v1361 = vld [vmem:[%s168 + $0x64] sm:$0xff]
      %v1362 = vld [vmem:[%s168 + $0x6c] sm:$0xff]
      %v1363 = vld [vmem:[%s168 + $0x74] sm:$0xff]
      %v1364 = vld [vmem:[%s168 + $0x7c] sm:$0xff]
      %v1365 = vld [vmem:[%s168 + $0x84] sm:$0xff]
      %v1366 = vld [vmem:[%s168 + $0x8c] sm:$0xff]
      %v1367 = vld [vmem:[%s168 + $0x94] sm:$0xff]
      %v1368 = vld [vmem:[%s168 + $0x9c] sm:$0xff]
      %v1369 = vld [vmem:[%s168 + $0xa4] sm:$0xff]
      %v1370 = vld [vmem:[%s168 + $0xac] sm:$0xff]
      %v1371 = vld [vmem:[%s168 + $0xb4] sm:$0xff]
      %v1372 = vld [vmem:[%s168 + $0xbc] sm:$0xff]
      %v1373 = vld [vmem:[%s168 + $0xc4] sm:$0xff]
      %v1374 = vld [vmem:[%s168 + $0xcc] sm:$0xff]
      %v1375 = vld [vmem:[%s168 + $0xd4] sm:$0xff]
      %v1376 = vld [vmem:[%s168 + $0xdc] sm:$0xff]
      %v1377 = vld [vmem:[%s168 + $0xe4] sm:$0xff]
      %v1378 = vld [vmem:[%s168 + $0xec] sm:$0xff]
      %v1379 = vld [vmem:[%s168 + $0xf4] sm:$0xff]
      %v1380 = vld [vmem:[%s168 + $0xfc] sm:$0xff]
      %v1381 = vld [vmem:[%s168 + $0x104] sm:$0xff]
      %v1382 = vld [vmem:[%s168 + $0x10c] sm:$0xff]
      %v1383 = vld [vmem:[%s168 + $0x114] sm:$0xff]
      %v1384 = vld [vmem:[%s168 + $0x11c] sm:$0xff]
      %v1385 = vld [vmem:[%s168 + $0x124] sm:$0xff]
      %v1386 = vld [vmem:[%s168 + $0x12c] sm:$0xff]
      %v1387 = vpack.c.bf16 %v1352, %v1351
      %v1388 = vpack.c.bf16 %v1354, %v1353
      %v1389 = vpack.c.bf16 %v1356, %v1355
      %v1390 = vpack.c.bf16 %v1358, %v1357
      %v1391 = vpack.c.bf16 %v1360, %v1359
      %v1392 = vpack.c.bf16 %v1362, %v1361
      %v1393 = vpack.c.bf16 %v1364, %v1363
      %v1394 = vpack.c.bf16 %v1366, %v1365
      %v1395 = vpack.c.bf16 %v1368, %v1367
      %v1396 = vpack.c.bf16 %v1370, %v1369
      %v1397 = vpack.c.bf16 %v1372, %v1371
      %v1398 = vpack.c.bf16 %v1374, %v1373
      %v1399 = vpack.c.bf16 %v1376, %v1375
      %v1400 = vpack.c.bf16 %v1378, %v1377
      %v1401 = vpack.c.bf16 %v1380, %v1379
      %v1402 = vpack.c.bf16 %v1382, %v1381
      %v1403 = vpack.c.bf16 %v1384, %v1383
      %v1404 = vpack.c.bf16 %v1386, %v1385
      %s1405 = scalar_lea.vmem %s172, 20
      %v1406 = vld [vmem:[%s1405] sm:$0xf]
      %v1408 = vsel %vm293, %v1387, 0
      %v1411 = vsel %vm293, %v1388, 0
      %v1414 = vsel %vm293, %v1389, 0
      %v1417 = vsel %vm293, %v1390, 0
      %v1420 = vsel %vm293, %v1391, 0
      %v1423 = vsel %vm293, %v1392, 0
      %v1426 = vsel %vm293, %v1393, 0
      %v1429 = vsel %vm293, %v1394, 0
      %v1432 = vsel %vm293, %v1395, 0
      %v1435 = vsel %vm293, %v1396, 0
      %v1438 = vsel %vm293, %v1397, 0
      %v1441 = vsel %vm293, %v1398, 0
      %v1444 = vsel %vm293, %v1399, 0
      %v1447 = vsel %vm293, %v1400, 0
      %v1450 = vsel %vm293, %v1401, 0
      %v1453 = vsel %vm293, %v1402, 0
      %v1456 = vsel %vm293, %v1403, 0
      %v1459 = vsel %vm293, %v1404, 0
      %v1462 = vsel %vm348, %v1406, 0
      %1464 = vmatpush.bf16.msra.mxu0 0
      %1465 = vmatpush.bf16.msra.mxu0 0
      %1466 = vmatpush.bf16.msra.mxu0 0
      %1467 = vmatpush.bf16.msra.mxu0 0
      %1468 = vmatpush.bf16.msra.mxu0 0
      %1469 = vmatpush.bf16.msra.mxu0 0
      %1470 = vmatpush.bf16.msra.mxu0 0
      %1471 = vmatpush.bf16.msra.mxu0 %v1462
      %1472 = vmatmul.bf16.gmra.mxu0 %v1408
      %v1473 = vpop.f32.mrf.mxu0
      %v1474 = vadd.f32 0.0, %v1473
      %v1475 = vpop.f32.mrf.mxu0
      %v1476 = vadd.f32 0.0, %v1475
      %1477 = vmatmul.bf16.gmra.mxu0 %v1411
      %v1478 = vpop.f32.mrf.mxu0
      %v1479 = vadd.f32 0.0, %v1478
      %v1480 = vpop.f32.mrf.mxu0
      %v1481 = vadd.f32 0.0, %v1480
      %1482 = vmatmul.bf16.gmra.mxu0 %v1414
      %v1483 = vpop.f32.mrf.mxu0
      %v1484 = vadd.f32 0.0, %v1483
      %v1485 = vpop.f32.mrf.mxu0
      %v1486 = vadd.f32 0.0, %v1485
      %1487 = vmatmul.bf16.gmra.mxu0 %v1417
      %v1488 = vpop.f32.mrf.mxu0
      %v1489 = vadd.f32 0.0, %v1488
      %v1490 = vpop.f32.mrf.mxu0
      %v1491 = vadd.f32 0.0, %v1490
      %1492 = vmatmul.bf16.gmra.mxu0 %v1420
      %v1493 = vpop.f32.mrf.mxu0
      %v1494 = vadd.f32 0.0, %v1493
      %v1495 = vpop.f32.mrf.mxu0
      %v1496 = vadd.f32 0.0, %v1495
      %1497 = vmatmul.bf16.gmra.mxu0 %v1423
      %v1498 = vpop.f32.mrf.mxu0
      %v1499 = vadd.f32 0.0, %v1498
      %v1500 = vpop.f32.mrf.mxu0
      %v1501 = vadd.f32 0.0, %v1500
      %1502 = vmatmul.bf16.gmra.mxu0 %v1426
      %v1503 = vpop.f32.mrf.mxu0
      %v1504 = vadd.f32 0.0, %v1503
      %v1505 = vpop.f32.mrf.mxu0
      %v1506 = vadd.f32 0.0, %v1505
      %1507 = vmatmul.bf16.gmra.mxu0 %v1429
      %v1508 = vpop.f32.mrf.mxu0
      %v1509 = vadd.f32 0.0, %v1508
      %v1510 = vpop.f32.mrf.mxu0
      %v1511 = vadd.f32 0.0, %v1510
      %1512 = vmatmul.bf16.gmra.mxu0 %v1432
      %v1513 = vpop.f32.mrf.mxu0
      %v1514 = vadd.f32 0.0, %v1513
      %v1515 = vpop.f32.mrf.mxu0
      %v1516 = vadd.f32 0.0, %v1515
      %1517 = vmatmul.bf16.gmra.mxu0 %v1435
      %v1518 = vpop.f32.mrf.mxu0
      %v1519 = vadd.f32 0.0, %v1518
      %v1520 = vpop.f32.mrf.mxu0
      %v1521 = vadd.f32 0.0, %v1520
      %1522 = vmatmul.bf16.gmra.mxu0 %v1438
      %v1523 = vpop.f32.mrf.mxu0
      %v1524 = vadd.f32 0.0, %v1523
      %v1525 = vpop.f32.mrf.mxu0
      %v1526 = vadd.f32 0.0, %v1525
      %1527 = vmatmul.bf16.gmra.mxu0 %v1441
      %v1528 = vpop.f32.mrf.mxu0
      %v1529 = vadd.f32 0.0, %v1528
      %v1530 = vpop.f32.mrf.mxu0
      %v1531 = vadd.f32 0.0, %v1530
      %1532 = vmatmul.bf16.gmra.mxu0 %v1444
      %v1533 = vpop.f32.mrf.mxu0
      %v1534 = vadd.f32 0.0, %v1533
      %v1535 = vpop.f32.mrf.mxu0
      %v1536 = vadd.f32 0.0, %v1535
      %1537 = vmatmul.bf16.gmra.mxu0 %v1447
      %v1538 = vpop.f32.mrf.mxu0
      %v1539 = vadd.f32 0.0, %v1538
      %v1540 = vpop.f32.mrf.mxu0
      %v1541 = vadd.f32 0.0, %v1540
      %1542 = vmatmul.bf16.gmra.mxu0 %v1450
      %v1543 = vpop.f32.mrf.mxu0
      %v1544 = vadd.f32 0.0, %v1543
      %v1545 = vpop.f32.mrf.mxu0
      %v1546 = vadd.f32 0.0, %v1545
      %1547 = vmatmul.bf16.gmra.mxu0 %v1453
      %v1548 = vpop.f32.mrf.mxu0
      %v1549 = vadd.f32 0.0, %v1548
      %v1550 = vpop.f32.mrf.mxu0
      %v1551 = vadd.f32 0.0, %v1550
      %1552 = vmatmul.bf16.gmra.mxu0 %v1456
      %v1553 = vpop.f32.mrf.mxu0
      %v1554 = vadd.f32 0.0, %v1553
      %v1555 = vpop.f32.mrf.mxu0
      %v1556 = vadd.f32 0.0, %v1555
      %1557 = vmatmul.bf16.gmra.mxu0 %v1459
      %v1558 = vpop.f32.mrf.mxu0
      %v1559 = vadd.f32 0.0, %v1558
      %v1560 = vpop.f32.mrf.mxu0
      %v1561 = vadd.f32 0.0, %v1560
      %1562 = vdwg.mxu0
      %v1563 = vadd.f32 %v1315, %v1474
      %v1564 = vadd.f32 %v1316, %v1476
      %v1565 = vadd.f32 %v1317, %v1479
      %v1566 = vadd.f32 %v1318, %v1481
      %v1567 = vadd.f32 %v1319, %v1484
      %v1568 = vadd.f32 %v1320, %v1486
      %v1569 = vadd.f32 %v1321, %v1489
      %v1570 = vadd.f32 %v1322, %v1491
      %v1571 = vadd.f32 %v1323, %v1494
      %v1572 = vadd.f32 %v1324, %v1496
      %v1573 = vadd.f32 %v1325, %v1499
      %v1574 = vadd.f32 %v1326, %v1501
      %v1575 = vadd.f32 %v1327, %v1504
      %v1576 = vadd.f32 %v1328, %v1506
      %v1577 = vadd.f32 %v1329, %v1509
      %v1578 = vadd.f32 %v1330, %v1511
      %v1579 = vadd.f32 %v1331, %v1514
      %v1580 = vadd.f32 %v1332, %v1516
      %v1581 = vadd.f32 %v1333, %v1519
      %v1582 = vadd.f32 %v1334, %v1521
      %v1583 = vadd.f32 %v1335, %v1524
      %v1584 = vadd.f32 %v1336, %v1526
      %v1585 = vadd.f32 %v1337, %v1529
      %v1586 = vadd.f32 %v1338, %v1531
      %v1587 = vadd.f32 %v1339, %v1534
      %v1588 = vadd.f32 %v1340, %v1536
      %v1589 = vadd.f32 %v1341, %v1539
      %v1590 = vadd.f32 %v1342, %v1541
      %v1591 = vadd.f32 %v1343, %v1544
      %v1592 = vadd.f32 %v1344, %v1546
      %v1593 = vadd.f32 %v1345, %v1549
      %v1594 = vadd.f32 %v1346, %v1551
      %v1595 = vadd.f32 %v1347, %v1554
      %v1596 = vadd.f32 %v1348, %v1556
      %v1597 = vadd.f32 %v1349, %v1559
      %v1598 = vadd.f32 %v1350, %v1561
      %v1599 = vld [vmem:[%s168 + $0x24] sm:$0xff]
      %v1600 = vld [vmem:[%s168 + $0x2c] sm:$0xff]
      %v1601 = vld [vmem:[%s168 + $0x34] sm:$0xff]
      %v1602 = vld [vmem:[%s168 + $0x3c] sm:$0xff]
      %v1603 = vld [vmem:[%s168 + $0x44] sm:$0xff]
      %v1604 = vld [vmem:[%s168 + $0x4c] sm:$0xff]
      %v1605 = vld [vmem:[%s168 + $0x54] sm:$0xff]
      %v1606 = vld [vmem:[%s168 + $0x5c] sm:$0xff]
      %v1607 = vld [vmem:[%s168 + $0x64] sm:$0xff]
      %v1608 = vld [vmem:[%s168 + $0x6c] sm:$0xff]
      %v1609 = vld [vmem:[%s168 + $0x74] sm:$0xff]
      %v1610 = vld [vmem:[%s168 + $0x7c] sm:$0xff]
      %v1611 = vld [vmem:[%s168 + $0x84] sm:$0xff]
      %v1612 = vld [vmem:[%s168 + $0x8c] sm:$0xff]
      %v1613 = vld [vmem:[%s168 + $0x94] sm:$0xff]
      %v1614 = vld [vmem:[%s168 + $0x9c] sm:$0xff]
      %v1615 = vld [vmem:[%s168 + $0xa4] sm:$0xff]
      %v1616 = vld [vmem:[%s168 + $0xac] sm:$0xff]
      %v1617 = vld [vmem:[%s168 + $0xb4] sm:$0xff]
      %v1618 = vld [vmem:[%s168 + $0xbc] sm:$0xff]
      %v1619 = vld [vmem:[%s168 + $0xc4] sm:$0xff]
      %v1620 = vld [vmem:[%s168 + $0xcc] sm:$0xff]
      %v1621 = vld [vmem:[%s168 + $0xd4] sm:$0xff]
      %v1622 = vld [vmem:[%s168 + $0xdc] sm:$0xff]
      %v1623 = vld [vmem:[%s168 + $0xe4] sm:$0xff]
      %v1624 = vld [vmem:[%s168 + $0xec] sm:$0xff]
      %v1625 = vld [vmem:[%s168 + $0xf4] sm:$0xff]
      %v1626 = vld [vmem:[%s168 + $0xfc] sm:$0xff]
      %v1627 = vld [vmem:[%s168 + $0x104] sm:$0xff]
      %v1628 = vld [vmem:[%s168 + $0x10c] sm:$0xff]
      %v1629 = vld [vmem:[%s168 + $0x114] sm:$0xff]
      %v1630 = vld [vmem:[%s168 + $0x11c] sm:$0xff]
      %v1631 = vld [vmem:[%s168 + $0x124] sm:$0xff]
      %v1632 = vld [vmem:[%s168 + $0x12c] sm:$0xff]
      %v1633 = vld [vmem:[%s168 + $0x134] sm:$0xff]
      %v1634 = vld [vmem:[%s168 + $0x13c] sm:$0xff]
      %v1635 = vpack.c.bf16 %v1600, %v1599
      %v1636 = vpack.c.bf16 %v1602, %v1601
      %v1637 = vpack.c.bf16 %v1604, %v1603
      %v1638 = vpack.c.bf16 %v1606, %v1605
      %v1639 = vpack.c.bf16 %v1608, %v1607
      %v1640 = vpack.c.bf16 %v1610, %v1609
      %v1641 = vpack.c.bf16 %v1612, %v1611
      %v1642 = vpack.c.bf16 %v1614, %v1613
      %v1643 = vpack.c.bf16 %v1616, %v1615
      %v1644 = vpack.c.bf16 %v1618, %v1617
      %v1645 = vpack.c.bf16 %v1620, %v1619
      %v1646 = vpack.c.bf16 %v1622, %v1621
      %v1647 = vpack.c.bf16 %v1624, %v1623
      %v1648 = vpack.c.bf16 %v1626, %v1625
      %v1649 = vpack.c.bf16 %v1628, %v1627
      %v1650 = vpack.c.bf16 %v1630, %v1629
      %v1651 = vpack.c.bf16 %v1632, %v1631
      %v1652 = vpack.c.bf16 %v1634, %v1633
      %s1653 = scalar_lea.vmem %s172, 24
      %v1654 = vld [vmem:[%s1653] sm:$0xf]
      %v1656 = vsel %vm293, %v1635, 0
      %v1659 = vsel %vm293, %v1636, 0
      %v1662 = vsel %vm293, %v1637, 0
      %v1665 = vsel %vm293, %v1638, 0
      %v1668 = vsel %vm293, %v1639, 0
      %v1671 = vsel %vm293, %v1640, 0
      %v1674 = vsel %vm293, %v1641, 0
      %v1677 = vsel %vm293, %v1642, 0
      %v1680 = vsel %vm293, %v1643, 0
      %v1683 = vsel %vm293, %v1644, 0
      %v1686 = vsel %vm293, %v1645, 0
      %v1689 = vsel %vm293, %v1646, 0
      %v1692 = vsel %vm293, %v1647, 0
      %v1695 = vsel %vm293, %v1648, 0
      %v1698 = vsel %vm293, %v1649, 0
      %v1701 = vsel %vm293, %v1650, 0
      %v1704 = vsel %vm293, %v1651, 0
      %v1707 = vsel %vm293, %v1652, 0
      %v1710 = vsel %vm348, %v1654, 0
      %1712 = vmatpush.bf16.msra.mxu0 0
      %1713 = vmatpush.bf16.msra.mxu0 0
      %1714 = vmatpush.bf16.msra.mxu0 0
      %1715 = vmatpush.bf16.msra.mxu0 0
      %1716 = vmatpush.bf16.msra.mxu0 0
      %1717 = vmatpush.bf16.msra.mxu0 0
      %1718 = vmatpush.bf16.msra.mxu0 0
      %1719 = vmatpush.bf16.msra.mxu0 %v1710
      %1720 = vmatmul.bf16.gmra.mxu0 %v1656
      %v1721 = vpop.f32.mrf.mxu0
      %v1722 = vadd.f32 0.0, %v1721
      %v1723 = vpop.f32.mrf.mxu0
      %v1724 = vadd.f32 0.0, %v1723
      %1725 = vmatmul.bf16.gmra.mxu0 %v1659
      %v1726 = vpop.f32.mrf.mxu0
      %v1727 = vadd.f32 0.0, %v1726
      %v1728 = vpop.f32.mrf.mxu0
      %v1729 = vadd.f32 0.0, %v1728
      %1730 = vmatmul.bf16.gmra.mxu0 %v1662
      %v1731 = vpop.f32.mrf.mxu0
      %v1732 = vadd.f32 0.0, %v1731
      %v1733 = vpop.f32.mrf.mxu0
      %v1734 = vadd.f32 0.0, %v1733
      %1735 = vmatmul.bf16.gmra.mxu0 %v1665
      %v1736 = vpop.f32.mrf.mxu0
      %v1737 = vadd.f32 0.0, %v1736
      %v1738 = vpop.f32.mrf.mxu0
      %v1739 = vadd.f32 0.0, %v1738
      %1740 = vmatmul.bf16.gmra.mxu0 %v1668
      %v1741 = vpop.f32.mrf.mxu0
      %v1742 = vadd.f32 0.0, %v1741
      %v1743 = vpop.f32.mrf.mxu0
      %v1744 = vadd.f32 0.0, %v1743
      %1745 = vmatmul.bf16.gmra.mxu0 %v1671
      %v1746 = vpop.f32.mrf.mxu0
      %v1747 = vadd.f32 0.0, %v1746
      %v1748 = vpop.f32.mrf.mxu0
      %v1749 = vadd.f32 0.0, %v1748
      %1750 = vmatmul.bf16.gmra.mxu0 %v1674
      %v1751 = vpop.f32.mrf.mxu0
      %v1752 = vadd.f32 0.0, %v1751
      %v1753 = vpop.f32.mrf.mxu0
      %v1754 = vadd.f32 0.0, %v1753
      %1755 = vmatmul.bf16.gmra.mxu0 %v1677
      %v1756 = vpop.f32.mrf.mxu0
      %v1757 = vadd.f32 0.0, %v1756
      %v1758 = vpop.f32.mrf.mxu0
      %v1759 = vadd.f32 0.0, %v1758
      %1760 = vmatmul.bf16.gmra.mxu0 %v1680
      %v1761 = vpop.f32.mrf.mxu0
      %v1762 = vadd.f32 0.0, %v1761
      %v1763 = vpop.f32.mrf.mxu0
      %v1764 = vadd.f32 0.0, %v1763
      %1765 = vmatmul.bf16.gmra.mxu0 %v1683
      %v1766 = vpop.f32.mrf.mxu0
      %v1767 = vadd.f32 0.0, %v1766
      %v1768 = vpop.f32.mrf.mxu0
      %v1769 = vadd.f32 0.0, %v1768
      %1770 = vmatmul.bf16.gmra.mxu0 %v1686
      %v1771 = vpop.f32.mrf.mxu0
      %v1772 = vadd.f32 0.0, %v1771
      %v1773 = vpop.f32.mrf.mxu0
      %v1774 = vadd.f32 0.0, %v1773
      %1775 = vmatmul.bf16.gmra.mxu0 %v1689
      %v1776 = vpop.f32.mrf.mxu0
      %v1777 = vadd.f32 0.0, %v1776
      %v1778 = vpop.f32.mrf.mxu0
      %v1779 = vadd.f32 0.0, %v1778
      %1780 = vmatmul.bf16.gmra.mxu0 %v1692
      %v1781 = vpop.f32.mrf.mxu0
      %v1782 = vadd.f32 0.0, %v1781
      %v1783 = vpop.f32.mrf.mxu0
      %v1784 = vadd.f32 0.0, %v1783
      %1785 = vmatmul.bf16.gmra.mxu0 %v1695
      %v1786 = vpop.f32.mrf.mxu0
      %v1787 = vadd.f32 0.0, %v1786
      %v1788 = vpop.f32.mrf.mxu0
      %v1789 = vadd.f32 0.0, %v1788
      %1790 = vmatmul.bf16.gmra.mxu0 %v1698
      %v1791 = vpop.f32.mrf.mxu0
      %v1792 = vadd.f32 0.0, %v1791
      %v1793 = vpop.f32.mrf.mxu0
      %v1794 = vadd.f32 0.0, %v1793
      %1795 = vmatmul.bf16.gmra.mxu0 %v1701
      %v1796 = vpop.f32.mrf.mxu0
      %v1797 = vadd.f32 0.0, %v1796
      %v1798 = vpop.f32.mrf.mxu0
      %v1799 = vadd.f32 0.0, %v1798
      %1800 = vmatmul.bf16.gmra.mxu0 %v1704
      %v1801 = vpop.f32.mrf.mxu0
      %v1802 = vadd.f32 0.0, %v1801
      %v1803 = vpop.f32.mrf.mxu0
      %v1804 = vadd.f32 0.0, %v1803
      %1805 = vmatmul.bf16.gmra.mxu0 %v1707
      %v1806 = vpop.f32.mrf.mxu0
      %v1807 = vadd.f32 0.0, %v1806
      %v1808 = vpop.f32.mrf.mxu0
      %v1809 = vadd.f32 0.0, %v1808
      %1810 = vdwg.mxu0
      %v1811 = vadd.f32 %v1563, %v1722
      %v1812 = vadd.f32 %v1564, %v1724
      %v1813 = vadd.f32 %v1565, %v1727
      %v1814 = vadd.f32 %v1566, %v1729
      %v1815 = vadd.f32 %v1567, %v1732
      %v1816 = vadd.f32 %v1568, %v1734
      %v1817 = vadd.f32 %v1569, %v1737
      %v1818 = vadd.f32 %v1570, %v1739
      %v1819 = vadd.f32 %v1571, %v1742
      %v1820 = vadd.f32 %v1572, %v1744
      %v1821 = vadd.f32 %v1573, %v1747
      %v1822 = vadd.f32 %v1574, %v1749
      %v1823 = vadd.f32 %v1575, %v1752
      %v1824 = vadd.f32 %v1576, %v1754
      %v1825 = vadd.f32 %v1577, %v1757
      %v1826 = vadd.f32 %v1578, %v1759
      %v1827 = vadd.f32 %v1579, %v1762
      %v1828 = vadd.f32 %v1580, %v1764
      %v1829 = vadd.f32 %v1581, %v1767
      %v1830 = vadd.f32 %v1582, %v1769
      %v1831 = vadd.f32 %v1583, %v1772
      %v1832 = vadd.f32 %v1584, %v1774
      %v1833 = vadd.f32 %v1585, %v1777
      %v1834 = vadd.f32 %v1586, %v1779
      %v1835 = vadd.f32 %v1587, %v1782
      %v1836 = vadd.f32 %v1588, %v1784
      %v1837 = vadd.f32 %v1589, %v1787
      %v1838 = vadd.f32 %v1590, %v1789
      %v1839 = vadd.f32 %v1591, %v1792
      %v1840 = vadd.f32 %v1592, %v1794
      %v1841 = vadd.f32 %v1593, %v1797
      %v1842 = vadd.f32 %v1594, %v1799
      %v1843 = vadd.f32 %v1595, %v1802
      %v1844 = vadd.f32 %v1596, %v1804
      %v1845 = vadd.f32 %v1597, %v1807
      %v1846 = vadd.f32 %v1598, %v1809
      %v1847 = vld [vmem:[%s168 + $0x25] sm:$0xff]
      %v1848 = vld [vmem:[%s168 + $0x2d] sm:$0xff]
      %v1849 = vld [vmem:[%s168 + $0x35] sm:$0xff]
      %v1850 = vld [vmem:[%s168 + $0x3d] sm:$0xff]
      %v1851 = vld [vmem:[%s168 + $0x45] sm:$0xff]
      %v1852 = vld [vmem:[%s168 + $0x4d] sm:$0xff]
      %v1853 = vld [vmem:[%s168 + $0x55] sm:$0xff]
      %v1854 = vld [vmem:[%s168 + $0x5d] sm:$0xff]
      %v1855 = vld [vmem:[%s168 + $0x65] sm:$0xff]
      %v1856 = vld [vmem:[%s168 + $0x6d] sm:$0xff]
      %v1857 = vld [vmem:[%s168 + $0x75] sm:$0xff]
      %v1858 = vld [vmem:[%s168 + $0x7d] sm:$0xff]
      %v1859 = vld [vmem:[%s168 + $0x85] sm:$0xff]
      %v1860 = vld [vmem:[%s168 + $0x8d] sm:$0xff]
      %v1861 = vld [vmem:[%s168 + $0x95] sm:$0xff]
      %v1862 = vld [vmem:[%s168 + $0x9d] sm:$0xff]
      %v1863 = vld [vmem:[%s168 + $0xa5] sm:$0xff]
      %v1864 = vld [vmem:[%s168 + $0xad] sm:$0xff]
      %v1865 = vld [vmem:[%s168 + $0xb5] sm:$0xff]
      %v1866 = vld [vmem:[%s168 + $0xbd] sm:$0xff]
      %v1867 = vld [vmem:[%s168 + $0xc5] sm:$0xff]
      %v1868 = vld [vmem:[%s168 + $0xcd] sm:$0xff]
      %v1869 = vld [vmem:[%s168 + $0xd5] sm:$0xff]
      %v1870 = vld [vmem:[%s168 + $0xdd] sm:$0xff]
      %v1871 = vld [vmem:[%s168 + $0xe5] sm:$0xff]
      %v1872 = vld [vmem:[%s168 + $0xed] sm:$0xff]
      %v1873 = vld [vmem:[%s168 + $0xf5] sm:$0xff]
      %v1874 = vld [vmem:[%s168 + $0xfd] sm:$0xff]
      %v1875 = vld [vmem:[%s168 + $0x105] sm:$0xff]
      %v1876 = vld [vmem:[%s168 + $0x10d] sm:$0xff]
      %v1877 = vld [vmem:[%s168 + $0x115] sm:$0xff]
      %v1878 = vld [vmem:[%s168 + $0x11d] sm:$0xff]
      %v1879 = vld [vmem:[%s168 + $0x125] sm:$0xff]
      %v1880 = vld [vmem:[%s168 + $0x12d] sm:$0xff]
      %v1881 = vld [vmem:[%s168 + $0x135] sm:$0xff]
      %v1882 = vld [vmem:[%s168 + $0x13d] sm:$0xff]
      %v1883 = vpack.c.bf16 %v1848, %v1847
      %v1884 = vpack.c.bf16 %v1850, %v1849
      %v1885 = vpack.c.bf16 %v1852, %v1851
      %v1886 = vpack.c.bf16 %v1854, %v1853
      %v1887 = vpack.c.bf16 %v1856, %v1855
      %v1888 = vpack.c.bf16 %v1858, %v1857
      %v1889 = vpack.c.bf16 %v1860, %v1859
      %v1890 = vpack.c.bf16 %v1862, %v1861
      %v1891 = vpack.c.bf16 %v1864, %v1863
      %v1892 = vpack.c.bf16 %v1866, %v1865
      %v1893 = vpack.c.bf16 %v1868, %v1867
      %v1894 = vpack.c.bf16 %v1870, %v1869
      %v1895 = vpack.c.bf16 %v1872, %v1871
      %v1896 = vpack.c.bf16 %v1874, %v1873
      %v1897 = vpack.c.bf16 %v1876, %v1875
      %v1898 = vpack.c.bf16 %v1878, %v1877
      %v1899 = vpack.c.bf16 %v1880, %v1879
      %v1900 = vpack.c.bf16 %v1882, %v1881
      %s1901 = scalar_lea.vmem %s172, 28
      %v1902 = vld [vmem:[%s1901] sm:$0xf]
      %v1904 = vsel %vm293, %v1883, 0
      %v1907 = vsel %vm293, %v1884, 0
      %v1910 = vsel %vm293, %v1885, 0
      %v1913 = vsel %vm293, %v1886, 0
      %v1916 = vsel %vm293, %v1887, 0
      %v1919 = vsel %vm293, %v1888, 0
      %v1922 = vsel %vm293, %v1889, 0
      %v1925 = vsel %vm293, %v1890, 0
      %v1928 = vsel %vm293, %v1891, 0
      %v1931 = vsel %vm293, %v1892, 0
      %v1934 = vsel %vm293, %v1893, 0
      %v1937 = vsel %vm293, %v1894, 0
      %v1940 = vsel %vm293, %v1895, 0
      %v1943 = vsel %vm293, %v1896, 0
      %v1946 = vsel %vm293, %v1897, 0
      %v1949 = vsel %vm293, %v1898, 0
      %v1952 = vsel %vm293, %v1899, 0
      %v1955 = vsel %vm293, %v1900, 0
      %v1958 = vsel %vm348, %v1902, 0
      %1960 = vmatpush.bf16.msra.mxu0 0
      %1961 = vmatpush.bf16.msra.mxu0 0
      %1962 = vmatpush.bf16.msra.mxu0 0
      %1963 = vmatpush.bf16.msra.mxu0 0
      %1964 = vmatpush.bf16.msra.mxu0 0
      %1965 = vmatpush.bf16.msra.mxu0 0
      %1966 = vmatpush.bf16.msra.mxu0 0
      %1967 = vmatpush.bf16.msra.mxu0 %v1958
      %1968 = vmatmul.bf16.gmra.mxu0 %v1904
      %v1969 = vpop.f32.mrf.mxu0
      %v1970 = vadd.f32 0.0, %v1969
      %v1971 = vpop.f32.mrf.mxu0
      %v1972 = vadd.f32 0.0, %v1971
      %1973 = vmatmul.bf16.gmra.mxu0 %v1907
      %v1974 = vpop.f32.mrf.mxu0
      %v1975 = vadd.f32 0.0, %v1974
      %v1976 = vpop.f32.mrf.mxu0
      %v1977 = vadd.f32 0.0, %v1976
      %1978 = vmatmul.bf16.gmra.mxu0 %v1910
      %v1979 = vpop.f32.mrf.mxu0
      %v1980 = vadd.f32 0.0, %v1979
      %v1981 = vpop.f32.mrf.mxu0
      %v1982 = vadd.f32 0.0, %v1981
      %1983 = vmatmul.bf16.gmra.mxu0 %v1913
      %v1984 = vpop.f32.mrf.mxu0
      %v1985 = vadd.f32 0.0, %v1984
      %v1986 = vpop.f32.mrf.mxu0
      %v1987 = vadd.f32 0.0, %v1986
      %1988 = vmatmul.bf16.gmra.mxu0 %v1916
      %v1989 = vpop.f32.mrf.mxu0
      %v1990 = vadd.f32 0.0, %v1989
      %v1991 = vpop.f32.mrf.mxu0
      %v1992 = vadd.f32 0.0, %v1991
      %1993 = vmatmul.bf16.gmra.mxu0 %v1919
      %v1994 = vpop.f32.mrf.mxu0
      %v1995 = vadd.f32 0.0, %v1994
      %v1996 = vpop.f32.mrf.mxu0
      %v1997 = vadd.f32 0.0, %v1996
      %1998 = vmatmul.bf16.gmra.mxu0 %v1922
      %v1999 = vpop.f32.mrf.mxu0
      %v2000 = vadd.f32 0.0, %v1999
      %v2001 = vpop.f32.mrf.mxu0
      %v2002 = vadd.f32 0.0, %v2001
      %2003 = vmatmul.bf16.gmra.mxu0 %v1925
      %v2004 = vpop.f32.mrf.mxu0
      %v2005 = vadd.f32 0.0, %v2004
      %v2006 = vpop.f32.mrf.mxu0
      %v2007 = vadd.f32 0.0, %v2006
      %2008 = vmatmul.bf16.gmra.mxu0 %v1928
      %v2009 = vpop.f32.mrf.mxu0
      %v2010 = vadd.f32 0.0, %v2009
      %v2011 = vpop.f32.mrf.mxu0
      %v2012 = vadd.f32 0.0, %v2011
      %2013 = vmatmul.bf16.gmra.mxu0 %v1931
      %v2014 = vpop.f32.mrf.mxu0
      %v2015 = vadd.f32 0.0, %v2014
      %v2016 = vpop.f32.mrf.mxu0
      %v2017 = vadd.f32 0.0, %v2016
      %2018 = vmatmul.bf16.gmra.mxu0 %v1934
      %v2019 = vpop.f32.mrf.mxu0
      %v2020 = vadd.f32 0.0, %v2019
      %v2021 = vpop.f32.mrf.mxu0
      %v2022 = vadd.f32 0.0, %v2021
      %2023 = vmatmul.bf16.gmra.mxu0 %v1937
      %v2024 = vpop.f32.mrf.mxu0
      %v2025 = vadd.f32 0.0, %v2024
      %v2026 = vpop.f32.mrf.mxu0
      %v2027 = vadd.f32 0.0, %v2026
      %2028 = vmatmul.bf16.gmra.mxu0 %v1940
      %v2029 = vpop.f32.mrf.mxu0
      %v2030 = vadd.f32 0.0, %v2029
      %v2031 = vpop.f32.mrf.mxu0
      %v2032 = vadd.f32 0.0, %v2031
      %2033 = vmatmul.bf16.gmra.mxu0 %v1943
      %v2034 = vpop.f32.mrf.mxu0
      %v2035 = vadd.f32 0.0, %v2034
      %v2036 = vpop.f32.mrf.mxu0
      %v2037 = vadd.f32 0.0, %v2036
      %2038 = vmatmul.bf16.gmra.mxu0 %v1946
      %v2039 = vpop.f32.mrf.mxu0
      %v2040 = vadd.f32 0.0, %v2039
      %v2041 = vpop.f32.mrf.mxu0
      %v2042 = vadd.f32 0.0, %v2041
      %2043 = vmatmul.bf16.gmra.mxu0 %v1949
      %v2044 = vpop.f32.mrf.mxu0
      %v2045 = vadd.f32 0.0, %v2044
      %v2046 = vpop.f32.mrf.mxu0
      %v2047 = vadd.f32 0.0, %v2046
      %2048 = vmatmul.bf16.gmra.mxu0 %v1952
      %v2049 = vpop.f32.mrf.mxu0
      %v2050 = vadd.f32 0.0, %v2049
      %v2051 = vpop.f32.mrf.mxu0
      %v2052 = vadd.f32 0.0, %v2051
      %2053 = vmatmul.bf16.gmra.mxu0 %v1955
      %v2054 = vpop.f32.mrf.mxu0
      %v2055 = vadd.f32 0.0, %v2054
      %v2056 = vpop.f32.mrf.mxu0
      %v2057 = vadd.f32 0.0, %v2056
      %2058 = vdwg.mxu0
      %v2059 = vadd.f32 %v1811, %v1970
      %v2060 = vadd.f32 %v1812, %v1972
      %v2061 = vadd.f32 %v1813, %v1975
      %v2062 = vadd.f32 %v1814, %v1977
      %v2063 = vadd.f32 %v1815, %v1980
      %v2064 = vadd.f32 %v1816, %v1982
      %v2065 = vadd.f32 %v1817, %v1985
      %v2066 = vadd.f32 %v1818, %v1987
      %v2067 = vadd.f32 %v1819, %v1990
      %v2068 = vadd.f32 %v1820, %v1992
      %v2069 = vadd.f32 %v1821, %v1995
      %v2070 = vadd.f32 %v1822, %v1997
      %v2071 = vadd.f32 %v1823, %v2000
      %v2072 = vadd.f32 %v1824, %v2002
      %v2073 = vadd.f32 %v1825, %v2005
      %v2074 = vadd.f32 %v1826, %v2007
      %v2075 = vadd.f32 %v1827, %v2010
      %v2076 = vadd.f32 %v1828, %v2012
      %v2077 = vadd.f32 %v1829, %v2015
      %v2078 = vadd.f32 %v1830, %v2017
      %v2079 = vadd.f32 %v1831, %v2020
      %v2080 = vadd.f32 %v1832, %v2022
      %v2081 = vadd.f32 %v1833, %v2025
      %v2082 = vadd.f32 %v1834, %v2027
      %v2083 = vadd.f32 %v1835, %v2030
      %v2084 = vadd.f32 %v1836, %v2032
      %v2085 = vadd.f32 %v1837, %v2035
      %v2086 = vadd.f32 %v1838, %v2037
      %v2087 = vadd.f32 %v1839, %v2040
      %v2088 = vadd.f32 %v1840, %v2042
      %v2089 = vadd.f32 %v1841, %v2045
      %v2090 = vadd.f32 %v1842, %v2047
      %v2091 = vadd.f32 %v1843, %v2050
      %v2092 = vadd.f32 %v1844, %v2052
      %v2093 = vadd.f32 %v1845, %v2055
      %v2094 = vadd.f32 %v1846, %v2057
      %v2095 = vld [vmem:[%s168 + $0x26] sm:$0xff]
      %v2096 = vld [vmem:[%s168 + $0x2e] sm:$0xff]
      %v2097 = vld [vmem:[%s168 + $0x36] sm:$0xff]
      %v2098 = vld [vmem:[%s168 + $0x3e] sm:$0xff]
      %v2099 = vld [vmem:[%s168 + $0x46] sm:$0xff]
      %v2100 = vld [vmem:[%s168 + $0x4e] sm:$0xff]
      %v2101 = vld [vmem:[%s168 + $0x56] sm:$0xff]
      %v2102 = vld [vmem:[%s168 + $0x5e] sm:$0xff]
      %v2103 = vld [vmem:[%s168 + $0x66] sm:$0xff]
      %v2104 = vld [vmem:[%s168 + $0x6e] sm:$0xff]
      %v2105 = vld [vmem:[%s168 + $0x76] sm:$0xff]
      %v2106 = vld [vmem:[%s168 + $0x7e] sm:$0xff]
      %v2107 = vld [vmem:[%s168 + $0x86] sm:$0xff]
      %v2108 = vld [vmem:[%s168 + $0x8e] sm:$0xff]
      %v2109 = vld [vmem:[%s168 + $0x96] sm:$0xff]
      %v2110 = vld [vmem:[%s168 + $0x9e] sm:$0xff]
      %v2111 = vld [vmem:[%s168 + $0xa6] sm:$0xff]
      %v2112 = vld [vmem:[%s168 + $0xae] sm:$0xff]
      %v2113 = vld [vmem:[%s168 + $0xb6] sm:$0xff]
      %v2114 = vld [vmem:[%s168 + $0xbe] sm:$0xff]
      %v2115 = vld [vmem:[%s168 + $0xc6] sm:$0xff]
      %v2116 = vld [vmem:[%s168 + $0xce] sm:$0xff]
      %v2117 = vld [vmem:[%s168 + $0xd6] sm:$0xff]
      %v2118 = vld [vmem:[%s168 + $0xde] sm:$0xff]
      %v2119 = vld [vmem:[%s168 + $0xe6] sm:$0xff]
      %v2120 = vld [vmem:[%s168 + $0xee] sm:$0xff]
      %v2121 = vld [vmem:[%s168 + $0xf6] sm:$0xff]
      %v2122 = vld [vmem:[%s168 + $0xfe] sm:$0xff]
      %v2123 = vld [vmem:[%s168 + $0x106] sm:$0xff]
      %v2124 = vld [vmem:[%s168 + $0x10e] sm:$0xff]
      %v2125 = vld [vmem:[%s168 + $0x116] sm:$0xff]
      %v2126 = vld [vmem:[%s168 + $0x11e] sm:$0xff]
      %v2127 = vld [vmem:[%s168 + $0x126] sm:$0xff]
      %v2128 = vld [vmem:[%s168 + $0x12e] sm:$0xff]
      %v2129 = vld [vmem:[%s168 + $0x136] sm:$0xff]
      %v2130 = vld [vmem:[%s168 + $0x13e] sm:$0xff]
      %v2131 = vpack.c.bf16 %v2096, %v2095
      %v2132 = vpack.c.bf16 %v2098, %v2097
      %v2133 = vpack.c.bf16 %v2100, %v2099
      %v2134 = vpack.c.bf16 %v2102, %v2101
      %v2135 = vpack.c.bf16 %v2104, %v2103
      %v2136 = vpack.c.bf16 %v2106, %v2105
      %v2137 = vpack.c.bf16 %v2108, %v2107
      %v2138 = vpack.c.bf16 %v2110, %v2109
      %v2139 = vpack.c.bf16 %v2112, %v2111
      %v2140 = vpack.c.bf16 %v2114, %v2113
      %v2141 = vpack.c.bf16 %v2116, %v2115
      %v2142 = vpack.c.bf16 %v2118, %v2117
      %v2143 = vpack.c.bf16 %v2120, %v2119
      %v2144 = vpack.c.bf16 %v2122, %v2121
      %v2145 = vpack.c.bf16 %v2124, %v2123
      %v2146 = vpack.c.bf16 %v2126, %v2125
      %v2147 = vpack.c.bf16 %v2128, %v2127
      %v2148 = vpack.c.bf16 %v2130, %v2129
      %s2149 = scalar_lea.vmem %s172, 32
      %v2150 = vld [vmem:[%s2149] sm:$0xf]
      %v2152 = vsel %vm293, %v2131, 0
      %v2155 = vsel %vm293, %v2132, 0
      %v2158 = vsel %vm293, %v2133, 0
      %v2161 = vsel %vm293, %v2134, 0
      %v2164 = vsel %vm293, %v2135, 0
      %v2167 = vsel %vm293, %v2136, 0
      %v2170 = vsel %vm293, %v2137, 0
      %v2173 = vsel %vm293, %v2138, 0
      %v2176 = vsel %vm293, %v2139, 0
      %v2179 = vsel %vm293, %v2140, 0
      %v2182 = vsel %vm293, %v2141, 0
      %v2185 = vsel %vm293, %v2142, 0
      %v2188 = vsel %vm293, %v2143, 0
      %v2191 = vsel %vm293, %v2144, 0
      %v2194 = vsel %vm293, %v2145, 0
      %v2197 = vsel %vm293, %v2146, 0
      %v2200 = vsel %vm293, %v2147, 0
      %v2203 = vsel %vm293, %v2148, 0
      %v2206 = vsel %vm348, %v2150, 0
      %2208 = vmatpush.bf16.msra.mxu0 0
      %2209 = vmatpush.bf16.msra.mxu0 0
      %2210 = vmatpush.bf16.msra.mxu0 0
      %2211 = vmatpush.bf16.msra.mxu0 0
      %2212 = vmatpush.bf16.msra.mxu0 0
      %2213 = vmatpush.bf16.msra.mxu0 0
      %2214 = vmatpush.bf16.msra.mxu0 0
      %2215 = vmatpush.bf16.msra.mxu0 %v2206
      %2216 = vmatmul.bf16.gmra.mxu0 %v2152
      %v2217 = vpop.f32.mrf.mxu0
      %v2218 = vadd.f32 0.0, %v2217
      %v2219 = vpop.f32.mrf.mxu0
      %v2220 = vadd.f32 0.0, %v2219
      %2221 = vmatmul.bf16.gmra.mxu0 %v2155
      %v2222 = vpop.f32.mrf.mxu0
      %v2223 = vadd.f32 0.0, %v2222
      %v2224 = vpop.f32.mrf.mxu0
      %v2225 = vadd.f32 0.0, %v2224
      %2226 = vmatmul.bf16.gmra.mxu0 %v2158
      %v2227 = vpop.f32.mrf.mxu0
      %v2228 = vadd.f32 0.0, %v2227
      %v2229 = vpop.f32.mrf.mxu0
      %v2230 = vadd.f32 0.0, %v2229
      %2231 = vmatmul.bf16.gmra.mxu0 %v2161
      %v2232 = vpop.f32.mrf.mxu0
      %v2233 = vadd.f32 0.0, %v2232
      %v2234 = vpop.f32.mrf.mxu0
      %v2235 = vadd.f32 0.0, %v2234
      %2236 = vmatmul.bf16.gmra.mxu0 %v2164
      %v2237 = vpop.f32.mrf.mxu0
      %v2238 = vadd.f32 0.0, %v2237
      %v2239 = vpop.f32.mrf.mxu0
      %v2240 = vadd.f32 0.0, %v2239
      %2241 = vmatmul.bf16.gmra.mxu0 %v2167
      %v2242 = vpop.f32.mrf.mxu0
      %v2243 = vadd.f32 0.0, %v2242
      %v2244 = vpop.f32.mrf.mxu0
      %v2245 = vadd.f32 0.0, %v2244
      %2246 = vmatmul.bf16.gmra.mxu0 %v2170
      %v2247 = vpop.f32.mrf.mxu0
      %v2248 = vadd.f32 0.0, %v2247
      %v2249 = vpop.f32.mrf.mxu0
      %v2250 = vadd.f32 0.0, %v2249
      %2251 = vmatmul.bf16.gmra.mxu0 %v2173
      %v2252 = vpop.f32.mrf.mxu0
      %v2253 = vadd.f32 0.0, %v2252
      %v2254 = vpop.f32.mrf.mxu0
      %v2255 = vadd.f32 0.0, %v2254
      %2256 = vmatmul.bf16.gmra.mxu0 %v2176
      %v2257 = vpop.f32.mrf.mxu0
      %v2258 = vadd.f32 0.0, %v2257
      %v2259 = vpop.f32.mrf.mxu0
      %v2260 = vadd.f32 0.0, %v2259
      %2261 = vmatmul.bf16.gmra.mxu0 %v2179
      %v2262 = vpop.f32.mrf.mxu0
      %v2263 = vadd.f32 0.0, %v2262
      %v2264 = vpop.f32.mrf.mxu0
      %v2265 = vadd.f32 0.0, %v2264
      %2266 = vmatmul.bf16.gmra.mxu0 %v2182
      %v2267 = vpop.f32.mrf.mxu0
      %v2268 = vadd.f32 0.0, %v2267
      %v2269 = vpop.f32.mrf.mxu0
      %v2270 = vadd.f32 0.0, %v2269
      %2271 = vmatmul.bf16.gmra.mxu0 %v2185
      %v2272 = vpop.f32.mrf.mxu0
      %v2273 = vadd.f32 0.0, %v2272
      %v2274 = vpop.f32.mrf.mxu0
      %v2275 = vadd.f32 0.0, %v2274
      %2276 = vmatmul.bf16.gmra.mxu0 %v2188
      %v2277 = vpop.f32.mrf.mxu0
      %v2278 = vadd.f32 0.0, %v2277
      %v2279 = vpop.f32.mrf.mxu0
      %v2280 = vadd.f32 0.0, %v2279
      %2281 = vmatmul.bf16.gmra.mxu0 %v2191
      %v2282 = vpop.f32.mrf.mxu0
      %v2283 = vadd.f32 0.0, %v2282
      %v2284 = vpop.f32.mrf.mxu0
      %v2285 = vadd.f32 0.0, %v2284
      %2286 = vmatmul.bf16.gmra.mxu0 %v2194
      %v2287 = vpop.f32.mrf.mxu0
      %v2288 = vadd.f32 0.0, %v2287
      %v2289 = vpop.f32.mrf.mxu0
      %v2290 = vadd.f32 0.0, %v2289
      %2291 = vmatmul.bf16.gmra.mxu0 %v2197
      %v2292 = vpop.f32.mrf.mxu0
      %v2293 = vadd.f32 0.0, %v2292
      %v2294 = vpop.f32.mrf.mxu0
      %v2295 = vadd.f32 0.0, %v2294
      %2296 = vmatmul.bf16.gmra.mxu0 %v2200
      %v2297 = vpop.f32.mrf.mxu0
      %v2298 = vadd.f32 0.0, %v2297
      %v2299 = vpop.f32.mrf.mxu0
      %v2300 = vadd.f32 0.0, %v2299
      %2301 = vmatmul.bf16.gmra.mxu0 %v2203
      %v2302 = vpop.f32.mrf.mxu0
      %v2303 = vadd.f32 0.0, %v2302
      %v2304 = vpop.f32.mrf.mxu0
      %v2305 = vadd.f32 0.0, %v2304
      %2306 = vdwg.mxu0
      %v2307 = vadd.f32 %v2059, %v2218
      %v2308 = vadd.f32 %v2060, %v2220
      %v2309 = vadd.f32 %v2061, %v2223
      %v2310 = vadd.f32 %v2062, %v2225
      %v2311 = vadd.f32 %v2063, %v2228
      %v2312 = vadd.f32 %v2064, %v2230
      %v2313 = vadd.f32 %v2065, %v2233
      %v2314 = vadd.f32 %v2066, %v2235
      %v2315 = vadd.f32 %v2067, %v2238
      %v2316 = vadd.f32 %v2068, %v2240
      %v2317 = vadd.f32 %v2069, %v2243
      %v2318 = vadd.f32 %v2070, %v2245
      %v2319 = vadd.f32 %v2071, %v2248
      %v2320 = vadd.f32 %v2072, %v2250
      %v2321 = vadd.f32 %v2073, %v2253
      %v2322 = vadd.f32 %v2074, %v2255
      %v2323 = vadd.f32 %v2075, %v2258
      %v2324 = vadd.f32 %v2076, %v2260
      %v2325 = vadd.f32 %v2077, %v2263
      %v2326 = vadd.f32 %v2078, %v2265
      %v2327 = vadd.f32 %v2079, %v2268
      %v2328 = vadd.f32 %v2080, %v2270
      %v2329 = vadd.f32 %v2081, %v2273
      %v2330 = vadd.f32 %v2082, %v2275
      %v2331 = vadd.f32 %v2083, %v2278
      %v2332 = vadd.f32 %v2084, %v2280
      %v2333 = vadd.f32 %v2085, %v2283
      %v2334 = vadd.f32 %v2086, %v2285
      %v2335 = vadd.f32 %v2087, %v2288
      %v2336 = vadd.f32 %v2088, %v2290
      %v2337 = vadd.f32 %v2089, %v2293
      %v2338 = vadd.f32 %v2090, %v2295
      %v2339 = vadd.f32 %v2091, %v2298
      %v2340 = vadd.f32 %v2092, %v2300
      %v2341 = vadd.f32 %v2093, %v2303
      %v2342 = vadd.f32 %v2094, %v2305
      %vm2343 = vcmask 523264
      %2344 = vst.msk [vmem:[%s180] sm:$0xff] %vm2343, %v2307
      %2345 = vst.msk [vmem:[%s180 + $0x8] sm:$0xff] %vm2343, %v2308
      %2346 = vst.msk [vmem:[%s180 + $0x10] sm:$0xff] %vm2343, %v2309
      %2347 = vst.msk [vmem:[%s180 + $0x18] sm:$0xff] %vm2343, %v2310
      %2348 = vst.msk [vmem:[%s180 + $0x20] sm:$0xff] %vm2343, %v2311
      %2349 = vst.msk [vmem:[%s180 + $0x28] sm:$0xff] %vm2343, %v2312
      %2350 = vst.msk [vmem:[%s180 + $0x30] sm:$0xff] %vm2343, %v2313
      %2351 = vst.msk [vmem:[%s180 + $0x38] sm:$0xff] %vm2343, %v2314
      %2352 = vst.msk [vmem:[%s180 + $0x40] sm:$0xff] %vm2343, %v2315
      %2353 = vst.msk [vmem:[%s180 + $0x48] sm:$0xff] %vm2343, %v2316
      %2354 = vst.msk [vmem:[%s180 + $0x50] sm:$0xff] %vm2343, %v2317
      %2355 = vst.msk [vmem:[%s180 + $0x58] sm:$0xff] %vm2343, %v2318
      %2356 = vst.msk [vmem:[%s180 + $0x60] sm:$0xff] %vm2343, %v2319
      %2357 = vst.msk [vmem:[%s180 + $0x68] sm:$0xff] %vm2343, %v2320
      %2358 = vst.msk [vmem:[%s180 + $0x70] sm:$0xff] %vm2343, %v2321
      %2359 = vst.msk [vmem:[%s180 + $0x78] sm:$0xff] %vm2343, %v2322
      %2360 = vst.msk [vmem:[%s180 + $0x80] sm:$0xff] %vm2343, %v2323
      %2361 = vst.msk [vmem:[%s180 + $0x88] sm:$0xff] %vm2343, %v2324
      %2362 = vst.msk [vmem:[%s180 + $0x90] sm:$0xff] %vm2343, %v2325
      %2363 = vst.msk [vmem:[%s180 + $0x98] sm:$0xff] %vm2343, %v2326
      %2364 = vst.msk [vmem:[%s180 + $0xa0] sm:$0xff] %vm2343, %v2327
      %2365 = vst.msk [vmem:[%s180 + $0xa8] sm:$0xff] %vm2343, %v2328
      %2366 = vst.msk [vmem:[%s180 + $0xb0] sm:$0xff] %vm2343, %v2329
      %2367 = vst.msk [vmem:[%s180 + $0xb8] sm:$0xff] %vm2343, %v2330
      %2368 = vst.msk [vmem:[%s180 + $0xc0] sm:$0xff] %vm2343, %v2331
      %2369 = vst.msk [vmem:[%s180 + $0xc8] sm:$0xff] %vm2343, %v2332
      %2370 = vst.msk [vmem:[%s180 + $0xd0] sm:$0xff] %vm2343, %v2333
      %2371 = vst.msk [vmem:[%s180 + $0xd8] sm:$0xff] %vm2343, %v2334
      %2372 = vst.msk [vmem:[%s180 + $0xe0] sm:$0xff] %vm2343, %v2335
      %2373 = vst.msk [vmem:[%s180 + $0xe8] sm:$0xff] %vm2343, %v2336
      %2374 = vst.msk [vmem:[%s180 + $0xf0] sm:$0xff] %vm2343, %v2337
      %2375 = vst.msk [vmem:[%s180 + $0xf8] sm:$0xff] %vm2343, %v2338
      %2376 = vst.msk [vmem:[%s180 + $0x100] sm:$0xff] %vm2343, %v2339
      %2377 = vst.msk [vmem:[%s180 + $0x108] sm:$0xff] %vm2343, %v2340
      %2378 = vst.msk [vmem:[%s180 + $0x110] sm:$0xff] %vm2343, %v2341
      %2379 = vst.msk [vmem:[%s180 + $0x118] sm:$0xff] %vm2343, %v2342
      %p2380 = scmp.lt.s32.totalorder %s17, 1
      %s2381 = scalar_select %p2380, %s17, 1
      %p2382 = scmp.lt.s32.totalorder %s18, 0
      %s2383 = scalar_select %p2382, %s18, 0
      %s2384 = smul.addr %s2381, 36
      %s2385 = sadd.s32 %s2383, %s2384
      %s2386 = smul.addr %s2385, 8
      %s2387 = scalar_lea.vmem %s2, %s2386
      // Predicated region
      $region29: #{double_conv.6} parent=27 // pred_check
        %p2388 = pneg %p97
      $region30: #{double_conv.6} parent=27 // pred_check_branch
        %2390 = sbr.rel (%p2388) target = $region32
      $region31: #{double_conv.6} parent=27 // pred_region
        _
      $region32: #{double_conv.6} parent=27 // pred_fallthru
        _
    $region28: #{double_conv.6} parent=5 // pred_fallthru
      _
    %p2391 = scmp.le.s32.totalorder 2, %s8
    // Predicated region
    $region33: #{double_conv.6} parent=5 // pred_check
      %p2392 = pneg %p2391
    $region34: #{double_conv.6} parent=5 // pred_check_branch
      %2394 = sbr.rel (%p2392) target = $region36
    $region35: #{double_conv.6} parent=5 // pred_region
      %s2395 = ssub.s32 %s8, 2
      // Predicated region
      $region37: #{double_conv.6} parent=35 // pred_check
        %p2396 = pneg %p103
      $region38: #{double_conv.6} parent=35 // pred_check_branch
        %2398 = sbr.rel (%p2396) target = $region40
      $region39: #{double_conv.6} parent=35 // pred_region
        %p2399 = scmp.lt.s32.totalorder %s19, 1
        %s2400 = scalar_select %p2399, %s19, 1
        %p2401 = scmp.lt.s32.totalorder %s20, 0
        %s2402 = scalar_select %p2401, %s20, 0
        %s2403 = smul.addr %s2400, 36
        %s2404 = sadd.s32 %s2402, %s2403
        %s2405 = smul.addr %s2404, 8
        %s2406 = scalar_lea.vmem %s2, %s2405
      $region40: #{double_conv.6} parent=35 // pred_fallthru
        _
    $region36: #{double_conv.6} parent=5 // pred_fallthru
      _
  $region6: #{double_conv.6} parent=0 // loop_footer
    %s12 = sadd.s32 1, %s8
  $region7: #{double_conv.6} parent=0 // loop_footer_branch
    %7 = sbr.rel target = $region3
  $region8: #{double_conv.6} parent=0 // loop_exit
    _

// kernel: double_conv.11
$region0: #{double_conv.11}
  #allocation0 [shape = 'u32[]', space=smem, size = 0x4, offset = 0x4, fixed_abs, tag = 'smem constant byte address 0x4 - core index']
  #allocation1 [shape = 'u32[72,128]{1,0:T(1,128)}', space=vmem, size = 0x9000, scoped, tag = 'internal scratch']
  %s0 = inlined_call_operand.vmem [shape: f32[512,64], index: 0, kind: input, shape index: {}]
  %s1 = inlined_call_operand.vmem [shape: f32[1,64], index: 1, kind: input, shape index: {}]
  %s2 = inlined_call_operand.vmem [shape: f32[1,64], index: 2, kind: input, shape index: {}]
  %s3 = inlined_call_operand.hbm [shape: f32[512,64], index: 3, kind: output, shape index: {}]
  %s4 = sld [smem:[#allocation0]]
  $region45: #{double_conv.11} parent=0
    _
  %s6 = ssub.s32 1, %s4
  %s7 = scalar_select 0, %s6, %s4
  $region1: #{double_conv.11} parent=0
    #allocation2 [shape = 'u8[262144]{0}', space=vmem, size = 0x40000, scoped, tag = 'output window, operand 0']
    #allocation3 [shape = 's32[2]{0}', space=sflag, size = 0x8, scoped, tag = 'scoped memory for double_conv.11']
    %8 = vsyncpa [#allocation3], 0
    %s9 = scalar_lea.sflag [#allocation3], 1
    %10 = vsyncpa %s9, 0
    loop: start=0, step=1, limit=4
    $region2: #{double_conv.11} parent=1 // loop_pre_header
      _
    $region3: #{double_conv.11} parent=1 // loop_header
      %s12 = sphi 0, %s16
      %p13 = scmp.ge.s32.totalorder %s12, 4
      %s22 = sphi 0, %s24
      %s25 = sphi 0, %s22
      %s26 = sphi 0, %s25
      %s42 = sphi 0, %s26
      %s46 = sphi 0, %s46
      %s48 = sphi 0, %s46
      %s49 = sphi 0, %s48
      %s63 = sphi 0, %s49
      %s67 = sphi 0, %s67
      %s69 = sphi 0, %s67
      %s70 = sphi 0, %s69
      %s84 = sphi 0, %s70
      %s90 = sphi 0, %s92
      %s93 = sphi 0, %s90
      %s94 = sphi 0, %s93
      %s110 = sphi 0, %s94
    $region4: #{double_conv.11} parent=1 // loop_header_branch
      %15 = sbr.rel (%p13) target = $region8
    $region5: #{double_conv.11} parent=1 // loop_body
      %s17 = ssub.s32 %s12, 1
      %s18 = ssub.s32 %s12, 2
      %s19 = sadd.s32 %s12, 1
      %s20 = ssub.s32 %s12, %s19
      %p21 = scmp.eq.s32.totalorder %s20, 0
      %s23 = sadd.s32 %s22, 1
      %s24 = scalar_select %p21, %s22, %s23
      %p27 = pneg %p21
      %p28 = scmp.eq.s32.totalorder %s12, 1
      %p29 = por %p27, %p28
      %p30 = scmp.ne.s32.totalorder %s22, %s25
      %p31 = scmp.eq.s32.totalorder %s12, 0
      %p32 = por %p30, %p31
      %p33 = scmp.ne.s32.totalorder %s22, %s25
      %p34 = scmp.eq.s32.totalorder %s17, 1
      %p35 = por %p33, %p34
      %p36 = scmp.ne.s32.totalorder %s25, %s26
      %p37 = scmp.eq.s32.totalorder %s17, 0
      %p38 = por %p36, %p37
      %p39 = scmp.ne.s32.totalorder %s25, %s26
      %p40 = scmp.eq.s32.totalorder %s18, 1
      %p41 = por %p39, %p40
      %p43 = scmp.ne.s32.totalorder %s26, %s42
      %p44 = scmp.eq.s32.totalorder %s18, 0
      %p45 = por %p43, %p44
      %s47 = sadd.s32 %s46, 1
      %p50 = scmp.eq.s32.totalorder %s12, 1
      %p51 = scmp.ne.s32.totalorder %s46, %s48
      %p52 = scmp.eq.s32.totalorder %s12, 0
      %p53 = por %p51, %p52
      %p54 = scmp.ne.s32.totalorder %s46, %s48
      %p55 = scmp.eq.s32.totalorder %s17, 1
      %p56 = por %p54, %p55
      %p57 = scmp.ne.s32.totalorder %s48, %s49
      %p58 = scmp.eq.s32.totalorder %s17, 0
      %p59 = por %p57, %p58
      %p60 = scmp.ne.s32.totalorder %s48, %s49
      %p61 = scmp.eq.s32.totalorder %s18, 1
      %p62 = por %p60, %p61
      %p64 = scmp.ne.s32.totalorder %s49, %s63
      %p65 = scmp.eq.s32.totalorder %s18, 0
      %p66 = por %p64, %p65
      %s68 = sadd.s32 %s67, 1
      %p71 = scmp.eq.s32.totalorder %s12, 1
      %p72 = scmp.ne.s32.totalorder %s67, %s69
      %p73 = scmp.eq.s32.totalorder %s12, 0
      %p74 = por %p72, %p73
      %p75 = scmp.ne.s32.totalorder %s67, %s69
      %p76 = scmp.eq.s32.totalorder %s17, 1
      %p77 = por %p75, %p76
      %p78 = scmp.ne.s32.totalorder %s69, %s70
      %p79 = scmp.eq.s32.totalorder %s17, 0
      %p80 = por %p78, %p79
      %p81 = scmp.ne.s32.totalorder %s69, %s70
      %p82 = scmp.eq.s32.totalorder %s18, 1
      %p83 = por %p81, %p82
      %p85 = scmp.ne.s32.totalorder %s70, %s84
      %p86 = scmp.eq.s32.totalorder %s18, 0
      %p87 = por %p85, %p86
      %s88 = ssub.s32 %s12, %s19
      %p89 = scmp.eq.s32.totalorder %s88, 0
      %s91 = sadd.s32 %s90, 1
      %s92 = scalar_select %p89, %s90, %s91
      %p95 = pneg %p89
      %p96 = scmp.eq.s32.totalorder %s12, 1
      %p97 = por %p95, %p96
      %p98 = scmp.ne.s32.totalorder %s90, %s93
      %p99 = scmp.eq.s32.totalorder %s12, 0
      %p100 = por %p98, %p99
      %p101 = scmp.ne.s32.totalorder %s90, %s93
      %p102 = scmp.eq.s32.totalorder %s17, 1
      %p103 = por %p101, %p102
      %p104 = scmp.ne.s32.totalorder %s93, %s94
      %p105 = scmp.eq.s32.totalorder %s17, 0
      %p106 = por %p104, %p105
      %p107 = scmp.ne.s32.totalorder %s93, %s94
      %p108 = scmp.eq.s32.totalorder %s18, 1
      %p109 = por %p107, %p108
      %p111 = scmp.ne.s32.totalorder %s94, %s110
      %p112 = scmp.eq.s32.totalorder %s18, 0
      %p113 = por %p111, %p112
      %p114 = scmp.le.s32.totalorder 1, %s12
      %p115 = scmp.lt.s32.totalorder %s12, 3
      %p116 = pnand %p114, %p115
      %p117 = pneg %p116
      // Predicated region
      $region9: #{double_conv.11} parent=5 // pred_check
        _
      $region10: #{double_conv.11} parent=5 // pred_check_branch
        %119 = sbr.rel (%p116) target = $region12
      $region11: #{double_conv.11} parent=5 // pred_region
        %s120 = ssub.s32 %s12, 1
        // Predicated region
        $region13: #{double_conv.11} parent=11 // pred_check
          %p121 = pneg %p59
        $region14: #{double_conv.11} parent=11 // pred_check_branch
          %123 = sbr.rel (%p121) target = $region16
        $region15: #{double_conv.11} parent=11 // pred_region
          _
        $region16: #{double_conv.11} parent=11 // pred_fallthru
          _
        // Predicated region
        $region17: #{double_conv.11} parent=11 // pred_check
          %p124 = pneg %p80
        $region18: #{double_conv.11} parent=11 // pred_check_branch
          %126 = sbr.rel (%p124) target = $region20
        $region19: #{double_conv.11} parent=11 // pred_region
          _
        $region20: #{double_conv.11} parent=11 // pred_fallthru
          _
      $region12: #{double_conv.11} parent=5 // pred_fallthru
        _
      %p127 = scmp.lt.s32.totalorder %s12, 2
      // Predicated region
      $region21: #{double_conv.11} parent=5 // pred_check
        %p128 = pneg %p127
      $region22: #{double_conv.11} parent=5 // pred_check_branch
        %130 = sbr.rel (%p128) target = $region24
      $region23: #{double_conv.11} parent=5 // pred_region
        // Predicated region
        $region25: #{double_conv.11} parent=23 // pred_check
          %p131 = pneg %p32
        $region26: #{double_conv.11} parent=23 // pred_check_branch
          %133 = sbr.rel (%p131) target = $region28
        $region27: #{double_conv.11} parent=23 // pred_region
          %s134 = smul.u32 32, %s12
          %p135 = scmp.lt.s32.totalorder %s134, 63
          %s136 = scalar_select %p135, %s134, 63
          %s137 = smul.addr %s136, 8
          %s138 = scalar_lea.vmem %s0, %s137
          %s139 = smul.u32 32, %s12
        $region28: #{double_conv.11} parent=23 // pred_fallthru
          _
      $region24: #{double_conv.11} parent=5 // pred_fallthru
        _
      %p140 = scmp.le.s32.totalorder 1, %s12
      %p141 = scmp.lt.s32.totalorder %s12, 3
      %p142 = pnand %p140, %p141
      %p143 = pneg %p142
      // Predicated region
      $region29: #{double_conv.11} parent=5 // pred_check
        _
      $region30: #{double_conv.11} parent=5 // pred_check_branch
        %145 = sbr.rel (%p142) target = $region32
      $region31: #{double_conv.11} parent=5 // pred_region
        %s146 = ssub.s32 %s12, 1
        %s147 = smul.u32 32, %s17
        %p148 = scmp.lt.s32.totalorder %s147, 63
        %s149 = scalar_select %p148, %s147, 63
        %s150 = smul.addr %s149, 8
        %s151 = scalar_lea.vmem %s0, %s150
        %p152 = pneg %p38
        %p153 = pneg %p35
        %p154 = pneg %p59
        %p155 = pneg %p56
        %p156 = pneg %p80
        %p157 = pneg %p77
        %p158 = pneg %p106
        %p159 = pneg %p103
        %s160 = sand.u32 %s93, 1
        %s161 = scalar_lea.sflag [#allocation3], %s160
        %s162 = sand.u32 %s93, 1
        %s163 = smul.addr %s162, 256
        %s164 = scalar_lea.vmem [#allocation2], %s163
        %s165 = smul.u32 32, %s17
        %p166 = scmp.lt.s32.totalorder %s165, 63
        %s167 = scalar_select %p166, %s165, 63
        %s168 = smul.addr %s167, 8
        %s169 = scalar_lea.vmem %s0, %s168
        %s170 = smul.u32 32, %s17
        %s171 = smul.u32 32, %s17
        %v172 = vld [vmem:[%s169] sm:$0xff]
        %v173 = vld [vmem:[%s169 + $0x8] sm:$0xff]
        %v174 = vld [vmem:[%s169 + $0x10] sm:$0xff]
        %v175 = vld [vmem:[%s169 + $0x18] sm:$0xff]
        %v176 = vld [vmem:[%s169 + $0x20] sm:$0xff]
        %v177 = vld [vmem:[%s169 + $0x28] sm:$0xff]
        %v178 = vld [vmem:[%s169 + $0x30] sm:$0xff]
        %v179 = vld [vmem:[%s169 + $0x38] sm:$0xff]
        %v180 = vld [vmem:[%s169 + $0x40] sm:$0xff]
        %v181 = vld [vmem:[%s169 + $0x48] sm:$0xff]
        %v182 = vld [vmem:[%s169 + $0x50] sm:$0xff]
        %v183 = vld [vmem:[%s169 + $0x58] sm:$0xff]
        %v184 = vld [vmem:[%s169 + $0x60] sm:$0xff]
        %v185 = vld [vmem:[%s169 + $0x68] sm:$0xff]
        %v186 = vld [vmem:[%s169 + $0x70] sm:$0xff]
        %v187 = vld [vmem:[%s169 + $0x78] sm:$0xff]
        %v188 = vld [vmem:[%s169 + $0x80] sm:$0xff]
        %v189 = vld [vmem:[%s169 + $0x88] sm:$0xff]
        %v190 = vld [vmem:[%s169 + $0x90] sm:$0xff]
        %v191 = vld [vmem:[%s169 + $0x98] sm:$0xff]
        %v192 = vld [vmem:[%s169 + $0xa0] sm:$0xff]
        %v193 = vld [vmem:[%s169 + $0xa8] sm:$0xff]
        %v194 = vld [vmem:[%s169 + $0xb0] sm:$0xff]
        %v195 = vld [vmem:[%s169 + $0xb8] sm:$0xff]
        %v196 = vld [vmem:[%s169 + $0xc0] sm:$0xff]
        %v197 = vld [vmem:[%s169 + $0xc8] sm:$0xff]
        %v198 = vld [vmem:[%s169 + $0xd0] sm:$0xff]
        %v199 = vld [vmem:[%s169 + $0xd8] sm:$0xff]
        %v200 = vld [vmem:[%s169 + $0xe0] sm:$0xff]
        %v201 = vld [vmem:[%s169 + $0xe8] sm:$0xff]
        %v202 = vld [vmem:[%s169 + $0xf0] sm:$0xff]
        %v203 = vld [vmem:[%s169 + $0xf8] sm:$0xff]
        %v204 = vld [vmem:[%s1] sm:$0x1]
        %v206 = vperm.slane %v204, 0
        %v208 = vmul.f32 %v172, %v206
        %v209 = vmul.f32 %v173, %v206
        %v210 = vmul.f32 %v174, %v206
        %v211 = vmul.f32 %v175, %v206
        %v212 = vmul.f32 %v176, %v206
        %v213 = vmul.f32 %v177, %v206
        %v214 = vmul.f32 %v178, %v206
        %v215 = vmul.f32 %v179, %v206
        %v216 = vmul.f32 %v180, %v206
        %v217 = vmul.f32 %v181, %v206
        %v218 = vmul.f32 %v182, %v206
        %v219 = vmul.f32 %v183, %v206
        %v220 = vmul.f32 %v184, %v206
        %v221 = vmul.f32 %v185, %v206
        %v222 = vmul.f32 %v186, %v206
        %v223 = vmul.f32 %v187, %v206
        %v224 = vmul.f32 %v188, %v206
        %v225 = vmul.f32 %v189, %v206
        %v226 = vmul.f32 %v190, %v206
        %v227 = vmul.f32 %v191, %v206
        %v228 = vmul.f32 %v192, %v206
        %v229 = vmul.f32 %v193, %v206
        %v230 = vmul.f32 %v194, %v206
        %v231 = vmul.f32 %v195, %v206
        %v232 = vmul.f32 %v196, %v206
        %v233 = vmul.f32 %v197, %v206
        %v234 = vmul.f32 %v198, %v206
        %v235 = vmul.f32 %v199, %v206
        %v236 = vmul.f32 %v200, %v206
        %v237 = vmul.f32 %v201, %v206
        %v238 = vmul.f32 %v202, %v206
        %v239 = vmul.f32 %v203, %v206
        %v240 = vld [vmem:[%s2] sm:$0x1]
        %v242 = vperm.slane %v240, 0
        %v244 = vadd.f32 %v208, %v242
        %v245 = vadd.f32 %v209, %v242
        %v246 = vadd.f32 %v210, %v242
        %v247 = vadd.f32 %v211, %v242
        %v248 = vadd.f32 %v212, %v242
        %v249 = vadd.f32 %v213, %v242
        %v250 = vadd.f32 %v214, %v242
        %v251 = vadd.f32 %v215, %v242
        %v252 = vadd.f32 %v216, %v242
        %v253 = vadd.f32 %v217, %v242
        %v254 = vadd.f32 %v218, %v242
        %v255 = vadd.f32 %v219, %v242
        %v256 = vadd.f32 %v220, %v242
        %v257 = vadd.f32 %v221, %v242
        %v258 = vadd.f32 %v222, %v242
        %v259 = vadd.f32 %v223, %v242
        %v260 = vadd.f32 %v224, %v242
        %v261 = vadd.f32 %v225, %v242
        %v262 = vadd.f32 %v226, %v242
        %v263 = vadd.f32 %v227, %v242
        %v264 = vadd.f32 %v228, %v242
        %v265 = vadd.f32 %v229, %v242
        %v266 = vadd.f32 %v230, %v242
        %v267 = vadd.f32 %v231, %v242
        %v268 = vadd.f32 %v232, %v242
        %v269 = vadd.f32 %v233, %v242
        %v270 = vadd.f32 %v234, %v242
        %v271 = vadd.f32 %v235, %v242
        %v272 = vadd.f32 %v236, %v242
        %v273 = vadd.f32 %v237, %v242
        %v274 = vadd.f32 %v238, %v242
        %v275 = vadd.f32 %v239, %v242
        %v276 = vmax.f32 %v244, 0.0
        %v277 = vmax.f32 %v245, 0.0
        %v278 = vmax.f32 %v246, 0.0
        %v279 = vmax.f32 %v247, 0.0
        %v280 = vmax.f32 %v248, 0.0
        %v281 = vmax.f32 %v249, 0.0
        %v282 = vmax.f32 %v250, 0.0
        %v283 = vmax.f32 %v251, 0.0
        %v284 = vmax.f32 %v252, 0.0
        %v285 = vmax.f32 %v253, 0.0
        %v286 = vmax.f32 %v254, 0.0
        %v287 = vmax.f32 %v255, 0.0
        %v288 = vmax.f32 %v256, 0.0
        %v289 = vmax.f32 %v257, 0.0
        %v290 = vmax.f32 %v258, 0.0
        %v291 = vmax.f32 %v259, 0.0
        %v292 = vmax.f32 %v260, 0.0
        %v293 = vmax.f32 %v261, 0.0
        %v294 = vmax.f32 %v262, 0.0
        %v295 = vmax.f32 %v263, 0.0
        %v296 = vmax.f32 %v264, 0.0
        %v297 = vmax.f32 %v265, 0.0
        %v298 = vmax.f32 %v266, 0.0
        %v299 = vmax.f32 %v267, 0.0
        %v300 = vmax.f32 %v268, 0.0
        %v301 = vmax.f32 %v269, 0.0
        %v302 = vmax.f32 %v270, 0.0
        %v303 = vmax.f32 %v271, 0.0
        %v304 = vmax.f32 %v272, 0.0
        %v305 = vmax.f32 %v273, 0.0
        %v306 = vmax.f32 %v274, 0.0
        %v307 = vmax.f32 %v275, 0.0
        %vm308 = vcmask 523264
        %309 = vst.msk [vmem:[%s164] sm:$0xff] %vm308, %v276
        %310 = vst.msk [vmem:[%s164 + $0x8] sm:$0xff] %vm308, %v277
        %311 = vst.msk [vmem:[%s164 + $0x10] sm:$0xff] %vm308, %v278
        %312 = vst.msk [vmem:[%s164 + $0x18] sm:$0xff] %vm308, %v279
        %313 = vst.msk [vmem:[%s164 + $0x20] sm:$0xff] %vm308, %v280
        %314 = vst.msk [vmem:[%s164 + $0x28] sm:$0xff] %vm308, %v281
        %315 = vst.msk [vmem:[%s164 + $0x30] sm:$0xff] %vm308, %v282
        %316 = vst.msk [vmem:[%s164 + $0x38] sm:$0xff] %vm308, %v283
        %317 = vst.msk [vmem:[%s164 + $0x40] sm:$0xff] %vm308, %v284
        %318 = vst.msk [vmem:[%s164 + $0x48] sm:$0xff] %vm308, %v285
        %319 = vst.msk [vmem:[%s164 + $0x50] sm:$0xff] %vm308, %v286
        %320 = vst.msk [vmem:[%s164 + $0x58] sm:$0xff] %vm308, %v287
        %321 = vst.msk [vmem:[%s164 + $0x60] sm:$0xff] %vm308, %v288
        %322 = vst.msk [vmem:[%s164 + $0x68] sm:$0xff] %vm308, %v289
        %323 = vst.msk [vmem:[%s164 + $0x70] sm:$0xff] %vm308, %v290
        %324 = vst.msk [vmem:[%s164 + $0x78] sm:$0xff] %vm308, %v291
        %325 = vst.msk [vmem:[%s164 + $0x80] sm:$0xff] %vm308, %v292
        %326 = vst.msk [vmem:[%s164 + $0x88] sm:$0xff] %vm308, %v293
        %327 = vst.msk [vmem:[%s164 + $0x90] sm:$0xff] %vm308, %v294
        %328 = vst.msk [vmem:[%s164 + $0x98] sm:$0xff] %vm308, %v295
        %329 = vst.msk [vmem:[%s164 + $0xa0] sm:$0xff] %vm308, %v296
        %330 = vst.msk [vmem:[%s164 + $0xa8] sm:$0xff] %vm308, %v297
        %331 = vst.msk [vmem:[%s164 + $0xb0] sm:$0xff] %vm308, %v298
        %332 = vst.msk [vmem:[%s164 + $0xb8] sm:$0xff] %vm308, %v299
        %333 = vst.msk [vmem:[%s164 + $0xc0] sm:$0xff] %vm308, %v300
        %334 = vst.msk [vmem:[%s164 + $0xc8] sm:$0xff] %vm308, %v301
        %335 = vst.msk [vmem:[%s164 + $0xd0] sm:$0xff] %vm308, %v302
        %336 = vst.msk [vmem:[%s164 + $0xd8] sm:$0xff] %vm308, %v303
        %337 = vst.msk [vmem:[%s164 + $0xe0] sm:$0xff] %vm308, %v304
        %338 = vst.msk [vmem:[%s164 + $0xe8] sm:$0xff] %vm308, %v305
        %339 = vst.msk [vmem:[%s164 + $0xf0] sm:$0xff] %vm308, %v306
        %340 = vst.msk [vmem:[%s164 + $0xf8] sm:$0xff] %vm308, %v307
        %s341 = sand.u32 %s93, 1
        %s342 = scalar_lea.sflag [#allocation3], %s341
        %s343 = sand.u32 %s93, 1
        %s344 = smul.addr %s343, 256
        %s345 = scalar_lea.vmem [#allocation2], %s344
        // Predicated region
        $region33: #{double_conv.11} parent=31 // pred_check
          %p346 = pneg %p103
        $region34: #{double_conv.11} parent=31 // pred_check_branch
          %348 = sbr.rel (%p346) target = $region36
        $region35: #{double_conv.11} parent=31 // pred_region
          %s349 = smul.u32 32, %s17
          %351 = vsyncadd %s342, 0
          %s352 = smul.addr %s349, 8
          %s353 = scalar_lea.hbm %s3, %s352
          %s354 = sshll.u32 %s345, 4
          %s355 = int_to_ptr.vmem [resolvable:$true] %s354
          %s356 = sshll.u32 %s353, 4
          %s357 = int_to_ptr.hbm [resolvable:$true] %s356
          %362 = dma.vmem_to_hbm [thread:$0]  %s355, 4096, %s357, %s342, 128, 128, 8
        $region36: #{double_conv.11} parent=31 // pred_fallthru
          _
      $region32: #{double_conv.11} parent=5 // pred_fallthru
        _
      %p363 = scmp.le.s32.totalorder 2, %s12
      // Predicated region
      $region37: #{double_conv.11} parent=5 // pred_check
        %p364 = pneg %p363
      $region38: #{double_conv.11} parent=5 // pred_check_branch
        %366 = sbr.rel (%p364) target = $region40
      $region39: #{double_conv.11} parent=5 // pred_region
        %s367 = ssub.s32 %s12, 2
        // Predicated region
        $region41: #{double_conv.11} parent=39 // pred_check
          %p368 = pneg %p109
        $region42: #{double_conv.11} parent=39 // pred_check_branch
          %370 = sbr.rel (%p368) target = $region44
        $region43: #{double_conv.11} parent=39 // pred_region
          %s371 = sand.u32 %s94, 1
          %s372 = scalar_lea.sflag [#allocation3], %s371
          %s373 = sand.u32 %s94, 1
          %s374 = smul.addr %s373, 256
          %s375 = scalar_lea.vmem [#allocation2], %s374
          %377 = dma.done %s372, 4096
        $region44: #{double_conv.11} parent=39 // pred_fallthru
          _
      $region40: #{double_conv.11} parent=5 // pred_fallthru
        _
    $region6: #{double_conv.11} parent=1 // loop_footer
      %s16 = sadd.s32 1, %s12
    $region7: #{double_conv.11} parent=1 // loop_footer_branch
      %11 = sbr.rel target = $region3
    $region8: #{double_conv.11} parent=1 // loop_exit
      _
    %378 = vsyncpa [#allocation3], 1
    %s379 = scalar_lea.sflag [#allocation3], 1
    %380 = vsyncpa %s379, 1

// kernel: double_conv.9
$region0: #{double_conv.9}
  #allocation0 [shape = 'u32[]', space=smem, size = 0x4, offset = 0x4, fixed_abs, tag = 'smem constant byte address 0x4 - core index']
  #allocation1 [shape = 'u32[72,128]{1,0:T(1,128)}', space=vmem, size = 0x9000, scoped, tag = 'internal scratch']
  %s0 = inlined_call_operand.vmem [shape: f32[2,328,64], index: 0, kind: input, shape index: {}]
  %s1 = inlined_call_operand.vmem [shape: bf16[9,64,64], index: 1, kind: input, shape index: {}]
  %s2 = inlined_call_operand.vmem [shape: f32[2,288,64], index: 2, kind: output, shape index: {}]
  %s3 = sld [smem:[#allocation0]]
  $region41: #{double_conv.9} parent=0
    _
  %s5 = ssub.s32 1, %s3
  %s6 = scalar_select 0, %s5, %s3
  loop: start=0, step=1, limit=4
  $region2: #{double_conv.9} parent=0 // loop_pre_header
    _
  $region3: #{double_conv.9} parent=0 // loop_header
    %s8 = sphi 0, %s12
    %p9 = scmp.ge.s32.totalorder %s8, 4
    %s15 = sphi 0, %s27
    %s16 = sphi 0, %s23
    %s17 = sphi 0, %s15
    %s18 = sphi 0, %s16
    %s19 = sphi 0, %s17
    %s20 = sphi 0, %s18
    %s30 = sphi 0, %s32
    %s33 = sphi 0, %s30
    %s34 = sphi 0, %s33
    %s50 = sphi 0, %s34
    %s56 = sphi 0, %s58
    %s59 = sphi 0, %s56
    %s60 = sphi 0, %s59
    %s76 = sphi 0, %s60
    %s84 = sphi 0, %s86
    %s87 = sphi 0, %s84
    %s88 = sphi 0, %s87
    %s104 = sphi 0, %s88
  $region4: #{double_conv.9} parent=0 // loop_header_branch
    %11 = sbr.rel (%p9) target = $region8
  $region5: #{double_conv.9} parent=0 // loop_body
    %s13 = ssub.s32 %s8, 1
    %s14 = ssub.s32 %s8, 2
    %s21 = sadd.s32 1, %s16
    %p22 = scmp.ge.s32.totalorder %s21, 1
    %s23 = scalar_select %p22, 0, %s21
    %s24 = sadd.s32 1, %s15
    %s25 = scalar_select %p22, %s24, %s15
    %p26 = scmp.ge.s32.totalorder %s25, 2
    %s27 = scalar_select %p26, 0, %s25
    %s28 = ssub.s32 %s15, %s27
    %p29 = scmp.eq.s32.totalorder %s28, 0
    %s31 = sadd.s32 %s30, 1
    %s32 = scalar_select %p29, %s30, %s31
    %p35 = pneg %p29
    %p36 = scmp.eq.s32.totalorder %s8, 1
    %p37 = por %p35, %p36
    %p38 = scmp.ne.s32.totalorder %s30, %s33
    %p39 = scmp.eq.s32.totalorder %s8, 0
    %p40 = por %p38, %p39
    %p41 = scmp.ne.s32.totalorder %s30, %s33
    %p42 = scmp.eq.s32.totalorder %s13, 1
    %p43 = por %p41, %p42
    %p44 = scmp.ne.s32.totalorder %s33, %s34
    %p45 = scmp.eq.s32.totalorder %s13, 0
    %p46 = por %p44, %p45
    %p47 = scmp.ne.s32.totalorder %s33, %s34
    %p48 = scmp.eq.s32.totalorder %s14, 1
    %p49 = por %p47, %p48
    %p51 = scmp.ne.s32.totalorder %s34, %s50
    %p52 = scmp.eq.s32.totalorder %s14, 0
    %p53 = por %p51, %p52
    %s54 = ssub.s32 %s16, %s23
    %p55 = scmp.eq.s32.totalorder %s54, 0
    %s57 = sadd.s32 %s56, 1
    %s58 = scalar_select %p55, %s56, %s57
    %p61 = pneg %p55
    %p62 = scmp.eq.s32.totalorder %s8, 1
    %p63 = por %p61, %p62
    %p64 = scmp.ne.s32.totalorder %s56, %s59
    %p65 = scmp.eq.s32.totalorder %s8, 0
    %p66 = por %p64, %p65
    %p67 = scmp.ne.s32.totalorder %s56, %s59
    %p68 = scmp.eq.s32.totalorder %s13, 1
    %p69 = por %p67, %p68
    %p70 = scmp.ne.s32.totalorder %s59, %s60
    %p71 = scmp.eq.s32.totalorder %s13, 0
    %p72 = por %p70, %p71
    %p73 = scmp.ne.s32.totalorder %s59, %s60
    %p74 = scmp.eq.s32.totalorder %s14, 1
    %p75 = por %p73, %p74
    %p77 = scmp.ne.s32.totalorder %s60, %s76
    %p78 = scmp.eq.s32.totalorder %s14, 0
    %p79 = por %p77, %p78
    %s80 = ssub.s32 %s15, %s27
    %s81 = ssub.s32 %s16, %s23
    %s82 = sor.u32 %s80, %s81
    %p83 = scmp.eq.s32.totalorder %s82, 0
    %s85 = sadd.s32 %s84, 1
    %s86 = scalar_select %p83, %s84, %s85
    %p89 = pneg %p83
    %p90 = scmp.eq.s32.totalorder %s8, 1
    %p91 = por %p89, %p90
    %p92 = scmp.ne.s32.totalorder %s84, %s87
    %p93 = scmp.eq.s32.totalorder %s8, 0
    %p94 = por %p92, %p93
    %p95 = scmp.ne.s32.totalorder %s84, %s87
    %p96 = scmp.eq.s32.totalorder %s13, 1
    %p97 = por %p95, %p96
    %p98 = scmp.ne.s32.totalorder %s87, %s88
    %p99 = scmp.eq.s32.totalorder %s13, 0
    %p100 = por %p98, %p99
    %p101 = scmp.ne.s32.totalorder %s87, %s88
    %p102 = scmp.eq.s32.totalorder %s14, 1
    %p103 = por %p101, %p102
    %p105 = scmp.ne.s32.totalorder %s88, %s104
    %p106 = scmp.eq.s32.totalorder %s14, 0
    %p107 = por %p105, %p106
    %p108 = scmp.le.s32.totalorder 1, %s8
    %p109 = scmp.lt.s32.totalorder %s8, 3
    %p110 = pnand %p108, %p109
    %p111 = pneg %p110
    // Predicated region
    $region9: #{double_conv.9} parent=5 // pred_check
      _
    $region10: #{double_conv.9} parent=5 // pred_check_branch
      %113 = sbr.rel (%p110) target = $region12
    $region11: #{double_conv.9} parent=5 // pred_region
      %s114 = ssub.s32 %s8, 1
      // Predicated region
      $region13: #{double_conv.9} parent=11 // pred_check
        %p115 = pneg %p72
      $region14: #{double_conv.9} parent=11 // pred_check_branch
        %117 = sbr.rel (%p115) target = $region16
      $region15: #{double_conv.9} parent=11 // pred_region
        %p118 = scmp.lt.s32.totalorder %s18, 0
        %s119 = scalar_select %p118, %s18, 0
        %s120 = smul.addr %s119, 4
        %s121 = scalar_lea.vmem %s1, %s120
      $region16: #{double_conv.9} parent=11 // pred_fallthru
        _
    $region12: #{double_conv.9} parent=5 // pred_fallthru
      _
    %p122 = scmp.lt.s32.totalorder %s8, 2
    // Predicated region
    $region17: #{double_conv.9} parent=5 // pred_check
      %p123 = pneg %p122
    $region18: #{double_conv.9} parent=5 // pred_check_branch
      %125 = sbr.rel (%p123) target = $region20
    $region19: #{double_conv.9} parent=5 // pred_region
      // Predicated region
      $region21: #{double_conv.9} parent=19 // pred_check
        %p126 = pneg %p40
      $region22: #{double_conv.9} parent=19 // pred_check_branch
        %128 = sbr.rel (%p126) target = $region24
      $region23: #{double_conv.9} parent=19 // pred_region
        %p129 = scmp.lt.s32.totalorder %s15, 1
        %s130 = scalar_select %p129, %s15, 1
        %s131 = smul.addr %s130, 41
        %s132 = smul.addr %s131, 8
        %s133 = scalar_lea.vmem %s0, %s132
      $region24: #{double_conv.9} parent=19 // pred_fallthru
        _
    $region20: #{double_conv.9} parent=5 // pred_fallthru
      _
    %p134 = scmp.le.s32.totalorder 1, %s8
    %p135 = scmp.lt.s32.totalorder %s8, 3
    %p136 = pnand %p134, %p135
    %p137 = pneg %p136
    // Predicated region
    $region25: #{double_conv.9} parent=5 // pred_check
      _
    $region26: #{double_conv.9} parent=5 // pred_check_branch
      %139 = sbr.rel (%p136) target = $region28
    $region27: #{double_conv.9} parent=5 // pred_region
      %s140 = ssub.s32 %s8, 1
      %p141 = scmp.lt.s32.totalorder %s17, 1
      %s142 = scalar_select %p141, %s17, 1
      %s143 = smul.addr %s142, 41
      %s144 = smul.addr %s143, 8
      %s145 = scalar_lea.vmem %s0, %s144
      %p146 = pneg %p46
      %p147 = pneg %p43
      %p148 = scmp.lt.s32.totalorder %s18, 0
      %s149 = scalar_select %p148, %s18, 0
      %s150 = smul.addr %s149, 4
      %s151 = scalar_lea.vmem %s1, %s150
      %p152 = pneg %p72
      %p153 = pneg %p69
      %p154 = pneg %p100
      %p155 = pneg %p97
      %p156 = scmp.lt.s32.totalorder %s17, 1
      %s157 = scalar_select %p156, %s17, 1
      %p158 = scmp.lt.s32.totalorder %s18, 0
      %s159 = scalar_select %p158, %s18, 0
      %s160 = smul.addr %s157, 36
      %s161 = sadd.s32 %s159, %s160
      %s162 = smul.addr %s161, 8
      %s163 = scalar_lea.vmem %s2, %s162
      %p164 = scmp.lt.s32.totalorder %s17, 1
      %s165 = scalar_select %p164, %s17, 1
      %s166 = smul.addr %s165, 41
      %s167 = smul.addr %s166, 8
      %s168 = scalar_lea.vmem %s0, %s167
      %p169 = scmp.lt.s32.totalorder %s18, 0
      %s170 = scalar_select %p169, %s18, 0
      %s171 = smul.addr %s170, 4
      %s172 = scalar_lea.vmem %s1, %s171
      %p173 = scmp.lt.s32.totalorder %s17, 1
      %s174 = scalar_select %p173, %s17, 1
      %p175 = scmp.lt.s32.totalorder %s18, 0
      %s176 = scalar_select %p175, %s18, 0
      %s177 = smul.addr %s174, 36
      %s178 = sadd.s32 %s176, %s177
      %s179 = smul.addr %s178, 8
      %s180 = scalar_lea.vmem %s2, %s179
      %v182 = vld [vmem:[%s168] sm:$0xff]
      %v183 = vld [vmem:[%s168 + $0x8] sm:$0xff]
      %v184 = vld [vmem:[%s168 + $0x10] sm:$0xff]
      %v185 = vld [vmem:[%s168 + $0x18] sm:$0xff]
      %v186 = vld [vmem:[%s168 + $0x20] sm:$0xff]
      %v187 = vld [vmem:[%s168 + $0x28] sm:$0xff]
      %v188 = vld [vmem:[%s168 + $0x30] sm:$0xff]
      %v189 = vld [vmem:[%s168 + $0x38] sm:$0xff]
      %v190 = vld [vmem:[%s168 + $0x40] sm:$0xff]
      %v191 = vld [vmem:[%s168 + $0x48] sm:$0xff]
      %v192 = vld [vmem:[%s168 + $0x50] sm:$0xff]
      %v193 = vld [vmem:[%s168 + $0x58] sm:$0xff]
      %v194 = vld [vmem:[%s168 + $0x60] sm:$0xff]
      %v195 = vld [vmem:[%s168 + $0x68] sm:$0xff]
      %v196 = vld [vmem:[%s168 + $0x70] sm:$0xff]
      %v197 = vld [vmem:[%s168 + $0x78] sm:$0xff]
      %v198 = vld [vmem:[%s168 + $0x80] sm:$0xff]
      %v199 = vld [vmem:[%s168 + $0x88] sm:$0xff]
      %v200 = vld [vmem:[%s168 + $0x90] sm:$0xff]
      %v201 = vld [vmem:[%s168 + $0x98] sm:$0xff]
      %v202 = vld [vmem:[%s168 + $0xa0] sm:$0xff]
      %v203 = vld [vmem:[%s168 + $0xa8] sm:$0xff]
      %v204 = vld [vmem:[%s168 + $0xb0] sm:$0xff]
      %v205 = vld [vmem:[%s168 + $0xb8] sm:$0xff]
      %v206 = vld [vmem:[%s168 + $0xc0] sm:$0xff]
      %v207 = vld [vmem:[%s168 + $0xc8] sm:$0xff]
      %v208 = vld [vmem:[%s168 + $0xd0] sm:$0xff]
      %v209 = vld [vmem:[%s168 + $0xd8] sm:$0xff]
      %v210 = vld [vmem:[%s168 + $0xe0] sm:$0xff]
      %v211 = vld [vmem:[%s168 + $0xe8] sm:$0xff]
      %v212 = vld [vmem:[%s168 + $0xf0] sm:$0xff]
      %v213 = vld [vmem:[%s168 + $0xf8] sm:$0xff]
      %v214 = vld [vmem:[%s168 + $0x100] sm:$0xff]
      %v215 = vld [vmem:[%s168 + $0x108] sm:$0xff]
      %v216 = vld [vmem:[%s168 + $0x110] sm:$0xff]
      %v217 = vld [vmem:[%s168 + $0x118] sm:$0xff]
      %v218 = vpack.c.bf16 %v183, %v182
      %v219 = vpack.c.bf16 %v185, %v184
      %v220 = vpack.c.bf16 %v187, %v186
      %v221 = vpack.c.bf16 %v189, %v188
      %v222 = vpack.c.bf16 %v191, %v190
      %v223 = vpack.c.bf16 %v193, %v192
      %v224 = vpack.c.bf16 %v195, %v194
      %v225 = vpack.c.bf16 %v197, %v196
      %v226 = vpack.c.bf16 %v199, %v198
      %v227 = vpack.c.bf16 %v201, %v200
      %v228 = vpack.c.bf16 %v203, %v202
      %v229 = vpack.c.bf16 %v205, %v204
      %v230 = vpack.c.bf16 %v207, %v206
      %v231 = vpack.c.bf16 %v209, %v208
      %v232 = vpack.c.bf16 %v211, %v210
      %v233 = vpack.c.bf16 %v213, %v212
      %v234 = vpack.c.bf16 %v215, %v214
      %v235 = vpack.c.bf16 %v217, %v216
      %v236 = vld [vmem:[%s172] sm:$0xf]
      %v237 = vld [vmem:[%s172 + $0x4] sm:$0xf]
      %v238 = vld [vmem:[%s172 + $0x8] sm:$0xf]
      %v239 = vld [vmem:[%s172 + $0xc] sm:$0xf]
      %v240 = vld [vmem:[%s172 + $0x10] sm:$0xf]
      %v241 = vld [vmem:[%s172 + $0x14] sm:$0xf]
      %v242 = vld [vmem:[%s172 + $0x18] sm:$0xf]
      %v243 = vld [vmem:[%s172 + $0x1c] sm:$0xf]
      %v244 = vld [vmem:[%s168 + $0x1] sm:$0xff]
      %v245 = vld [vmem:[%s168 + $0x9] sm:$0xff]
      %v246 = vld [vmem:[%s168 + $0x11] sm:$0xff]
      %v247 = vld [vmem:[%s168 + $0x19] sm:$0xff]
      %v248 = vld [vmem:[%s168 + $0x21] sm:$0xff]
      %v249 = vld [vmem:[%s168 + $0x29] sm:$0xff]
      %v250 = vld [vmem:[%s168 + $0x31] sm:$0xff]
      %v251 = vld [vmem:[%s168 + $0x39] sm:$0xff]
      %v252 = vld [vmem:[%s168 + $0x41] sm:$0xff]
      %v253 = vld [vmem:[%s168 + $0x49] sm:$0xff]
      %v254 = vld [vmem:[%s168 + $0x51] sm:$0xff]
      %v255 = vld [vmem:[%s168 + $0x59] sm:$0xff]
      %v256 = vld [vmem:[%s168 + $0x61] sm:$0xff]
      %v257 = vld [vmem:[%s168 + $0x69] sm:$0xff]
      %v258 = vld [vmem:[%s168 + $0x71] sm:$0xff]
      %v259 = vld [vmem:[%s168 + $0x79] sm:$0xff]
      %v260 = vld [vmem:[%s168 + $0x81] sm:$0xff]
      %v261 = vld [vmem:[%s168 + $0x89] sm:$0xff]
      %v262 = vld [vmem:[%s168 + $0x91] sm:$0xff]
      %v263 = vld [vmem:[%s168 + $0x99] sm:$0xff]
      %v264 = vld [vmem:[%s168 + $0xa1] sm:$0xff]
      %v265 = vld [vmem:[%s168 + $0xa9] sm:$0xff]
      %v266 = vld [vmem:[%s168 + $0xb1] sm:$0xff]
      %v267 = vld [vmem:[%s168 + $0xb9] sm:$0xff]
      %v268 = vld [vmem:[%s168 + $0xc1] sm:$0xff]
      %v269 = vld [vmem:[%s168 + $0xc9] sm:$0xff]
      %v270 = vld [vmem:[%s168 + $0xd1] sm:$0xff]
      %v271 = vld [vmem:[%s168 + $0xd9] sm:$0xff]
      %v272 = vld [vmem:[%s168 + $0xe1] sm:$0xff]
      %v273 = vld [vmem:[%s168 + $0xe9] sm:$0xff]
      %v274 = vld [vmem:[%s168 + $0xf1] sm:$0xff]
      %v275 = vld [vmem:[%s168 + $0xf9] sm:$0xff]
      %v276 = vld [vmem:[%s168 + $0x101] sm:$0xff]
      %v277 = vld [vmem:[%s168 + $0x109] sm:$0xff]
      %v278 = vld [vmem:[%s168 + $0x111] sm:$0xff]
      %v279 = vld [vmem:[%s168 + $0x119] sm:$0xff]
      %v280 = vpack.c.bf16 %v245, %v244
      %v281 = vpack.c.bf16 %v247, %v246
      %v282 = vpack.c.bf16 %v249, %v248
      %v283 = vpack.c.bf16 %v251, %v250
      %v284 = vpack.c.bf16 %v253, %v252
      %v285 = vpack.c.bf16 %v255, %v254
      %v286 = vpack.c.bf16 %v257, %v256
      %v287 = vpack.c.bf16 %v259, %v258
      %v288 = vpack.c.bf16 %v261, %v260
      %v289 = vpack.c.bf16 %v263, %v262
      %v290 = vpack.c.bf16 %v265, %v264
      %v291 = vpack.c.bf16 %v267, %v266
      %v292 = vpack.c.bf16 %v269, %v268
      %v293 = vpack.c.bf16 %v271, %v270
      %v294 = vpack.c.bf16 %v273, %v272
      %v295 = vpack.c.bf16 %v275, %v274
      %v296 = vpack.c.bf16 %v277, %v276
      %v297 = vpack.c.bf16 %v279, %v278
      %s298 = scalar_lea.vmem %s172, 32
      %v299 = vld [vmem:[%s298] sm:$0xf]
      %v300 = vld [vmem:[%s298 + $0x4] sm:$0xf]
      %v301 = vld [vmem:[%s298 + $0x8] sm:$0xf]
      %v302 = vld [vmem:[%s298 + $0xc] sm:$0xf]
      %v303 = vld [vmem:[%s298 + $0x10] sm:$0xf]
      %v304 = vld [vmem:[%s298 + $0x14] sm:$0xf]
      %v305 = vld [vmem:[%s298 + $0x18] sm:$0xf]
      %v306 = vld [vmem:[%s298 + $0x1c] sm:$0xf]
      %v315 = vunpack.c.l.b16 %v299
      %v316 = vunpack.c.l.b16 %v300
      %v317 = vunpack.c.l.b16 %v301
      %v318 = vunpack.c.l.b16 %v302
      %v319 = vunpack.c.l.b16 %v303
      %v320 = vunpack.c.l.b16 %v304
      %v321 = vunpack.c.l.b16 %v305
      %v322 = vunpack.c.l.b16 %v306
      %v323 = vpack.c.b16 %v316, %v315
      %v324 = vpack.c.b16 %v318, %v317
      %v325 = vpack.c.b16 %v320, %v319
      %v326 = vpack.c.b16 %v322, %v321
      %vm331 = vcmask 523264
      %v333 = vsel %vm331, %v280, 0
      %v336 = vsel %vm331, %v281, 0
      %v339 = vsel %vm331, %v282, 0
      %v342 = vsel %vm331, %v283, 0
      %v345 = vsel %vm331, %v284, 0
      %v348 = vsel %vm331, %v285, 0
      %v351 = vsel %vm331, %v286, 0
      %v354 = vsel %vm331, %v287, 0
      %v357 = vsel %vm331, %v288, 0
      %v360 = vsel %vm331, %v289, 0
      %v363 = vsel %vm331, %v290, 0
      %v366 = vsel %vm331, %v291, 0
      %v369 = vsel %vm331, %v292, 0
      %v372 = vsel %vm331, %v293, 0
      %v375 = vsel %vm331, %v294, 0
      %v378 = vsel %vm331, %v295, 0
      %v381 = vsel %vm331, %v296, 0
      %v384 = vsel %vm331, %v297, 0
      %386 = vmatpush.bf16.msra.mxu0 0
      %387 = vmatpush.bf16.msra.mxu0 0
      %388 = vmatpush.bf16.msra.mxu0 0
      %389 = vmatpush.bf16.msra.mxu0 0
      %390 = vmatpush.bf16.msra.mxu0 %v326
      %391 = vmatpush.bf16.msra.mxu0 %v325
      %392 = vmatpush.bf16.msra.mxu0 %v324
      %393 = vmatpush.bf16.msra.mxu0 %v323
      %394 = vmatmul.bf16.gmra.mxu0 %v333
      %v395 = vpop.f32.mrf.mxu0
      %v396 = vadd.f32 0.0, %v395
      %v397 = vpop.f32.mrf.mxu0
      %v398 = vadd.f32 0.0, %v397
      %399 = vmatmul.bf16.gmra.mxu0 %v336
      %v400 = vpop.f32.mrf.mxu0
      %v401 = vadd.f32 0.0, %v400
      %v402 = vpop.f32.mrf.mxu0
      %v403 = vadd.f32 0.0, %v402
      %404 = vmatmul.bf16.gmra.mxu0 %v339
      %v405 = vpop.f32.mrf.mxu0
      %v406 = vadd.f32 0.0, %v405
      %v407 = vpop.f32.mrf.mxu0
      %v408 = vadd.f32 0.0, %v407
      %409 = vmatmul.bf16.gmra.mxu0 %v342
      %v410 = vpop.f32.mrf.mxu0
      %v411 = vadd.f32 0.0, %v410
      %v412 = vpop.f32.mrf.mxu0
      %v413 = vadd.f32 0.0, %v412
      %414 = vmatmul.bf16.gmra.mxu0 %v345
      %v415 = vpop.f32.mrf.mxu0
      %v416 = vadd.f32 0.0, %v415
      %v417 = vpop.f32.mrf.mxu0
      %v418 = vadd.f32 0.0, %v417
      %419 = vmatmul.bf16.gmra.mxu0 %v348
      %v420 = vpop.f32.mrf.mxu0
      %v421 = vadd.f32 0.0, %v420
      %v422 = vpop.f32.mrf.mxu0
      %v423 = vadd.f32 0.0, %v422
      %424 = vmatmul.bf16.gmra.mxu0 %v351
      %v425 = vpop.f32.mrf.mxu0
      %v426 = vadd.f32 0.0, %v425
      %v427 = vpop.f32.mrf.mxu0
      %v428 = vadd.f32 0.0, %v427
      %429 = vmatmul.bf16.gmra.mxu0 %v354
      %v430 = vpop.f32.mrf.mxu0
      %v431 = vadd.f32 0.0, %v430
      %v432 = vpop.f32.mrf.mxu0
      %v433 = vadd.f32 0.0, %v432
      %434 = vmatmul.bf16.gmra.mxu0 %v357
      %v435 = vpop.f32.mrf.mxu0
      %v436 = vadd.f32 0.0, %v435
      %v437 = vpop.f32.mrf.mxu0
      %v438 = vadd.f32 0.0, %v437
      %439 = vmatmul.bf16.gmra.mxu0 %v360
      %v440 = vpop.f32.mrf.mxu0
      %v441 = vadd.f32 0.0, %v440
      %v442 = vpop.f32.mrf.mxu0
      %v443 = vadd.f32 0.0, %v442
      %444 = vmatmul.bf16.gmra.mxu0 %v363
      %v445 = vpop.f32.mrf.mxu0
      %v446 = vadd.f32 0.0, %v445
      %v447 = vpop.f32.mrf.mxu0
      %v448 = vadd.f32 0.0, %v447
      %449 = vmatmul.bf16.gmra.mxu0 %v366
      %v450 = vpop.f32.mrf.mxu0
      %v451 = vadd.f32 0.0, %v450
      %v452 = vpop.f32.mrf.mxu0
      %v453 = vadd.f32 0.0, %v452
      %454 = vmatmul.bf16.gmra.mxu0 %v369
      %v455 = vpop.f32.mrf.mxu0
      %v456 = vadd.f32 0.0, %v455
      %v457 = vpop.f32.mrf.mxu0
      %v458 = vadd.f32 0.0, %v457
      %459 = vmatmul.bf16.gmra.mxu0 %v372
      %v460 = vpop.f32.mrf.mxu0
      %v461 = vadd.f32 0.0, %v460
      %v462 = vpop.f32.mrf.mxu0
      %v463 = vadd.f32 0.0, %v462
      %464 = vmatmul.bf16.gmra.mxu0 %v375
      %v465 = vpop.f32.mrf.mxu0
      %v466 = vadd.f32 0.0, %v465
      %v467 = vpop.f32.mrf.mxu0
      %v468 = vadd.f32 0.0, %v467
      %469 = vmatmul.bf16.gmra.mxu0 %v378
      %v470 = vpop.f32.mrf.mxu0
      %v471 = vadd.f32 0.0, %v470
      %v472 = vpop.f32.mrf.mxu0
      %v473 = vadd.f32 0.0, %v472
      %474 = vmatmul.bf16.gmra.mxu0 %v381
      %v475 = vpop.f32.mrf.mxu0
      %v476 = vadd.f32 0.0, %v475
      %v477 = vpop.f32.mrf.mxu0
      %v478 = vadd.f32 0.0, %v477
      %479 = vmatmul.bf16.gmra.mxu0 %v384
      %v480 = vpop.f32.mrf.mxu0
      %v481 = vadd.f32 0.0, %v480
      %v482 = vpop.f32.mrf.mxu0
      %v483 = vadd.f32 0.0, %v482
      %484 = vdwg.mxu0
      %v493 = vunpack.c.l.b16 %v236
      %v494 = vunpack.c.l.b16 %v237
      %v495 = vunpack.c.l.b16 %v238
      %v496 = vunpack.c.l.b16 %v239
      %v497 = vunpack.c.l.b16 %v240
      %v498 = vunpack.c.l.b16 %v241
      %v499 = vunpack.c.l.b16 %v242
      %v500 = vunpack.c.l.b16 %v243
      %v501 = vpack.c.b16 %v494, %v493
      %v502 = vpack.c.b16 %v496, %v495
      %v503 = vpack.c.b16 %v498, %v497
      %v504 = vpack.c.b16 %v500, %v499
      %v510 = vsel %vm331, %v218, 0
      %v513 = vsel %vm331, %v219, 0
      %v516 = vsel %vm331, %v220, 0
      %v519 = vsel %vm331, %v221, 0
      %v522 = vsel %vm331, %v222, 0
      %v525 = vsel %vm331, %v223, 0
      %v528 = vsel %vm331, %v224, 0
      %v531 = vsel %vm331, %v225, 0
      %v534 = vsel %vm331, %v226, 0
      %v537 = vsel %vm331, %v227, 0
      %v540 = vsel %vm331, %v228, 0
      %v543 = vsel %vm331, %v229, 0
      %v546 = vsel %vm331, %v230, 0
      %v549 = vsel %vm331, %v231, 0
      %v552 = vsel %vm331, %v232, 0
      %v555 = vsel %vm331, %v233, 0
      %v558 = vsel %vm331, %v234, 0
      %v561 = vsel %vm331, %v235, 0
      %563 = vmatpush.bf16.msra.mxu0 0
      %564 = vmatpush.bf16.msra.mxu0 0
      %565 = vmatpush.bf16.msra.mxu0 0
      %566 = vmatpush.bf16.msra.mxu0 0
      %567 = vmatpush.bf16.msra.mxu0 %v504
      %568 = vmatpush.bf16.msra.mxu0 %v503
      %569 = vmatpush.bf16.msra.mxu0 %v502
      %570 = vmatpush.bf16.msra.mxu0 %v501
      %571 = vmatmul.bf16.gmra.mxu0 %v510
      %v572 = vpop.f32.mrf.mxu0
      %v573 = vadd.f32 %v396, %v572
      %v574 = vpop.f32.mrf.mxu0
      %v575 = vadd.f32 %v398, %v574
      %576 = vmatmul.bf16.gmra.mxu0 %v513
      %v577 = vpop.f32.mrf.mxu0
      %v578 = vadd.f32 %v401, %v577
      %v579 = vpop.f32.mrf.mxu0
      %v580 = vadd.f32 %v403, %v579
      %581 = vmatmul.bf16.gmra.mxu0 %v516
      %v582 = vpop.f32.mrf.mxu0
      %v583 = vadd.f32 %v406, %v582
      %v584 = vpop.f32.mrf.mxu0
      %v585 = vadd.f32 %v408, %v584
      %586 = vmatmul.bf16.gmra.mxu0 %v519
      %v587 = vpop.f32.mrf.mxu0
      %v588 = vadd.f32 %v411, %v587
      %v589 = vpop.f32.mrf.mxu0
      %v590 = vadd.f32 %v413, %v589
      %591 = vmatmul.bf16.gmra.mxu0 %v522
      %v592 = vpop.f32.mrf.mxu0
      %v593 = vadd.f32 %v416, %v592
      %v594 = vpop.f32.mrf.mxu0
      %v595 = vadd.f32 %v418, %v594
      %596 = vmatmul.bf16.gmra.mxu0 %v525
      %v597 = vpop.f32.mrf.mxu0
      %v598 = vadd.f32 %v421, %v597
      %v599 = vpop.f32.mrf.mxu0
      %v600 = vadd.f32 %v423, %v599
      %601 = vmatmul.bf16.gmra.mxu0 %v528
      %v602 = vpop.f32.mrf.mxu0
      %v603 = vadd.f32 %v426, %v602
      %v604 = vpop.f32.mrf.mxu0
      %v605 = vadd.f32 %v428, %v604
      %606 = vmatmul.bf16.gmra.mxu0 %v531
      %v607 = vpop.f32.mrf.mxu0
      %v608 = vadd.f32 %v431, %v607
      %v609 = vpop.f32.mrf.mxu0
      %v610 = vadd.f32 %v433, %v609
      %611 = vmatmul.bf16.gmra.mxu0 %v534
      %v612 = vpop.f32.mrf.mxu0
      %v613 = vadd.f32 %v436, %v612
      %v614 = vpop.f32.mrf.mxu0
      %v615 = vadd.f32 %v438, %v614
      %616 = vmatmul.bf16.gmra.mxu0 %v537
      %v617 = vpop.f32.mrf.mxu0
      %v618 = vadd.f32 %v441, %v617
      %v619 = vpop.f32.mrf.mxu0
      %v620 = vadd.f32 %v443, %v619
      %621 = vmatmul.bf16.gmra.mxu0 %v540
      %v622 = vpop.f32.mrf.mxu0
      %v623 = vadd.f32 %v446, %v622
      %v624 = vpop.f32.mrf.mxu0
      %v625 = vadd.f32 %v448, %v624
      %626 = vmatmul.bf16.gmra.mxu0 %v543
      %v627 = vpop.f32.mrf.mxu0
      %v628 = vadd.f32 %v451, %v627
      %v629 = vpop.f32.mrf.mxu0
      %v630 = vadd.f32 %v453, %v629
      %631 = vmatmul.bf16.gmra.mxu0 %v546
      %v632 = vpop.f32.mrf.mxu0
      %v633 = vadd.f32 %v456, %v632
      %v634 = vpop.f32.mrf.mxu0
      %v635 = vadd.f32 %v458, %v634
      %636 = vmatmul.bf16.gmra.mxu0 %v549
      %v637 = vpop.f32.mrf.mxu0
      %v638 = vadd.f32 %v461, %v637
      %v639 = vpop.f32.mrf.mxu0
      %v640 = vadd.f32 %v463, %v639
      %641 = vmatmul.bf16.gmra.mxu0 %v552
      %v642 = vpop.f32.mrf.mxu0
      %v643 = vadd.f32 %v466, %v642
      %v644 = vpop.f32.mrf.mxu0
      %v645 = vadd.f32 %v468, %v644
      %646 = vmatmul.bf16.gmra.mxu0 %v555
      %v647 = vpop.f32.mrf.mxu0
      %v648 = vadd.f32 %v471, %v647
      %v649 = vpop.f32.mrf.mxu0
      %v650 = vadd.f32 %v473, %v649
      %651 = vmatmul.bf16.gmra.mxu0 %v558
      %v652 = vpop.f32.mrf.mxu0
      %v653 = vadd.f32 %v476, %v652
      %v654 = vpop.f32.mrf.mxu0
      %v655 = vadd.f32 %v478, %v654
      %656 = vmatmul.bf16.gmra.mxu0 %v561
      %v657 = vpop.f32.mrf.mxu0
      %v658 = vadd.f32 %v481, %v657
      %v659 = vpop.f32.mrf.mxu0
      %v660 = vadd.f32 %v483, %v659
      %661 = vdwg.mxu0
      %v662 = vld [vmem:[%s168 + $0x2] sm:$0xff]
      %v663 = vld [vmem:[%s168 + $0xa] sm:$0xff]
      %v664 = vld [vmem:[%s168 + $0x12] sm:$0xff]
      %v665 = vld [vmem:[%s168 + $0x1a] sm:$0xff]
      %v666 = vld [vmem:[%s168 + $0x22] sm:$0xff]
      %v667 = vld [vmem:[%s168 + $0x2a] sm:$0xff]
      %v668 = vld [vmem:[%s168 + $0x32] sm:$0xff]
      %v669 = vld [vmem:[%s168 + $0x3a] sm:$0xff]
      %v670 = vld [vmem:[%s168 + $0x42] sm:$0xff]
      %v671 = vld [vmem:[%s168 + $0x4a] sm:$0xff]
      %v672 = vld [vmem:[%s168 + $0x52] sm:$0xff]
      %v673 = vld [vmem:[%s168 + $0x5a] sm:$0xff]
      %v674 = vld [vmem:[%s168 + $0x62] sm:$0xff]
      %v675 = vld [vmem:[%s168 + $0x6a] sm:$0xff]
      %v676 = vld [vmem:[%s168 + $0x72] sm:$0xff]
      %v677 = vld [vmem:[%s168 + $0x7a] sm:$0xff]
      %v678 = vld [vmem:[%s168 + $0x82] sm:$0xff]
      %v679 = vld [vmem:[%s168 + $0x8a] sm:$0xff]
      %v680 = vld [vmem:[%s168 + $0x92] sm:$0xff]
      %v681 = vld [vmem:[%s168 + $0x9a] sm:$0xff]
      %v682 = vld [vmem:[%s168 + $0xa2] sm:$0xff]
      %v683 = vld [vmem:[%s168 + $0xaa] sm:$0xff]
      %v684 = vld [vmem:[%s168 + $0xb2] sm:$0xff]
      %v685 = vld [vmem:[%s168 + $0xba] sm:$0xff]
      %v686 = vld [vmem:[%s168 + $0xc2] sm:$0xff]
      %v687 = vld [vmem:[%s168 + $0xca] sm:$0xff]
      %v688 = vld [vmem:[%s168 + $0xd2] sm:$0xff]
      %v689 = vld [vmem:[%s168 + $0xda] sm:$0xff]
      %v690 = vld [vmem:[%s168 + $0xe2] sm:$0xff]
      %v691 = vld [vmem:[%s168 + $0xea] sm:$0xff]
      %v692 = vld [vmem:[%s168 + $0xf2] sm:$0xff]
      %v693 = vld [vmem:[%s168 + $0xfa] sm:$0xff]
      %v694 = vld [vmem:[%s168 + $0x102] sm:$0xff]
      %v695 = vld [vmem:[%s168 + $0x10a] sm:$0xff]
      %v696 = vld [vmem:[%s168 + $0x112] sm:$0xff]
      %v697 = vld [vmem:[%s168 + $0x11a] sm:$0xff]
      %v698 = vpack.c.bf16 %v663, %v662
      %v699 = vpack.c.bf16 %v665, %v664
      %v700 = vpack.c.bf16 %v667, %v666
      %v701 = vpack.c.bf16 %v669, %v668
      %v702 = vpack.c.bf16 %v671, %v670
      %v703 = vpack.c.bf16 %v673, %v672
      %v704 = vpack.c.bf16 %v675, %v674
      %v705 = vpack.c.bf16 %v677, %v676
      %v706 = vpack.c.bf16 %v679, %v678
      %v707 = vpack.c.bf16 %v681, %v680
      %v708 = vpack.c.bf16 %v683, %v682
      %v709 = vpack.c.bf16 %v685, %v684
      %v710 = vpack.c.bf16 %v687, %v686
      %v711 = vpack.c.bf16 %v689, %v688
      %v712 = vpack.c.bf16 %v691, %v690
      %v713 = vpack.c.bf16 %v693, %v692
      %v714 = vpack.c.bf16 %v695, %v694
      %v715 = vpack.c.bf16 %v697, %v696
      %s716 = scalar_lea.vmem %s172, 64
      %v717 = vld [vmem:[%s716] sm:$0xf]
      %v718 = vld [vmem:[%s716 + $0x4] sm:$0xf]
      %v719 = vld [vmem:[%s716 + $0x8] sm:$0xf]
      %v720 = vld [vmem:[%s716 + $0xc] sm:$0xf]
      %v721 = vld [vmem:[%s716 + $0x10] sm:$0xf]
      %v722 = vld [vmem:[%s716 + $0x14] sm:$0xf]
      %v723 = vld [vmem:[%s716 + $0x18] sm:$0xf]
      %v724 = vld [vmem:[%s716 + $0x1c] sm:$0xf]
      %v733 = vunpack.c.l.b16 %v717
      %v734 = vunpack.c.l.b16 %v718
      %v735 = vunpack.c.l.b16 %v719
      %v736 = vunpack.c.l.b16 %v720
      %v737 = vunpack.c.l.b16 %v721
      %v738 = vunpack.c.l.b16 %v722
      %v739 = vunpack.c.l.b16 %v723
      %v740 = vunpack.c.l.b16 %v724
      %v741 = vpack.c.b16 %v734, %v733
      %v742 = vpack.c.b16 %v736, %v735
      %v743 = vpack.c.b16 %v738, %v737
      %v744 = vpack.c.b16 %v740, %v739
      %v750 = vsel %vm331, %v698, 0
      %v753 = vsel %vm331, %v699, 0
      %v756 = vsel %vm331, %v700, 0
      %v759 = vsel %vm331, %v701, 0
      %v762 = vsel %vm331, %v702, 0
      %v765 = vsel %vm331, %v703, 0
      %v768 = vsel %vm331, %v704, 0
      %v771 = vsel %vm331, %v705, 0
      %v774 = vsel %vm331, %v706, 0
      %v777 = vsel %vm331, %v707, 0
      %v780 = vsel %vm331, %v708, 0
      %v783 = vsel %vm331, %v709, 0
      %v786 = vsel %vm331, %v710, 0
      %v789 = vsel %vm331, %v711, 0
      %v792 = vsel %vm331, %v712, 0
      %v795 = vsel %vm331, %v713, 0
      %v798 = vsel %vm331, %v714, 0
      %v801 = vsel %vm331, %v715, 0
      %803 = vmatpush.bf16.msra.mxu0 0
      %804 = vmatpush.bf16.msra.mxu0 0
      %805 = vmatpush.bf16.msra.mxu0 0
      %806 = vmatpush.bf16.msra.mxu0 0
      %807 = vmatpush.bf16.msra.mxu0 %v744
      %808 = vmatpush.bf16.msra.mxu0 %v743
      %809 = vmatpush.bf16.msra.mxu0 %v742
      %810 = vmatpush.bf16.msra.mxu0 %v741
      %811 = vmatmul.bf16.gmra.mxu0 %v750
      %v812 = vpop.f32.mrf.mxu0
      %v813 = vadd.f32 0.0, %v812
      %v814 = vpop.f32.mrf.mxu0
      %v815 = vadd.f32 0.0, %v814
      %816 = vmatmul.bf16.gmra.mxu0 %v753
      %v817 = vpop.f32.mrf.mxu0
      %v818 = vadd.f32 0.0, %v817
      %v819 = vpop.f32.mrf.mxu0
      %v820 = vadd.f32 0.0, %v819
      %821 = vmatmul.bf16.gmra.mxu0 %v756
      %v822 = vpop.f32.mrf.mxu0
      %v823 = vadd.f32 0.0, %v822
      %v824 = vpop.f32.mrf.mxu0
      %v825 = vadd.f32 0.0, %v824
      %826 = vmatmul.bf16.gmra.mxu0 %v759
      %v827 = vpop.f32.mrf.mxu0
      %v828 = vadd.f32 0.0, %v827
      %v829 = vpop.f32.mrf.mxu0
      %v830 = vadd.f32 0.0, %v829
      %831 = vmatmul.bf16.gmra.mxu0 %v762
      %v832 = vpop.f32.mrf.mxu0
      %v833 = vadd.f32 0.0, %v832
      %v834 = vpop.f32.mrf.mxu0
      %v835 = vadd.f32 0.0, %v834
      %836 = vmatmul.bf16.gmra.mxu0 %v765
      %v837 = vpop.f32.mrf.mxu0
      %v838 = vadd.f32 0.0, %v837
      %v839 = vpop.f32.mrf.mxu0
      %v840 = vadd.f32 0.0, %v839
      %841 = vmatmul.bf16.gmra.mxu0 %v768
      %v842 = vpop.f32.mrf.mxu0
      %v843 = vadd.f32 0.0, %v842
      %v844 = vpop.f32.mrf.mxu0
      %v845 = vadd.f32 0.0, %v844
      %846 = vmatmul.bf16.gmra.mxu0 %v771
      %v847 = vpop.f32.mrf.mxu0
      %v848 = vadd.f32 0.0, %v847
      %v849 = vpop.f32.mrf.mxu0
      %v850 = vadd.f32 0.0, %v849
      %851 = vmatmul.bf16.gmra.mxu0 %v774
      %v852 = vpop.f32.mrf.mxu0
      %v853 = vadd.f32 0.0, %v852
      %v854 = vpop.f32.mrf.mxu0
      %v855 = vadd.f32 0.0, %v854
      %856 = vmatmul.bf16.gmra.mxu0 %v777
      %v857 = vpop.f32.mrf.mxu0
      %v858 = vadd.f32 0.0, %v857
      %v859 = vpop.f32.mrf.mxu0
      %v860 = vadd.f32 0.0, %v859
      %861 = vmatmul.bf16.gmra.mxu0 %v780
      %v862 = vpop.f32.mrf.mxu0
      %v863 = vadd.f32 0.0, %v862
      %v864 = vpop.f32.mrf.mxu0
      %v865 = vadd.f32 0.0, %v864
      %866 = vmatmul.bf16.gmra.mxu0 %v783
      %v867 = vpop.f32.mrf.mxu0
      %v868 = vadd.f32 0.0, %v867
      %v869 = vpop.f32.mrf.mxu0
      %v870 = vadd.f32 0.0, %v869
      %871 = vmatmul.bf16.gmra.mxu0 %v786
      %v872 = vpop.f32.mrf.mxu0
      %v873 = vadd.f32 0.0, %v872
      %v874 = vpop.f32.mrf.mxu0
      %v875 = vadd.f32 0.0, %v874
      %876 = vmatmul.bf16.gmra.mxu0 %v789
      %v877 = vpop.f32.mrf.mxu0
      %v878 = vadd.f32 0.0, %v877
      %v879 = vpop.f32.mrf.mxu0
      %v880 = vadd.f32 0.0, %v879
      %881 = vmatmul.bf16.gmra.mxu0 %v792
      %v882 = vpop.f32.mrf.mxu0
      %v883 = vadd.f32 0.0, %v882
      %v884 = vpop.f32.mrf.mxu0
      %v885 = vadd.f32 0.0, %v884
      %886 = vmatmul.bf16.gmra.mxu0 %v795
      %v887 = vpop.f32.mrf.mxu0
      %v888 = vadd.f32 0.0, %v887
      %v889 = vpop.f32.mrf.mxu0
      %v890 = vadd.f32 0.0, %v889
      %891 = vmatmul.bf16.gmra.mxu0 %v798
      %v892 = vpop.f32.mrf.mxu0
      %v893 = vadd.f32 0.0, %v892
      %v894 = vpop.f32.mrf.mxu0
      %v895 = vadd.f32 0.0, %v894
      %896 = vmatmul.bf16.gmra.mxu0 %v801
      %v897 = vpop.f32.mrf.mxu0
      %v898 = vadd.f32 0.0, %v897
      %v899 = vpop.f32.mrf.mxu0
      %v900 = vadd.f32 0.0, %v899
      %901 = vdwg.mxu0
      %v902 = vadd.f32 %v573, %v813
      %v903 = vadd.f32 %v575, %v815
      %v904 = vadd.f32 %v578, %v818
      %v905 = vadd.f32 %v580, %v820
      %v906 = vadd.f32 %v583, %v823
      %v907 = vadd.f32 %v585, %v825
      %v908 = vadd.f32 %v588, %v828
      %v909 = vadd.f32 %v590, %v830
      %v910 = vadd.f32 %v593, %v833
      %v911 = vadd.f32 %v595, %v835
      %v912 = vadd.f32 %v598, %v838
      %v913 = vadd.f32 %v600, %v840
      %v914 = vadd.f32 %v603, %v843
      %v915 = vadd.f32 %v605, %v845
      %v916 = vadd.f32 %v608, %v848
      %v917 = vadd.f32 %v610, %v850
      %v918 = vadd.f32 %v613, %v853
      %v919 = vadd.f32 %v615, %v855
      %v920 = vadd.f32 %v618, %v858
      %v921 = vadd.f32 %v620, %v860
      %v922 = vadd.f32 %v623, %v863
      %v923 = vadd.f32 %v625, %v865
      %v924 = vadd.f32 %v628, %v868
      %v925 = vadd.f32 %v630, %v870
      %v926 = vadd.f32 %v633, %v873
      %v927 = vadd.f32 %v635, %v875
      %v928 = vadd.f32 %v638, %v878
      %v929 = vadd.f32 %v640, %v880
      %v930 = vadd.f32 %v643, %v883
      %v931 = vadd.f32 %v645, %v885
      %v932 = vadd.f32 %v648, %v888
      %v933 = vadd.f32 %v650, %v890
      %v934 = vadd.f32 %v653, %v893
      %v935 = vadd.f32 %v655, %v895
      %v936 = vadd.f32 %v658, %v898
      %v937 = vadd.f32 %v660, %v900
      %v938 = vld [vmem:[%s168 + $0x12] sm:$0xff]
      %v939 = vld [vmem:[%s168 + $0x1a] sm:$0xff]
      %v940 = vld [vmem:[%s168 + $0x22] sm:$0xff]
      %v941 = vld [vmem:[%s168 + $0x2a] sm:$0xff]
      %v942 = vld [vmem:[%s168 + $0x32] sm:$0xff]
      %v943 = vld [vmem:[%s168 + $0x3a] sm:$0xff]
      %v944 = vld [vmem:[%s168 + $0x42] sm:$0xff]
      %v945 = vld [vmem:[%s168 + $0x4a] sm:$0xff]
      %v946 = vld [vmem:[%s168 + $0x52] sm:$0xff]
      %v947 = vld [vmem:[%s168 + $0x5a] sm:$0xff]
      %v948 = vld [vmem:[%s168 + $0x62] sm:$0xff]
      %v949 = vld [vmem:[%s168 + $0x6a] sm:$0xff]
      %v950 = vld [vmem:[%s168 + $0x72] sm:$0xff]
      %v951 = vld [vmem:[%s168 + $0x7a] sm:$0xff]
      %v952 = vld [vmem:[%s168 + $0x82] sm:$0xff]
      %v953 = vld [vmem:[%s168 + $0x8a] sm:$0xff]
      %v954 = vld [vmem:[%s168 + $0x92] sm:$0xff]
      %v955 = vld [vmem:[%s168 + $0x9a] sm:$0xff]
      %v956 = vld [vmem:[%s168 + $0xa2] sm:$0xff]
      %v957 = vld [vmem:[%s168 + $0xaa] sm:$0xff]
      %v958 = vld [vmem:[%s168 + $0xb2] sm:$0xff]
      %v959 = vld [vmem:[%s168 + $0xba] sm:$0xff]
      %v960 = vld [vmem:[%s168 + $0xc2] sm:$0xff]
      %v961 = vld [vmem:[%s168 + $0xca] sm:$0xff]
      %v962 = vld [vmem:[%s168 + $0xd2] sm:$0xff]
      %v963 = vld [vmem:[%s168 + $0xda] sm:$0xff]
      %v964 = vld [vmem:[%s168 + $0xe2] sm:$0xff]
      %v965 = vld [vmem:[%s168 + $0xea] sm:$0xff]
      %v966 = vld [vmem:[%s168 + $0xf2] sm:$0xff]
      %v967 = vld [vmem:[%s168 + $0xfa] sm:$0xff]
      %v968 = vld [vmem:[%s168 + $0x102] sm:$0xff]
      %v969 = vld [vmem:[%s168 + $0x10a] sm:$0xff]
      %v970 = vld [vmem:[%s168 + $0x112] sm:$0xff]
      %v971 = vld [vmem:[%s168 + $0x11a] sm:$0xff]
      %v972 = vld [vmem:[%s168 + $0x122] sm:$0xff]
      %v973 = vld [vmem:[%s168 + $0x12a] sm:$0xff]
      %v974 = vpack.c.bf16 %v939, %v938
      %v975 = vpack.c.bf16 %v941, %v940
      %v976 = vpack.c.bf16 %v943, %v942
      %v977 = vpack.c.bf16 %v945, %v944
      %v978 = vpack.c.bf16 %v947, %v946
      %v979 = vpack.c.bf16 %v949, %v948
      %v980 = vpack.c.bf16 %v951, %v950
      %v981 = vpack.c.bf16 %v953, %v952
      %v982 = vpack.c.bf16 %v955, %v954
      %v983 = vpack.c.bf16 %v957, %v956
      %v984 = vpack.c.bf16 %v959, %v958
      %v985 = vpack.c.bf16 %v961, %v960
      %v986 = vpack.c.bf16 %v963, %v962
      %v987 = vpack.c.bf16 %v965, %v964
      %v988 = vpack.c.bf16 %v967, %v966
      %v989 = vpack.c.bf16 %v969, %v968
      %v990 = vpack.c.bf16 %v971, %v970
      %v991 = vpack.c.bf16 %v973, %v972
      %s992 = scalar_lea.vmem %s172, 96
      %v993 = vld [vmem:[%s992] sm:$0xf]
      %v994 = vld [vmem:[%s992 + $0x4] sm:$0xf]
      %v995 = vld [vmem:[%s992 + $0x8] sm:$0xf]
      %v996 = vld [vmem:[%s992 + $0xc] sm:$0xf]
      %v997 = vld [vmem:[%s992 + $0x10] sm:$0xf]
      %v998 = vld [vmem:[%s992 + $0x14] sm:$0xf]
      %v999 = vld [vmem:[%s992 + $0x18] sm:$0xf]
      %v1000 = vld [vmem:[%s992 + $0x1c] sm:$0xf]
      %v1009 = vunpack.c.l.b16 %v993
      %v1010 = vunpack.c.l.b16 %v994
      %v1011 = vunpack.c.l.b16 %v995
      %v1012 = vunpack.c.l.b16 %v996
      %v1013 = vunpack.c.l.b16 %v997
      %v1014 = vunpack.c.l.b16 %v998
      %v1015 = vunpack.c.l.b16 %v999
      %v1016 = vunpack.c.l.b16 %v1000
      %v1017 = vpack.c.b16 %v1010, %v1009
      %v1018 = vpack.c.b16 %v1012, %v1011
      %v1019 = vpack.c.b16 %v1014, %v1013
      %v1020 = vpack.c.b16 %v1016, %v1015
      %v1026 = vsel %vm331, %v974, 0
      %v1029 = vsel %vm331, %v975, 0
      %v1032 = vsel %vm331, %v976, 0
      %v1035 = vsel %vm331, %v977, 0
      %v1038 = vsel %vm331, %v978, 0
      %v1041 = vsel %vm331, %v979, 0
      %v1044 = vsel %vm331, %v980, 0
      %v1047 = vsel %vm331, %v981, 0
      %v1050 = vsel %vm331, %v982, 0
      %v1053 = vsel %vm331, %v983, 0
      %v1056 = vsel %vm331, %v984, 0
      %v1059 = vsel %vm331, %v985, 0
      %v1062 = vsel %vm331, %v986, 0
      %v1065 = vsel %vm331, %v987, 0
      %v1068 = vsel %vm331, %v988, 0
      %v1071 = vsel %vm331, %v989, 0
      %v1074 = vsel %vm331, %v990, 0
      %v1077 = vsel %vm331, %v991, 0
      %1079 = vmatpush.bf16.msra.mxu0 0
      %1080 = vmatpush.bf16.msra.mxu0 0
      %1081 = vmatpush.bf16.msra.mxu0 0
      %1082 = vmatpush.bf16.msra.mxu0 0
      %1083 = vmatpush.bf16.msra.mxu0 %v1020
      %1084 = vmatpush.bf16.msra.mxu0 %v1019
      %1085 = vmatpush.bf16.msra.mxu0 %v1018
      %1086 = vmatpush.bf16.msra.mxu0 %v1017
      %1087 = vmatmul.bf16.gmra.mxu0 %v1026
      %v1088 = vpop.f32.mrf.mxu0
      %v1089 = vadd.f32 0.0, %v1088
      %v1090 = vpop.f32.mrf.mxu0
      %v1091 = vadd.f32 0.0, %v1090
      %1092 = vmatmul.bf16.gmra.mxu0 %v1029
      %v1093 = vpop.f32.mrf.mxu0
      %v1094 = vadd.f32 0.0, %v1093
      %v1095 = vpop.f32.mrf.mxu0
      %v1096 = vadd.f32 0.0, %v1095
      %1097 = vmatmul.bf16.gmra.mxu0 %v1032
      %v1098 = vpop.f32.mrf.mxu0
      %v1099 = vadd.f32 0.0, %v1098
      %v1100 = vpop.f32.mrf.mxu0
      %v1101 = vadd.f32 0.0, %v1100
      %1102 = vmatmul.bf16.gmra.mxu0 %v1035
      %v1103 = vpop.f32.mrf.mxu0
      %v1104 = vadd.f32 0.0, %v1103
      %v1105 = vpop.f32.mrf.mxu0
      %v1106 = vadd.f32 0.0, %v1105
      %1107 = vmatmul.bf16.gmra.mxu0 %v1038
      %v1108 = vpop.f32.mrf.mxu0
      %v1109 = vadd.f32 0.0, %v1108
      %v1110 = vpop.f32.mrf.mxu0
      %v1111 = vadd.f32 0.0, %v1110
      %1112 = vmatmul.bf16.gmra.mxu0 %v1041
      %v1113 = vpop.f32.mrf.mxu0
      %v1114 = vadd.f32 0.0, %v1113
      %v1115 = vpop.f32.mrf.mxu0
      %v1116 = vadd.f32 0.0, %v1115
      %1117 = vmatmul.bf16.gmra.mxu0 %v1044
      %v1118 = vpop.f32.mrf.mxu0
      %v1119 = vadd.f32 0.0, %v1118
      %v1120 = vpop.f32.mrf.mxu0
      %v1121 = vadd.f32 0.0, %v1120
      %1122 = vmatmul.bf16.gmra.mxu0 %v1047
      %v1123 = vpop.f32.mrf.mxu0
      %v1124 = vadd.f32 0.0, %v1123
      %v1125 = vpop.f32.mrf.mxu0
      %v1126 = vadd.f32 0.0, %v1125
      %1127 = vmatmul.bf16.gmra.mxu0 %v1050
      %v1128 = vpop.f32.mrf.mxu0
      %v1129 = vadd.f32 0.0, %v1128
      %v1130 = vpop.f32.mrf.mxu0
      %v1131 = vadd.f32 0.0, %v1130
      %1132 = vmatmul.bf16.gmra.mxu0 %v1053
      %v1133 = vpop.f32.mrf.mxu0
      %v1134 = vadd.f32 0.0, %v1133
      %v1135 = vpop.f32.mrf.mxu0
      %v1136 = vadd.f32 0.0, %v1135
      %1137 = vmatmul.bf16.gmra.mxu0 %v1056
      %v1138 = vpop.f32.mrf.mxu0
      %v1139 = vadd.f32 0.0, %v1138
      %v1140 = vpop.f32.mrf.mxu0
      %v1141 = vadd.f32 0.0, %v1140
      %1142 = vmatmul.bf16.gmra.mxu0 %v1059
      %v1143 = vpop.f32.mrf.mxu0
      %v1144 = vadd.f32 0.0, %v1143
      %v1145 = vpop.f32.mrf.mxu0
      %v1146 = vadd.f32 0.0, %v1145
      %1147 = vmatmul.bf16.gmra.mxu0 %v1062
      %v1148 = vpop.f32.mrf.mxu0
      %v1149 = vadd.f32 0.0, %v1148
      %v1150 = vpop.f32.mrf.mxu0
      %v1151 = vadd.f32 0.0, %v1150
      %1152 = vmatmul.bf16.gmra.mxu0 %v1065
      %v1153 = vpop.f32.mrf.mxu0
      %v1154 = vadd.f32 0.0, %v1153
      %v1155 = vpop.f32.mrf.mxu0
      %v1156 = vadd.f32 0.0, %v1155
      %1157 = vmatmul.bf16.gmra.mxu0 %v1068
      %v1158 = vpop.f32.mrf.mxu0
      %v1159 = vadd.f32 0.0, %v1158
      %v1160 = vpop.f32.mrf.mxu0
      %v1161 = vadd.f32 0.0, %v1160
      %1162 = vmatmul.bf16.gmra.mxu0 %v1071
      %v1163 = vpop.f32.mrf.mxu0
      %v1164 = vadd.f32 0.0, %v1163
      %v1165 = vpop.f32.mrf.mxu0
      %v1166 = vadd.f32 0.0, %v1165
      %1167 = vmatmul.bf16.gmra.mxu0 %v1074
      %v1168 = vpop.f32.mrf.mxu0
      %v1169 = vadd.f32 0.0, %v1168
      %v1170 = vpop.f32.mrf.mxu0
      %v1171 = vadd.f32 0.0, %v1170
      %1172 = vmatmul.bf16.gmra.mxu0 %v1077
      %v1173 = vpop.f32.mrf.mxu0
      %v1174 = vadd.f32 0.0, %v1173
      %v1175 = vpop.f32.mrf.mxu0
      %v1176 = vadd.f32 0.0, %v1175
      %1177 = vdwg.mxu0
      %v1178 = vadd.f32 %v902, %v1089
      %v1179 = vadd.f32 %v903, %v1091
      %v1180 = vadd.f32 %v904, %v1094
      %v1181 = vadd.f32 %v905, %v1096
      %v1182 = vadd.f32 %v906, %v1099
      %v1183 = vadd.f32 %v907, %v1101
      %v1184 = vadd.f32 %v908, %v1104
      %v1185 = vadd.f32 %v909, %v1106
      %v1186 = vadd.f32 %v910, %v1109
      %v1187 = vadd.f32 %v911, %v1111
      %v1188 = vadd.f32 %v912, %v1114
      %v1189 = vadd.f32 %v913, %v1116
      %v1190 = vadd.f32 %v914, %v1119
      %v1191 = vadd.f32 %v915, %v1121
      %v1192 = vadd.f32 %v916, %v1124
      %v1193 = vadd.f32 %v917, %v1126
      %v1194 = vadd.f32 %v918, %v1129
      %v1195 = vadd.f32 %v919, %v1131
      %v1196 = vadd.f32 %v920, %v1134
      %v1197 = vadd.f32 %v921, %v1136
      %v1198 = vadd.f32 %v922, %v1139
      %v1199 = vadd.f32 %v923, %v1141
      %v1200 = vadd.f32 %v924, %v1144
      %v1201 = vadd.f32 %v925, %v1146
      %v1202 = vadd.f32 %v926, %v1149
      %v1203 = vadd.f32 %v927, %v1151
      %v1204 = vadd.f32 %v928, %v1154
      %v1205 = vadd.f32 %v929, %v1156
      %v1206 = vadd.f32 %v930, %v1159
      %v1207 = vadd.f32 %v931, %v1161
      %v1208 = vadd.f32 %v932, %v1164
      %v1209 = vadd.f32 %v933, %v1166
      %v1210 = vadd.f32 %v934, %v1169
      %v1211 = vadd.f32 %v935, %v1171
      %v1212 = vadd.f32 %v936, %v1174
      %v1213 = vadd.f32 %v937, %v1176
      %v1214 = vld [vmem:[%s168 + $0x13] sm:$0xff]
      %v1215 = vld [vmem:[%s168 + $0x1b] sm:$0xff]
      %v1216 = vld [vmem:[%s168 + $0x23] sm:$0xff]
      %v1217 = vld [vmem:[%s168 + $0x2b] sm:$0xff]
      %v1218 = vld [vmem:[%s168 + $0x33] sm:$0xff]
      %v1219 = vld [vmem:[%s168 + $0x3b] sm:$0xff]
      %v1220 = vld [vmem:[%s168 + $0x43] sm:$0xff]
      %v1221 = vld [vmem:[%s168 + $0x4b] sm:$0xff]
      %v1222 = vld [vmem:[%s168 + $0x53] sm:$0xff]
      %v1223 = vld [vmem:[%s168 + $0x5b] sm:$0xff]
      %v1224 = vld [vmem:[%s168 + $0x63] sm:$0xff]
      %v1225 = vld [vmem:[%s168 + $0x6b] sm:$0xff]
      %v1226 = vld [vmem:[%s168 + $0x73] sm:$0xff]
      %v1227 = vld [vmem:[%s168 + $0x7b] sm:$0xff]
      %v1228 = vld [vmem:[%s168 + $0x83] sm:$0xff]
      %v1229 = vld [vmem:[%s168 + $0x8b] sm:$0xff]
      %v1230 = vld [vmem:[%s168 + $0x93] sm:$0xff]
      %v1231 = vld [vmem:[%s168 + $0x9b] sm:$0xff]
      %v1232 = vld [vmem:[%s168 + $0xa3] sm:$0xff]
      %v1233 = vld [vmem:[%s168 + $0xab] sm:$0xff]
      %v1234 = vld [vmem:[%s168 + $0xb3] sm:$0xff]
      %v1235 = vld [vmem:[%s168 + $0xbb] sm:$0xff]
      %v1236 = vld [vmem:[%s168 + $0xc3] sm:$0xff]
      %v1237 = vld [vmem:[%s168 + $0xcb] sm:$0xff]
      %v1238 = vld [vmem:[%s168 + $0xd3] sm:$0xff]
      %v1239 = vld [vmem:[%s168 + $0xdb] sm:$0xff]
      %v1240 = vld [vmem:[%s168 + $0xe3] sm:$0xff]
      %v1241 = vld [vmem:[%s168 + $0xeb] sm:$0xff]
      %v1242 = vld [vmem:[%s168 + $0xf3] sm:$0xff]
      %v1243 = vld [vmem:[%s168 + $0xfb] sm:$0xff]
      %v1244 = vld [vmem:[%s168 + $0x103] sm:$0xff]
      %v1245 = vld [vmem:[%s168 + $0x10b] sm:$0xff]
      %v1246 = vld [vmem:[%s168 + $0x113] sm:$0xff]
      %v1247 = vld [vmem:[%s168 + $0x11b] sm:$0xff]
      %v1248 = vld [vmem:[%s168 + $0x123] sm:$0xff]
      %v1249 = vld [vmem:[%s168 + $0x12b] sm:$0xff]
      %v1250 = vpack.c.bf16 %v1215, %v1214
      %v1251 = vpack.c.bf16 %v1217, %v1216
      %v1252 = vpack.c.bf16 %v1219, %v1218
      %v1253 = vpack.c.bf16 %v1221, %v1220
      %v1254 = vpack.c.bf16 %v1223, %v1222
      %v1255 = vpack.c.bf16 %v1225, %v1224
      %v1256 = vpack.c.bf16 %v1227, %v1226
      %v1257 = vpack.c.bf16 %v1229, %v1228
      %v1258 = vpack.c.bf16 %v1231, %v1230
      %v1259 = vpack.c.bf16 %v1233, %v1232
      %v1260 = vpack.c.bf16 %v1235, %v1234
      %v1261 = vpack.c.bf16 %v1237, %v1236
      %v1262 = vpack.c.bf16 %v1239, %v1238
      %v1263 = vpack.c.bf16 %v1241, %v1240
      %v1264 = vpack.c.bf16 %v1243, %v1242
      %v1265 = vpack.c.bf16 %v1245, %v1244
      %v1266 = vpack.c.bf16 %v1247, %v1246
      %v1267 = vpack.c.bf16 %v1249, %v1248
      %s1268 = scalar_lea.vmem %s172, 128
      %v1269 = vld [vmem:[%s1268] sm:$0xf]
      %v1270 = vld [vmem:[%s1268 + $0x4] sm:$0xf]
      %v1271 = vld [vmem:[%s1268 + $0x8] sm:$0xf]
      %v1272 = vld [vmem:[%s1268 + $0xc] sm:$0xf]
      %v1273 = vld [vmem:[%s1268 + $0x10] sm:$0xf]
      %v1274 = vld [vmem:[%s1268 + $0x14] sm:$0xf]
      %v1275 = vld [vmem:[%s1268 + $0x18] sm:$0xf]
      %v1276 = vld [vmem:[%s1268 + $0x1c] sm:$0xf]
      %v1285 = vunpack.c.l.b16 %v1269
      %v1286 = vunpack.c.l.b16 %v1270
      %v1287 = vunpack.c.l.b16 %v1271
      %v1288 = vunpack.c.l.b16 %v1272
      %v1289 = vunpack.c.l.b16 %v1273
      %v1290 = vunpack.c.l.b16 %v1274
      %v1291 = vunpack.c.l.b16 %v1275
      %v1292 = vunpack.c.l.b16 %v1276
      %v1293 = vpack.c.b16 %v1286, %v1285
      %v1294 = vpack.c.b16 %v1288, %v1287
      %v1295 = vpack.c.b16 %v1290, %v1289
      %v1296 = vpack.c.b16 %v1292, %v1291
      %v1302 = vsel %vm331, %v1250, 0
      %v1305 = vsel %vm331, %v1251, 0
      %v1308 = vsel %vm331, %v1252, 0
      %v1311 = vsel %vm331, %v1253, 0
      %v1314 = vsel %vm331, %v1254, 0
      %v1317 = vsel %vm331, %v1255, 0
      %v1320 = vsel %vm331, %v1256, 0
      %v1323 = vsel %vm331, %v1257, 0
      %v1326 = vsel %vm331, %v1258, 0
      %v1329 = vsel %vm331, %v1259, 0
      %v1332 = vsel %vm331, %v1260, 0
      %v1335 = vsel %vm331, %v1261, 0
      %v1338 = vsel %vm331, %v1262, 0
      %v1341 = vsel %vm331, %v1263, 0
      %v1344 = vsel %vm331, %v1264, 0
      %v1347 = vsel %vm331, %v1265, 0
      %v1350 = vsel %vm331, %v1266, 0
      %v1353 = vsel %vm331, %v1267, 0
      %1355 = vmatpush.bf16.msra.mxu0 0
      %1356 = vmatpush.bf16.msra.mxu0 0
      %1357 = vmatpush.bf16.msra.mxu0 0
      %1358 = vmatpush.bf16.msra.mxu0 0
      %1359 = vmatpush.bf16.msra.mxu0 %v1296
      %1360 = vmatpush.bf16.msra.mxu0 %v1295
      %1361 = vmatpush.bf16.msra.mxu0 %v1294
      %1362 = vmatpush.bf16.msra.mxu0 %v1293
      %1363 = vmatmul.bf16.gmra.mxu0 %v1302
      %v1364 = vpop.f32.mrf.mxu0
      %v1365 = vadd.f32 0.0, %v1364
      %v1366 = vpop.f32.mrf.mxu0
      %v1367 = vadd.f32 0.0, %v1366
      %1368 = vmatmul.bf16.gmra.mxu0 %v1305
      %v1369 = vpop.f32.mrf.mxu0
      %v1370 = vadd.f32 0.0, %v1369
      %v1371 = vpop.f32.mrf.mxu0
      %v1372 = vadd.f32 0.0, %v1371
      %1373 = vmatmul.bf16.gmra.mxu0 %v1308
      %v1374 = vpop.f32.mrf.mxu0
      %v1375 = vadd.f32 0.0, %v1374
      %v1376 = vpop.f32.mrf.mxu0
      %v1377 = vadd.f32 0.0, %v1376
      %1378 = vmatmul.bf16.gmra.mxu0 %v1311
      %v1379 = vpop.f32.mrf.mxu0
      %v1380 = vadd.f32 0.0, %v1379
      %v1381 = vpop.f32.mrf.mxu0
      %v1382 = vadd.f32 0.0, %v1381
      %1383 = vmatmul.bf16.gmra.mxu0 %v1314
      %v1384 = vpop.f32.mrf.mxu0
      %v1385 = vadd.f32 0.0, %v1384
      %v1386 = vpop.f32.mrf.mxu0
      %v1387 = vadd.f32 0.0, %v1386
      %1388 = vmatmul.bf16.gmra.mxu0 %v1317
      %v1389 = vpop.f32.mrf.mxu0
      %v1390 = vadd.f32 0.0, %v1389
      %v1391 = vpop.f32.mrf.mxu0
      %v1392 = vadd.f32 0.0, %v1391
      %1393 = vmatmul.bf16.gmra.mxu0 %v1320
      %v1394 = vpop.f32.mrf.mxu0
      %v1395 = vadd.f32 0.0, %v1394
      %v1396 = vpop.f32.mrf.mxu0
      %v1397 = vadd.f32 0.0, %v1396
      %1398 = vmatmul.bf16.gmra.mxu0 %v1323
      %v1399 = vpop.f32.mrf.mxu0
      %v1400 = vadd.f32 0.0, %v1399
      %v1401 = vpop.f32.mrf.mxu0
      %v1402 = vadd.f32 0.0, %v1401
      %1403 = vmatmul.bf16.gmra.mxu0 %v1326
      %v1404 = vpop.f32.mrf.mxu0
      %v1405 = vadd.f32 0.0, %v1404
      %v1406 = vpop.f32.mrf.mxu0
      %v1407 = vadd.f32 0.0, %v1406
      %1408 = vmatmul.bf16.gmra.mxu0 %v1329
      %v1409 = vpop.f32.mrf.mxu0
      %v1410 = vadd.f32 0.0, %v1409
      %v1411 = vpop.f32.mrf.mxu0
      %v1412 = vadd.f32 0.0, %v1411
      %1413 = vmatmul.bf16.gmra.mxu0 %v1332
      %v1414 = vpop.f32.mrf.mxu0
      %v1415 = vadd.f32 0.0, %v1414
      %v1416 = vpop.f32.mrf.mxu0
      %v1417 = vadd.f32 0.0, %v1416
      %1418 = vmatmul.bf16.gmra.mxu0 %v1335
      %v1419 = vpop.f32.mrf.mxu0
      %v1420 = vadd.f32 0.0, %v1419
      %v1421 = vpop.f32.mrf.mxu0
      %v1422 = vadd.f32 0.0, %v1421
      %1423 = vmatmul.bf16.gmra.mxu0 %v1338
      %v1424 = vpop.f32.mrf.mxu0
      %v1425 = vadd.f32 0.0, %v1424
      %v1426 = vpop.f32.mrf.mxu0
      %v1427 = vadd.f32 0.0, %v1426
      %1428 = vmatmul.bf16.gmra.mxu0 %v1341
      %v1429 = vpop.f32.mrf.mxu0
      %v1430 = vadd.f32 0.0, %v1429
      %v1431 = vpop.f32.mrf.mxu0
      %v1432 = vadd.f32 0.0, %v1431
      %1433 = vmatmul.bf16.gmra.mxu0 %v1344
      %v1434 = vpop.f32.mrf.mxu0
      %v1435 = vadd.f32 0.0, %v1434
      %v1436 = vpop.f32.mrf.mxu0
      %v1437 = vadd.f32 0.0, %v1436
      %1438 = vmatmul.bf16.gmra.mxu0 %v1347
      %v1439 = vpop.f32.mrf.mxu0
      %v1440 = vadd.f32 0.0, %v1439
      %v1441 = vpop.f32.mrf.mxu0
      %v1442 = vadd.f32 0.0, %v1441
      %1443 = vmatmul.bf16.gmra.mxu0 %v1350
      %v1444 = vpop.f32.mrf.mxu0
      %v1445 = vadd.f32 0.0, %v1444
      %v1446 = vpop.f32.mrf.mxu0
      %v1447 = vadd.f32 0.0, %v1446
      %1448 = vmatmul.bf16.gmra.mxu0 %v1353
      %v1449 = vpop.f32.mrf.mxu0
      %v1450 = vadd.f32 0.0, %v1449
      %v1451 = vpop.f32.mrf.mxu0
      %v1452 = vadd.f32 0.0, %v1451
      %1453 = vdwg.mxu0
      %v1454 = vadd.f32 %v1178, %v1365
      %v1455 = vadd.f32 %v1179, %v1367
      %v1456 = vadd.f32 %v1180, %v1370
      %v1457 = vadd.f32 %v1181, %v1372
      %v1458 = vadd.f32 %v1182, %v1375
      %v1459 = vadd.f32 %v1183, %v1377
      %v1460 = vadd.f32 %v1184, %v1380
      %v1461 = vadd.f32 %v1185, %v1382
      %v1462 = vadd.f32 %v1186, %v1385
      %v1463 = vadd.f32 %v1187, %v1387
      %v1464 = vadd.f32 %v1188, %v1390
      %v1465 = vadd.f32 %v1189, %v1392
      %v1466 = vadd.f32 %v1190, %v1395
      %v1467 = vadd.f32 %v1191, %v1397
      %v1468 = vadd.f32 %v1192, %v1400
      %v1469 = vadd.f32 %v1193, %v1402
      %v1470 = vadd.f32 %v1194, %v1405
      %v1471 = vadd.f32 %v1195, %v1407
      %v1472 = vadd.f32 %v1196, %v1410
      %v1473 = vadd.f32 %v1197, %v1412
      %v1474 = vadd.f32 %v1198, %v1415
      %v1475 = vadd.f32 %v1199, %v1417
      %v1476 = vadd.f32 %v1200, %v1420
      %v1477 = vadd.f32 %v1201, %v1422
      %v1478 = vadd.f32 %v1202, %v1425
      %v1479 = vadd.f32 %v1203, %v1427
      %v1480 = vadd.f32 %v1204, %v1430
      %v1481 = vadd.f32 %v1205, %v1432
      %v1482 = vadd.f32 %v1206, %v1435
      %v1483 = vadd.f32 %v1207, %v1437
      %v1484 = vadd.f32 %v1208, %v1440
      %v1485 = vadd.f32 %v1209, %v1442
      %v1486 = vadd.f32 %v1210, %v1445
      %v1487 = vadd.f32 %v1211, %v1447
      %v1488 = vadd.f32 %v1212, %v1450
      %v1489 = vadd.f32 %v1213, %v1452
      %v1490 = vld [vmem:[%s168 + $0x14] sm:$0xff]
      %v1491 = vld [vmem:[%s168 + $0x1c] sm:$0xff]
      %v1492 = vld [vmem:[%s168 + $0x24] sm:$0xff]
      %v1493 = vld [vmem:[%s168 + $0x2c] sm:$0xff]
      %v1494 = vld [vmem:[%s168 + $0x34] sm:$0xff]
      %v1495 = vld [vmem:[%s168 + $0x3c] sm:$0xff]
      %v1496 = vld [vmem:[%s168 + $0x44] sm:$0xff]
      %v1497 = vld [vmem:[%s168 + $0x4c] sm:$0xff]
      %v1498 = vld [vmem:[%s168 + $0x54] sm:$0xff]
      %v1499 = vld [vmem:[%s168 + $0x5c] sm:$0xff]
      %v1500 = vld [vmem:[%s168 + $0x64] sm:$0xff]
      %v1501 = vld [vmem:[%s168 + $0x6c] sm:$0xff]
      %v1502 = vld [vmem:[%s168 + $0x74] sm:$0xff]
      %v1503 = vld [vmem:[%s168 + $0x7c] sm:$0xff]
      %v1504 = vld [vmem:[%s168 + $0x84] sm:$0xff]
      %v1505 = vld [vmem:[%s168 + $0x8c] sm:$0xff]
      %v1506 = vld [vmem:[%s168 + $0x94] sm:$0xff]
      %v1507 = vld [vmem:[%s168 + $0x9c] sm:$0xff]
      %v1508 = vld [vmem:[%s168 + $0xa4] sm:$0xff]
      %v1509 = vld [vmem:[%s168 + $0xac] sm:$0xff]
      %v1510 = vld [vmem:[%s168 + $0xb4] sm:$0xff]
      %v1511 = vld [vmem:[%s168 + $0xbc] sm:$0xff]
      %v1512 = vld [vmem:[%s168 + $0xc4] sm:$0xff]
      %v1513 = vld [vmem:[%s168 + $0xcc] sm:$0xff]
      %v1514 = vld [vmem:[%s168 + $0xd4] sm:$0xff]
      %v1515 = vld [vmem:[%s168 + $0xdc] sm:$0xff]
      %v1516 = vld [vmem:[%s168 + $0xe4] sm:$0xff]
      %v1517 = vld [vmem:[%s168 + $0xec] sm:$0xff]
      %v1518 = vld [vmem:[%s168 + $0xf4] sm:$0xff]
      %v1519 = vld [vmem:[%s168 + $0xfc] sm:$0xff]
      %v1520 = vld [vmem:[%s168 + $0x104] sm:$0xff]
      %v1521 = vld [vmem:[%s168 + $0x10c] sm:$0xff]
      %v1522 = vld [vmem:[%s168 + $0x114] sm:$0xff]
      %v1523 = vld [vmem:[%s168 + $0x11c] sm:$0xff]
      %v1524 = vld [vmem:[%s168 + $0x124] sm:$0xff]
      %v1525 = vld [vmem:[%s168 + $0x12c] sm:$0xff]
      %v1526 = vpack.c.bf16 %v1491, %v1490
      %v1527 = vpack.c.bf16 %v1493, %v1492
      %v1528 = vpack.c.bf16 %v1495, %v1494
      %v1529 = vpack.c.bf16 %v1497, %v1496
      %v1530 = vpack.c.bf16 %v1499, %v1498
      %v1531 = vpack.c.bf16 %v1501, %v1500
      %v1532 = vpack.c.bf16 %v1503, %v1502
      %v1533 = vpack.c.bf16 %v1505, %v1504
      %v1534 = vpack.c.bf16 %v1507, %v1506
      %v1535 = vpack.c.bf16 %v1509, %v1508
      %v1536 = vpack.c.bf16 %v1511, %v1510
      %v1537 = vpack.c.bf16 %v1513, %v1512
      %v1538 = vpack.c.bf16 %v1515, %v1514
      %v1539 = vpack.c.bf16 %v1517, %v1516
      %v1540 = vpack.c.bf16 %v1519, %v1518
      %v1541 = vpack.c.bf16 %v1521, %v1520
      %v1542 = vpack.c.bf16 %v1523, %v1522
      %v1543 = vpack.c.bf16 %v1525, %v1524
      %s1544 = scalar_lea.vmem %s172, 160
      %v1545 = vld [vmem:[%s1544] sm:$0xf]
      %v1546 = vld [vmem:[%s1544 + $0x4] sm:$0xf]
      %v1547 = vld [vmem:[%s1544 + $0x8] sm:$0xf]
      %v1548 = vld [vmem:[%s1544 + $0xc] sm:$0xf]
      %v1549 = vld [vmem:[%s1544 + $0x10] sm:$0xf]
      %v1550 = vld [vmem:[%s1544 + $0x14] sm:$0xf]
      %v1551 = vld [vmem:[%s1544 + $0x18] sm:$0xf]
      %v1552 = vld [vmem:[%s1544 + $0x1c] sm:$0xf]
      %v1561 = vunpack.c.l.b16 %v1545
      %v1562 = vunpack.c.l.b16 %v1546
      %v1563 = vunpack.c.l.b16 %v1547
      %v1564 = vunpack.c.l.b16 %v1548
      %v1565 = vunpack.c.l.b16 %v1549
      %v1566 = vunpack.c.l.b16 %v1550
      %v1567 = vunpack.c.l.b16 %v1551
      %v1568 = vunpack.c.l.b16 %v1552
      %v1569 = vpack.c.b16 %v1562, %v1561
      %v1570 = vpack.c.b16 %v1564, %v1563
      %v1571 = vpack.c.b16 %v1566, %v1565
      %v1572 = vpack.c.b16 %v1568, %v1567
      %v1578 = vsel %vm331, %v1526, 0
      %v1581 = vsel %vm331, %v1527, 0
      %v1584 = vsel %vm331, %v1528, 0
      %v1587 = vsel %vm331, %v1529, 0
      %v1590 = vsel %vm331, %v1530, 0
      %v1593 = vsel %vm331, %v1531, 0
      %v1596 = vsel %vm331, %v1532, 0
      %v1599 = vsel %vm331, %v1533, 0
      %v1602 = vsel %vm331, %v1534, 0
      %v1605 = vsel %vm331, %v1535, 0
      %v1608 = vsel %vm331, %v1536, 0
      %v1611 = vsel %vm331, %v1537, 0
      %v1614 = vsel %vm331, %v1538, 0
      %v1617 = vsel %vm331, %v1539, 0
      %v1620 = vsel %vm331, %v1540, 0
      %v1623 = vsel %vm331, %v1541, 0
      %v1626 = vsel %vm331, %v1542, 0
      %v1629 = vsel %vm331, %v1543, 0
      %1631 = vmatpush.bf16.msra.mxu0 0
      %1632 = vmatpush.bf16.msra.mxu0 0
      %1633 = vmatpush.bf16.msra.mxu0 0
      %1634 = vmatpush.bf16.msra.mxu0 0
      %1635 = vmatpush.bf16.msra.mxu0 %v1572
      %1636 = vmatpush.bf16.msra.mxu0 %v1571
      %1637 = vmatpush.bf16.msra.mxu0 %v1570
      %1638 = vmatpush.bf16.msra.mxu0 %v1569
      %1639 = vmatmul.bf16.gmra.mxu0 %v1578
      %v1640 = vpop.f32.mrf.mxu0
      %v1641 = vadd.f32 0.0, %v1640
      %v1642 = vpop.f32.mrf.mxu0
      %v1643 = vadd.f32 0.0, %v1642
      %1644 = vmatmul.bf16.gmra.mxu0 %v1581
      %v1645 = vpop.f32.mrf.mxu0
      %v1646 = vadd.f32 0.0, %v1645
      %v1647 = vpop.f32.mrf.mxu0
      %v1648 = vadd.f32 0.0, %v1647
      %1649 = vmatmul.bf16.gmra.mxu0 %v1584
      %v1650 = vpop.f32.mrf.mxu0
      %v1651 = vadd.f32 0.0, %v1650
      %v1652 = vpop.f32.mrf.mxu0
      %v1653 = vadd.f32 0.0, %v1652
      %1654 = vmatmul.bf16.gmra.mxu0 %v1587
      %v1655 = vpop.f32.mrf.mxu0
      %v1656 = vadd.f32 0.0, %v1655
      %v1657 = vpop.f32.mrf.mxu0
      %v1658 = vadd.f32 0.0, %v1657
      %1659 = vmatmul.bf16.gmra.mxu0 %v1590
      %v1660 = vpop.f32.mrf.mxu0
      %v1661 = vadd.f32 0.0, %v1660
      %v1662 = vpop.f32.mrf.mxu0
      %v1663 = vadd.f32 0.0, %v1662
      %1664 = vmatmul.bf16.gmra.mxu0 %v1593
      %v1665 = vpop.f32.mrf.mxu0
      %v1666 = vadd.f32 0.0, %v1665
      %v1667 = vpop.f32.mrf.mxu0
      %v1668 = vadd.f32 0.0, %v1667
      %1669 = vmatmul.bf16.gmra.mxu0 %v1596
      %v1670 = vpop.f32.mrf.mxu0
      %v1671 = vadd.f32 0.0, %v1670
      %v1672 = vpop.f32.mrf.mxu0
      %v1673 = vadd.f32 0.0, %v1672
      %1674 = vmatmul.bf16.gmra.mxu0 %v1599
      %v1675 = vpop.f32.mrf.mxu0
      %v1676 = vadd.f32 0.0, %v1675
      %v1677 = vpop.f32.mrf.mxu0
      %v1678 = vadd.f32 0.0, %v1677
      %1679 = vmatmul.bf16.gmra.mxu0 %v1602
      %v1680 = vpop.f32.mrf.mxu0
      %v1681 = vadd.f32 0.0, %v1680
      %v1682 = vpop.f32.mrf.mxu0
      %v1683 = vadd.f32 0.0, %v1682
      %1684 = vmatmul.bf16.gmra.mxu0 %v1605
      %v1685 = vpop.f32.mrf.mxu0
      %v1686 = vadd.f32 0.0, %v1685
      %v1687 = vpop.f32.mrf.mxu0
      %v1688 = vadd.f32 0.0, %v1687
      %1689 = vmatmul.bf16.gmra.mxu0 %v1608
      %v1690 = vpop.f32.mrf.mxu0
      %v1691 = vadd.f32 0.0, %v1690
      %v1692 = vpop.f32.mrf.mxu0
      %v1693 = vadd.f32 0.0, %v1692
      %1694 = vmatmul.bf16.gmra.mxu0 %v1611
      %v1695 = vpop.f32.mrf.mxu0
      %v1696 = vadd.f32 0.0, %v1695
      %v1697 = vpop.f32.mrf.mxu0
      %v1698 = vadd.f32 0.0, %v1697
      %1699 = vmatmul.bf16.gmra.mxu0 %v1614
      %v1700 = vpop.f32.mrf.mxu0
      %v1701 = vadd.f32 0.0, %v1700
      %v1702 = vpop.f32.mrf.mxu0
      %v1703 = vadd.f32 0.0, %v1702
      %1704 = vmatmul.bf16.gmra.mxu0 %v1617
      %v1705 = vpop.f32.mrf.mxu0
      %v1706 = vadd.f32 0.0, %v1705
      %v1707 = vpop.f32.mrf.mxu0
      %v1708 = vadd.f32 0.0, %v1707
      %1709 = vmatmul.bf16.gmra.mxu0 %v1620
      %v1710 = vpop.f32.mrf.mxu0
      %v1711 = vadd.f32 0.0, %v1710
      %v1712 = vpop.f32.mrf.mxu0
      %v1713 = vadd.f32 0.0, %v1712
      %1714 = vmatmul.bf16.gmra.mxu0 %v1623
      %v1715 = vpop.f32.mrf.mxu0
      %v1716 = vadd.f32 0.0, %v1715
      %v1717 = vpop.f32.mrf.mxu0
      %v1718 = vadd.f32 0.0, %v1717
      %1719 = vmatmul.bf16.gmra.mxu0 %v1626
      %v1720 = vpop.f32.mrf.mxu0
      %v1721 = vadd.f32 0.0, %v1720
      %v1722 = vpop.f32.mrf.mxu0
      %v1723 = vadd.f32 0.0, %v1722
      %1724 = vmatmul.bf16.gmra.mxu0 %v1629
      %v1725 = vpop.f32.mrf.mxu0
      %v1726 = vadd.f32 0.0, %v1725
      %v1727 = vpop.f32.mrf.mxu0
      %v1728 = vadd.f32 0.0, %v1727
      %1729 = vdwg.mxu0
      %v1730 = vadd.f32 %v1454, %v1641
      %v1731 = vadd.f32 %v1455, %v1643
      %v1732 = vadd.f32 %v1456, %v1646
      %v1733 = vadd.f32 %v1457, %v1648
      %v1734 = vadd.f32 %v1458, %v1651
      %v1735 = vadd.f32 %v1459, %v1653
      %v1736 = vadd.f32 %v1460, %v1656
      %v1737 = vadd.f32 %v1461, %v1658
      %v1738 = vadd.f32 %v1462, %v1661
      %v1739 = vadd.f32 %v1463, %v1663
      %v1740 = vadd.f32 %v1464, %v1666
      %v1741 = vadd.f32 %v1465, %v1668
      %v1742 = vadd.f32 %v1466, %v1671
      %v1743 = vadd.f32 %v1467, %v1673
      %v1744 = vadd.f32 %v1468, %v1676
      %v1745 = vadd.f32 %v1469, %v1678
      %v1746 = vadd.f32 %v1470, %v1681
      %v1747 = vadd.f32 %v1471, %v1683
      %v1748 = vadd.f32 %v1472, %v1686
      %v1749 = vadd.f32 %v1473, %v1688
      %v1750 = vadd.f32 %v1474, %v1691
      %v1751 = vadd.f32 %v1475, %v1693
      %v1752 = vadd.f32 %v1476, %v1696
      %v1753 = vadd.f32 %v1477, %v1698
      %v1754 = vadd.f32 %v1478, %v1701
      %v1755 = vadd.f32 %v1479, %v1703
      %v1756 = vadd.f32 %v1480, %v1706
      %v1757 = vadd.f32 %v1481, %v1708
      %v1758 = vadd.f32 %v1482, %v1711
      %v1759 = vadd.f32 %v1483, %v1713
      %v1760 = vadd.f32 %v1484, %v1716
      %v1761 = vadd.f32 %v1485, %v1718
      %v1762 = vadd.f32 %v1486, %v1721
      %v1763 = vadd.f32 %v1487, %v1723
      %v1764 = vadd.f32 %v1488, %v1726
      %v1765 = vadd.f32 %v1489, %v1728
      %v1766 = vld [vmem:[%s168 + $0x24] sm:$0xff]
      %v1767 = vld [vmem:[%s168 + $0x2c] sm:$0xff]
      %v1768 = vld [vmem:[%s168 + $0x34] sm:$0xff]
      %v1769 = vld [vmem:[%s168 + $0x3c] sm:$0xff]
      %v1770 = vld [vmem:[%s168 + $0x44] sm:$0xff]
      %v1771 = vld [vmem:[%s168 + $0x4c] sm:$0xff]
      %v1772 = vld [vmem:[%s168 + $0x54] sm:$0xff]
      %v1773 = vld [vmem:[%s168 + $0x5c] sm:$0xff]
      %v1774 = vld [vmem:[%s168 + $0x64] sm:$0xff]
      %v1775 = vld [vmem:[%s168 + $0x6c] sm:$0xff]
      %v1776 = vld [vmem:[%s168 + $0x74] sm:$0xff]
      %v1777 = vld [vmem:[%s168 + $0x7c] sm:$0xff]
      %v1778 = vld [vmem:[%s168 + $0x84] sm:$0xff]
      %v1779 = vld [vmem:[%s168 + $0x8c] sm:$0xff]
      %v1780 = vld [vmem:[%s168 + $0x94] sm:$0xff]
      %v1781 = vld [vmem:[%s168 + $0x9c] sm:$0xff]
      %v1782 = vld [vmem:[%s168 + $0xa4] sm:$0xff]
      %v1783 = vld [vmem:[%s168 + $0xac] sm:$0xff]
      %v1784 = vld [vmem:[%s168 + $0xb4] sm:$0xff]
      %v1785 = vld [vmem:[%s168 + $0xbc] sm:$0xff]
      %v1786 = vld [vmem:[%s168 + $0xc4] sm:$0xff]
      %v1787 = vld [vmem:[%s168 + $0xcc] sm:$0xff]
      %v1788 = vld [vmem:[%s168 + $0xd4] sm:$0xff]
      %v1789 = vld [vmem:[%s168 + $0xdc] sm:$0xff]
      %v1790 = vld [vmem:[%s168 + $0xe4] sm:$0xff]
      %v1791 = vld [vmem:[%s168 + $0xec] sm:$0xff]
      %v1792 = vld [vmem:[%s168 + $0xf4] sm:$0xff]
      %v1793 = vld [vmem:[%s168 + $0xfc] sm:$0xff]
      %v1794 = vld [vmem:[%s168 + $0x104] sm:$0xff]
      %v1795 = vld [vmem:[%s168 + $0x10c] sm:$0xff]
      %v1796 = vld [vmem:[%s168 + $0x114] sm:$0xff]
      %v1797 = vld [vmem:[%s168 + $0x11c] sm:$0xff]
      %v1798 = vld [vmem:[%s168 + $0x124] sm:$0xff]
      %v1799 = vld [vmem:[%s168 + $0x12c] sm:$0xff]
      %v1800 = vld [vmem:[%s168 + $0x134] sm:$0xff]
      %v1801 = vld [vmem:[%s168 + $0x13c] sm:$0xff]
      %v1802 = vpack.c.bf16 %v1767, %v1766
      %v1803 = vpack.c.bf16 %v1769, %v1768
      %v1804 = vpack.c.bf16 %v1771, %v1770
      %v1805 = vpack.c.bf16 %v1773, %v1772
      %v1806 = vpack.c.bf16 %v1775, %v1774
      %v1807 = vpack.c.bf16 %v1777, %v1776
      %v1808 = vpack.c.bf16 %v1779, %v1778
      %v1809 = vpack.c.bf16 %v1781, %v1780
      %v1810 = vpack.c.bf16 %v1783, %v1782
      %v1811 = vpack.c.bf16 %v1785, %v1784
      %v1812 = vpack.c.bf16 %v1787, %v1786
      %v1813 = vpack.c.bf16 %v1789, %v1788
      %v1814 = vpack.c.bf16 %v1791, %v1790
      %v1815 = vpack.c.bf16 %v1793, %v1792
      %v1816 = vpack.c.bf16 %v1795, %v1794
      %v1817 = vpack.c.bf16 %v1797, %v1796
      %v1818 = vpack.c.bf16 %v1799, %v1798
      %v1819 = vpack.c.bf16 %v1801, %v1800
      %s1820 = scalar_lea.vmem %s172, 192
      %v1821 = vld [vmem:[%s1820] sm:$0xf]
      %v1822 = vld [vmem:[%s1820 + $0x4] sm:$0xf]
      %v1823 = vld [vmem:[%s1820 + $0x8] sm:$0xf]
      %v1824 = vld [vmem:[%s1820 + $0xc] sm:$0xf]
      %v1825 = vld [vmem:[%s1820 + $0x10] sm:$0xf]
      %v1826 = vld [vmem:[%s1820 + $0x14] sm:$0xf]
      %v1827 = vld [vmem:[%s1820 + $0x18] sm:$0xf]
      %v1828 = vld [vmem:[%s1820 + $0x1c] sm:$0xf]
      %v1837 = vunpack.c.l.b16 %v1821
      %v1838 = vunpack.c.l.b16 %v1822
      %v1839 = vunpack.c.l.b16 %v1823
      %v1840 = vunpack.c.l.b16 %v1824
      %v1841 = vunpack.c.l.b16 %v1825
      %v1842 = vunpack.c.l.b16 %v1826
      %v1843 = vunpack.c.l.b16 %v1827
      %v1844 = vunpack.c.l.b16 %v1828
      %v1845 = vpack.c.b16 %v1838, %v1837
      %v1846 = vpack.c.b16 %v1840, %v1839
      %v1847 = vpack.c.b16 %v1842, %v1841
      %v1848 = vpack.c.b16 %v1844, %v1843
      %v1854 = vsel %vm331, %v1802, 0
      %v1857 = vsel %vm331, %v1803, 0
      %v1860 = vsel %vm331, %v1804, 0
      %v1863 = vsel %vm331, %v1805, 0
      %v1866 = vsel %vm331, %v1806, 0
      %v1869 = vsel %vm331, %v1807, 0
      %v1872 = vsel %vm331, %v1808, 0
      %v1875 = vsel %vm331, %v1809, 0
      %v1878 = vsel %vm331, %v1810, 0
      %v1881 = vsel %vm331, %v1811, 0
      %v1884 = vsel %vm331, %v1812, 0
      %v1887 = vsel %vm331, %v1813, 0
      %v1890 = vsel %vm331, %v1814, 0
      %v1893 = vsel %vm331, %v1815, 0
      %v1896 = vsel %vm331, %v1816, 0
      %v1899 = vsel %vm331, %v1817, 0
      %v1902 = vsel %vm331, %v1818, 0
      %v1905 = vsel %vm331, %v1819, 0
      %1907 = vmatpush.bf16.msra.mxu0 0
      %1908 = vmatpush.bf16.msra.mxu0 0
      %1909 = vmatpush.bf16.msra.mxu0 0
      %1910 = vmatpush.bf16.msra.mxu0 0
      %1911 = vmatpush.bf16.msra.mxu0 %v1848
      %1912 = vmatpush.bf16.msra.mxu0 %v1847
      %1913 = vmatpush.bf16.msra.mxu0 %v1846
      %1914 = vmatpush.bf16.msra.mxu0 %v1845
      %1915 = vmatmul.bf16.gmra.mxu0 %v1854
      %v1916 = vpop.f32.mrf.mxu0
      %v1917 = vadd.f32 0.0, %v1916
      %v1918 = vpop.f32.mrf.mxu0
      %v1919 = vadd.f32 0.0, %v1918
      %1920 = vmatmul.bf16.gmra.mxu0 %v1857
      %v1921 = vpop.f32.mrf.mxu0
      %v1922 = vadd.f32 0.0, %v1921
      %v1923 = vpop.f32.mrf.mxu0
      %v1924 = vadd.f32 0.0, %v1923
      %1925 = vmatmul.bf16.gmra.mxu0 %v1860
      %v1926 = vpop.f32.mrf.mxu0
      %v1927 = vadd.f32 0.0, %v1926
      %v1928 = vpop.f32.mrf.mxu0
      %v1929 = vadd.f32 0.0, %v1928
      %1930 = vmatmul.bf16.gmra.mxu0 %v1863
      %v1931 = vpop.f32.mrf.mxu0
      %v1932 = vadd.f32 0.0, %v1931
      %v1933 = vpop.f32.mrf.mxu0
      %v1934 = vadd.f32 0.0, %v1933
      %1935 = vmatmul.bf16.gmra.mxu0 %v1866
      %v1936 = vpop.f32.mrf.mxu0
      %v1937 = vadd.f32 0.0, %v1936
      %v1938 = vpop.f32.mrf.mxu0
      %v1939 = vadd.f32 0.0, %v1938
      %1940 = vmatmul.bf16.gmra.mxu0 %v1869
      %v1941 = vpop.f32.mrf.mxu0
      %v1942 = vadd.f32 0.0, %v1941
      %v1943 = vpop.f32.mrf.mxu0
      %v1944 = vadd.f32 0.0, %v1943
      %1945 = vmatmul.bf16.gmra.mxu0 %v1872
      %v1946 = vpop.f32.mrf.mxu0
      %v1947 = vadd.f32 0.0, %v1946
      %v1948 = vpop.f32.mrf.mxu0
      %v1949 = vadd.f32 0.0, %v1948
      %1950 = vmatmul.bf16.gmra.mxu0 %v1875
      %v1951 = vpop.f32.mrf.mxu0
      %v1952 = vadd.f32 0.0, %v1951
      %v1953 = vpop.f32.mrf.mxu0
      %v1954 = vadd.f32 0.0, %v1953
      %1955 = vmatmul.bf16.gmra.mxu0 %v1878
      %v1956 = vpop.f32.mrf.mxu0
      %v1957 = vadd.f32 0.0, %v1956
      %v1958 = vpop.f32.mrf.mxu0
      %v1959 = vadd.f32 0.0, %v1958
      %1960 = vmatmul.bf16.gmra.mxu0 %v1881
      %v1961 = vpop.f32.mrf.mxu0
      %v1962 = vadd.f32 0.0, %v1961
      %v1963 = vpop.f32.mrf.mxu0
      %v1964 = vadd.f32 0.0, %v1963
      %1965 = vmatmul.bf16.gmra.mxu0 %v1884
      %v1966 = vpop.f32.mrf.mxu0
      %v1967 = vadd.f32 0.0, %v1966
      %v1968 = vpop.f32.mrf.mxu0
      %v1969 = vadd.f32 0.0, %v1968
      %1970 = vmatmul.bf16.gmra.mxu0 %v1887
      %v1971 = vpop.f32.mrf.mxu0
      %v1972 = vadd.f32 0.0, %v1971
      %v1973 = vpop.f32.mrf.mxu0
      %v1974 = vadd.f32 0.0, %v1973
      %1975 = vmatmul.bf16.gmra.mxu0 %v1890
      %v1976 = vpop.f32.mrf.mxu0
      %v1977 = vadd.f32 0.0, %v1976
      %v1978 = vpop.f32.mrf.mxu0
      %v1979 = vadd.f32 0.0, %v1978
      %1980 = vmatmul.bf16.gmra.mxu0 %v1893
      %v1981 = vpop.f32.mrf.mxu0
      %v1982 = vadd.f32 0.0, %v1981
      %v1983 = vpop.f32.mrf.mxu0
      %v1984 = vadd.f32 0.0, %v1983
      %1985 = vmatmul.bf16.gmra.mxu0 %v1896
      %v1986 = vpop.f32.mrf.mxu0
      %v1987 = vadd.f32 0.0, %v1986
      %v1988 = vpop.f32.mrf.mxu0
      %v1989 = vadd.f32 0.0, %v1988
      %1990 = vmatmul.bf16.gmra.mxu0 %v1899
      %v1991 = vpop.f32.mrf.mxu0
      %v1992 = vadd.f32 0.0, %v1991
      %v1993 = vpop.f32.mrf.mxu0
      %v1994 = vadd.f32 0.0, %v1993
      %1995 = vmatmul.bf16.gmra.mxu0 %v1902
      %v1996 = vpop.f32.mrf.mxu0
      %v1997 = vadd.f32 0.0, %v1996
      %v1998 = vpop.f32.mrf.mxu0
      %v1999 = vadd.f32 0.0, %v1998
      %2000 = vmatmul.bf16.gmra.mxu0 %v1905
      %v2001 = vpop.f32.mrf.mxu0
      %v2002 = vadd.f32 0.0, %v2001
      %v2003 = vpop.f32.mrf.mxu0
      %v2004 = vadd.f32 0.0, %v2003
      %2005 = vdwg.mxu0
      %v2006 = vadd.f32 %v1730, %v1917
      %v2007 = vadd.f32 %v1731, %v1919
      %v2008 = vadd.f32 %v1732, %v1922
      %v2009 = vadd.f32 %v1733, %v1924
      %v2010 = vadd.f32 %v1734, %v1927
      %v2011 = vadd.f32 %v1735, %v1929
      %v2012 = vadd.f32 %v1736, %v1932
      %v2013 = vadd.f32 %v1737, %v1934
      %v2014 = vadd.f32 %v1738, %v1937
      %v2015 = vadd.f32 %v1739, %v1939
      %v2016 = vadd.f32 %v1740, %v1942
      %v2017 = vadd.f32 %v1741, %v1944
      %v2018 = vadd.f32 %v1742, %v1947
      %v2019 = vadd.f32 %v1743, %v1949
      %v2020 = vadd.f32 %v1744, %v1952
      %v2021 = vadd.f32 %v1745, %v1954
      %v2022 = vadd.f32 %v1746, %v1957
      %v2023 = vadd.f32 %v1747, %v1959
      %v2024 = vadd.f32 %v1748, %v1962
      %v2025 = vadd.f32 %v1749, %v1964
      %v2026 = vadd.f32 %v1750, %v1967
      %v2027 = vadd.f32 %v1751, %v1969
      %v2028 = vadd.f32 %v1752, %v1972
      %v2029 = vadd.f32 %v1753, %v1974
      %v2030 = vadd.f32 %v1754, %v1977
      %v2031 = vadd.f32 %v1755, %v1979
      %v2032 = vadd.f32 %v1756, %v1982
      %v2033 = vadd.f32 %v1757, %v1984
      %v2034 = vadd.f32 %v1758, %v1987
      %v2035 = vadd.f32 %v1759, %v1989
      %v2036 = vadd.f32 %v1760, %v1992
      %v2037 = vadd.f32 %v1761, %v1994
      %v2038 = vadd.f32 %v1762, %v1997
      %v2039 = vadd.f32 %v1763, %v1999
      %v2040 = vadd.f32 %v1764, %v2002
      %v2041 = vadd.f32 %v1765, %v2004
      %v2042 = vld [vmem:[%s168 + $0x25] sm:$0xff]
      %v2043 = vld [vmem:[%s168 + $0x2d] sm:$0xff]
      %v2044 = vld [vmem:[%s168 + $0x35] sm:$0xff]
      %v2045 = vld [vmem:[%s168 + $0x3d] sm:$0xff]
      %v2046 = vld [vmem:[%s168 + $0x45] sm:$0xff]
      %v2047 = vld [vmem:[%s168 + $0x4d] sm:$0xff]
      %v2048 = vld [vmem:[%s168 + $0x55] sm:$0xff]
      %v2049 = vld [vmem:[%s168 + $0x5d] sm:$0xff]
      %v2050 = vld [vmem:[%s168 + $0x65] sm:$0xff]
      %v2051 = vld [vmem:[%s168 + $0x6d] sm:$0xff]
      %v2052 = vld [vmem:[%s168 + $0x75] sm:$0xff]
      %v2053 = vld [vmem:[%s168 + $0x7d] sm:$0xff]
      %v2054 = vld [vmem:[%s168 + $0x85] sm:$0xff]
      %v2055 = vld [vmem:[%s168 + $0x8d] sm:$0xff]
      %v2056 = vld [vmem:[%s168 + $0x95] sm:$0xff]
      %v2057 = vld [vmem:[%s168 + $0x9d] sm:$0xff]
      %v2058 = vld [vmem:[%s168 + $0xa5] sm:$0xff]
      %v2059 = vld [vmem:[%s168 + $0xad] sm:$0xff]
      %v2060 = vld [vmem:[%s168 + $0xb5] sm:$0xff]
      %v2061 = vld [vmem:[%s168 + $0xbd] sm:$0xff]
      %v2062 = vld [vmem:[%s168 + $0xc5] sm:$0xff]
      %v2063 = vld [vmem:[%s168 + $0xcd] sm:$0xff]
      %v2064 = vld [vmem:[%s168 + $0xd5] sm:$0xff]
      %v2065 = vld [vmem:[%s168 + $0xdd] sm:$0xff]
      %v2066 = vld [vmem:[%s168 + $0xe5] sm:$0xff]
      %v2067 = vld [vmem:[%s168 + $0xed] sm:$0xff]
      %v2068 = vld [vmem:[%s168 + $0xf5] sm:$0xff]
      %v2069 = vld [vmem:[%s168 + $0xfd] sm:$0xff]
      %v2070 = vld [vmem:[%s168 + $0x105] sm:$0xff]
      %v2071 = vld [vmem:[%s168 + $0x10d] sm:$0xff]
      %v2072 = vld [vmem:[%s168 + $0x115] sm:$0xff]
      %v2073 = vld [vmem:[%s168 + $0x11d] sm:$0xff]
      %v2074 = vld [vmem:[%s168 + $0x125] sm:$0xff]
      %v2075 = vld [vmem:[%s168 + $0x12d] sm:$0xff]
      %v2076 = vld [vmem:[%s168 + $0x135] sm:$0xff]
      %v2077 = vld [vmem:[%s168 + $0x13d] sm:$0xff]
      %v2078 = vpack.c.bf16 %v2043, %v2042
      %v2079 = vpack.c.bf16 %v2045, %v2044
      %v2080 = vpack.c.bf16 %v2047, %v2046
      %v2081 = vpack.c.bf16 %v2049, %v2048
      %v2082 = vpack.c.bf16 %v2051, %v2050
      %v2083 = vpack.c.bf16 %v2053, %v2052
      %v2084 = vpack.c.bf16 %v2055, %v2054
      %v2085 = vpack.c.bf16 %v2057, %v2056
      %v2086 = vpack.c.bf16 %v2059, %v2058
      %v2087 = vpack.c.bf16 %v2061, %v2060
      %v2088 = vpack.c.bf16 %v2063, %v2062
      %v2089 = vpack.c.bf16 %v2065, %v2064
      %v2090 = vpack.c.bf16 %v2067, %v2066
      %v2091 = vpack.c.bf16 %v2069, %v2068
      %v2092 = vpack.c.bf16 %v2071, %v2070
      %v2093 = vpack.c.bf16 %v2073, %v2072
      %v2094 = vpack.c.bf16 %v2075, %v2074
      %v2095 = vpack.c.bf16 %v2077, %v2076
      %s2096 = scalar_lea.vmem %s172, 224
      %v2097 = vld [vmem:[%s2096] sm:$0xf]
      %v2098 = vld [vmem:[%s2096 + $0x4] sm:$0xf]
      %v2099 = vld [vmem:[%s2096 + $0x8] sm:$0xf]
      %v2100 = vld [vmem:[%s2096 + $0xc] sm:$0xf]
      %v2101 = vld [vmem:[%s2096 + $0x10] sm:$0xf]
      %v2102 = vld [vmem:[%s2096 + $0x14] sm:$0xf]
      %v2103 = vld [vmem:[%s2096 + $0x18] sm:$0xf]
      %v2104 = vld [vmem:[%s2096 + $0x1c] sm:$0xf]
      %v2113 = vunpack.c.l.b16 %v2097
      %v2114 = vunpack.c.l.b16 %v2098
      %v2115 = vunpack.c.l.b16 %v2099
      %v2116 = vunpack.c.l.b16 %v2100
      %v2117 = vunpack.c.l.b16 %v2101
      %v2118 = vunpack.c.l.b16 %v2102
      %v2119 = vunpack.c.l.b16 %v2103
      %v2120 = vunpack.c.l.b16 %v2104
      %v2121 = vpack.c.b16 %v2114, %v2113
      %v2122 = vpack.c.b16 %v2116, %v2115
      %v2123 = vpack.c.b16 %v2118, %v2117
      %v2124 = vpack.c.b16 %v2120, %v2119
      %v2130 = vsel %vm331, %v2078, 0
      %v2133 = vsel %vm331, %v2079, 0
      %v2136 = vsel %vm331, %v2080, 0
      %v2139 = vsel %vm331, %v2081, 0
      %v2142 = vsel %vm331, %v2082, 0
      %v2145 = vsel %vm331, %v2083, 0
      %v2148 = vsel %vm331, %v2084, 0
      %v2151 = vsel %vm331, %v2085, 0
      %v2154 = vsel %vm331, %v2086, 0
      %v2157 = vsel %vm331, %v2087, 0
      %v2160 = vsel %vm331, %v2088, 0
      %v2163 = vsel %vm331, %v2089, 0
      %v2166 = vsel %vm331, %v2090, 0
      %v2169 = vsel %vm331, %v2091, 0
      %v2172 = vsel %vm331, %v2092, 0
      %v2175 = vsel %vm331, %v2093, 0
      %v2178 = vsel %vm331, %v2094, 0
      %v2181 = vsel %vm331, %v2095, 0
      %2183 = vmatpush.bf16.msra.mxu0 0
      %2184 = vmatpush.bf16.msra.mxu0 0
      %2185 = vmatpush.bf16.msra.mxu0 0
      %2186 = vmatpush.bf16.msra.mxu0 0
      %2187 = vmatpush.bf16.msra.mxu0 %v2124
      %2188 = vmatpush.bf16.msra.mxu0 %v2123
      %2189 = vmatpush.bf16.msra.mxu0 %v2122
      %2190 = vmatpush.bf16.msra.mxu0 %v2121
      %2191 = vmatmul.bf16.gmra.mxu0 %v2130
      %v2192 = vpop.f32.mrf.mxu0
      %v2193 = vadd.f32 0.0, %v2192
      %v2194 = vpop.f32.mrf.mxu0
      %v2195 = vadd.f32 0.0, %v2194
      %2196 = vmatmul.bf16.gmra.mxu0 %v2133
      %v2197 = vpop.f32.mrf.mxu0
      %v2198 = vadd.f32 0.0, %v2197
      %v2199 = vpop.f32.mrf.mxu0
      %v2200 = vadd.f32 0.0, %v2199
      %2201 = vmatmul.bf16.gmra.mxu0 %v2136
      %v2202 = vpop.f32.mrf.mxu0
      %v2203 = vadd.f32 0.0, %v2202
      %v2204 = vpop.f32.mrf.mxu0
      %v2205 = vadd.f32 0.0, %v2204
      %2206 = vmatmul.bf16.gmra.mxu0 %v2139
      %v2207 = vpop.f32.mrf.mxu0
      %v2208 = vadd.f32 0.0, %v2207
      %v2209 = vpop.f32.mrf.mxu0
      %v2210 = vadd.f32 0.0, %v2209
      %2211 = vmatmul.bf16.gmra.mxu0 %v2142
      %v2212 = vpop.f32.mrf.mxu0
      %v2213 = vadd.f32 0.0, %v2212
      %v2214 = vpop.f32.mrf.mxu0
      %v2215 = vadd.f32 0.0, %v2214
      %2216 = vmatmul.bf16.gmra.mxu0 %v2145
      %v2217 = vpop.f32.mrf.mxu0
      %v2218 = vadd.f32 0.0, %v2217
      %v2219 = vpop.f32.mrf.mxu0
      %v2220 = vadd.f32 0.0, %v2219
      %2221 = vmatmul.bf16.gmra.mxu0 %v2148
      %v2222 = vpop.f32.mrf.mxu0
      %v2223 = vadd.f32 0.0, %v2222
      %v2224 = vpop.f32.mrf.mxu0
      %v2225 = vadd.f32 0.0, %v2224
      %2226 = vmatmul.bf16.gmra.mxu0 %v2151
      %v2227 = vpop.f32.mrf.mxu0
      %v2228 = vadd.f32 0.0, %v2227
      %v2229 = vpop.f32.mrf.mxu0
      %v2230 = vadd.f32 0.0, %v2229
      %2231 = vmatmul.bf16.gmra.mxu0 %v2154
      %v2232 = vpop.f32.mrf.mxu0
      %v2233 = vadd.f32 0.0, %v2232
      %v2234 = vpop.f32.mrf.mxu0
      %v2235 = vadd.f32 0.0, %v2234
      %2236 = vmatmul.bf16.gmra.mxu0 %v2157
      %v2237 = vpop.f32.mrf.mxu0
      %v2238 = vadd.f32 0.0, %v2237
      %v2239 = vpop.f32.mrf.mxu0
      %v2240 = vadd.f32 0.0, %v2239
      %2241 = vmatmul.bf16.gmra.mxu0 %v2160
      %v2242 = vpop.f32.mrf.mxu0
      %v2243 = vadd.f32 0.0, %v2242
      %v2244 = vpop.f32.mrf.mxu0
      %v2245 = vadd.f32 0.0, %v2244
      %2246 = vmatmul.bf16.gmra.mxu0 %v2163
      %v2247 = vpop.f32.mrf.mxu0
      %v2248 = vadd.f32 0.0, %v2247
      %v2249 = vpop.f32.mrf.mxu0
      %v2250 = vadd.f32 0.0, %v2249
      %2251 = vmatmul.bf16.gmra.mxu0 %v2166
      %v2252 = vpop.f32.mrf.mxu0
      %v2253 = vadd.f32 0.0, %v2252
      %v2254 = vpop.f32.mrf.mxu0
      %v2255 = vadd.f32 0.0, %v2254
      %2256 = vmatmul.bf16.gmra.mxu0 %v2169
      %v2257 = vpop.f32.mrf.mxu0
      %v2258 = vadd.f32 0.0, %v2257
      %v2259 = vpop.f32.mrf.mxu0
      %v2260 = vadd.f32 0.0, %v2259
      %2261 = vmatmul.bf16.gmra.mxu0 %v2172
      %v2262 = vpop.f32.mrf.mxu0
      %v2263 = vadd.f32 0.0, %v2262
      %v2264 = vpop.f32.mrf.mxu0
      %v2265 = vadd.f32 0.0, %v2264
      %2266 = vmatmul.bf16.gmra.mxu0 %v2175
      %v2267 = vpop.f32.mrf.mxu0
      %v2268 = vadd.f32 0.0, %v2267
      %v2269 = vpop.f32.mrf.mxu0
      %v2270 = vadd.f32 0.0, %v2269
      %2271 = vmatmul.bf16.gmra.mxu0 %v2178
      %v2272 = vpop.f32.mrf.mxu0
      %v2273 = vadd.f32 0.0, %v2272
      %v2274 = vpop.f32.mrf.mxu0
      %v2275 = vadd.f32 0.0, %v2274
      %2276 = vmatmul.bf16.gmra.mxu0 %v2181
      %v2277 = vpop.f32.mrf.mxu0
      %v2278 = vadd.f32 0.0, %v2277
      %v2279 = vpop.f32.mrf.mxu0
      %v2280 = vadd.f32 0.0, %v2279
      %2281 = vdwg.mxu0
      %v2282 = vadd.f32 %v2006, %v2193
      %v2283 = vadd.f32 %v2007, %v2195
      %v2284 = vadd.f32 %v2008, %v2198
      %v2285 = vadd.f32 %v2009, %v2200
      %v2286 = vadd.f32 %v2010, %v2203
      %v2287 = vadd.f32 %v2011, %v2205
      %v2288 = vadd.f32 %v2012, %v2208
      %v2289 = vadd.f32 %v2013, %v2210
      %v2290 = vadd.f32 %v2014, %v2213
      %v2291 = vadd.f32 %v2015, %v2215
      %v2292 = vadd.f32 %v2016, %v2218
      %v2293 = vadd.f32 %v2017, %v2220
      %v2294 = vadd.f32 %v2018, %v2223
      %v2295 = vadd.f32 %v2019, %v2225
      %v2296 = vadd.f32 %v2020, %v2228
      %v2297 = vadd.f32 %v2021, %v2230
      %v2298 = vadd.f32 %v2022, %v2233
      %v2299 = vadd.f32 %v2023, %v2235
      %v2300 = vadd.f32 %v2024, %v2238
      %v2301 = vadd.f32 %v2025, %v2240
      %v2302 = vadd.f32 %v2026, %v2243
      %v2303 = vadd.f32 %v2027, %v2245
      %v2304 = vadd.f32 %v2028, %v2248
      %v2305 = vadd.f32 %v2029, %v2250
      %v2306 = vadd.f32 %v2030, %v2253
      %v2307 = vadd.f32 %v2031, %v2255
      %v2308 = vadd.f32 %v2032, %v2258
      %v2309 = vadd.f32 %v2033, %v2260
      %v2310 = vadd.f32 %v2034, %v2263
      %v2311 = vadd.f32 %v2035, %v2265
      %v2312 = vadd.f32 %v2036, %v2268
      %v2313 = vadd.f32 %v2037, %v2270
      %v2314 = vadd.f32 %v2038, %v2273
      %v2315 = vadd.f32 %v2039, %v2275
      %v2316 = vadd.f32 %v2040, %v2278
      %v2317 = vadd.f32 %v2041, %v2280
      %v2318 = vld [vmem:[%s168 + $0x26] sm:$0xff]
      %v2319 = vld [vmem:[%s168 + $0x2e] sm:$0xff]
      %v2320 = vld [vmem:[%s168 + $0x36] sm:$0xff]
      %v2321 = vld [vmem:[%s168 + $0x3e] sm:$0xff]
      %v2322 = vld [vmem:[%s168 + $0x46] sm:$0xff]
      %v2323 = vld [vmem:[%s168 + $0x4e] sm:$0xff]
      %v2324 = vld [vmem:[%s168 + $0x56] sm:$0xff]
      %v2325 = vld [vmem:[%s168 + $0x5e] sm:$0xff]
      %v2326 = vld [vmem:[%s168 + $0x66] sm:$0xff]
      %v2327 = vld [vmem:[%s168 + $0x6e] sm:$0xff]
      %v2328 = vld [vmem:[%s168 + $0x76] sm:$0xff]
      %v2329 = vld [vmem:[%s168 + $0x7e] sm:$0xff]
      %v2330 = vld [vmem:[%s168 + $0x86] sm:$0xff]
      %v2331 = vld [vmem:[%s168 + $0x8e] sm:$0xff]
      %v2332 = vld [vmem:[%s168 + $0x96] sm:$0xff]
      %v2333 = vld [vmem:[%s168 + $0x9e] sm:$0xff]
      %v2334 = vld [vmem:[%s168 + $0xa6] sm:$0xff]
      %v2335 = vld [vmem:[%s168 + $0xae] sm:$0xff]
      %v2336 = vld [vmem:[%s168 + $0xb6] sm:$0xff]
      %v2337 = vld [vmem:[%s168 + $0xbe] sm:$0xff]
      %v2338 = vld [vmem:[%s168 + $0xc6] sm:$0xff]
      %v2339 = vld [vmem:[%s168 + $0xce] sm:$0xff]
      %v2340 = vld [vmem:[%s168 + $0xd6] sm:$0xff]
      %v2341 = vld [vmem:[%s168 + $0xde] sm:$0xff]
      %v2342 = vld [vmem:[%s168 + $0xe6] sm:$0xff]
      %v2343 = vld [vmem:[%s168 + $0xee] sm:$0xff]
      %v2344 = vld [vmem:[%s168 + $0xf6] sm:$0xff]
      %v2345 = vld [vmem:[%s168 + $0xfe] sm:$0xff]
      %v2346 = vld [vmem:[%s168 + $0x106] sm:$0xff]
      %v2347 = vld [vmem:[%s168 + $0x10e] sm:$0xff]
      %v2348 = vld [vmem:[%s168 + $0x116] sm:$0xff]
      %v2349 = vld [vmem:[%s168 + $0x11e] sm:$0xff]
      %v2350 = vld [vmem:[%s168 + $0x126] sm:$0xff]
      %v2351 = vld [vmem:[%s168 + $0x12e] sm:$0xff]
      %v2352 = vld [vmem:[%s168 + $0x136] sm:$0xff]
      %v2353 = vld [vmem:[%s168 + $0x13e] sm:$0xff]
      %v2354 = vpack.c.bf16 %v2319, %v2318
      %v2355 = vpack.c.bf16 %v2321, %v2320
      %v2356 = vpack.c.bf16 %v2323, %v2322
      %v2357 = vpack.c.bf16 %v2325, %v2324
      %v2358 = vpack.c.bf16 %v2327, %v2326
      %v2359 = vpack.c.bf16 %v2329, %v2328
      %v2360 = vpack.c.bf16 %v2331, %v2330
      %v2361 = vpack.c.bf16 %v2333, %v2332
      %v2362 = vpack.c.bf16 %v2335, %v2334
      %v2363 = vpack.c.bf16 %v2337, %v2336
      %v2364 = vpack.c.bf16 %v2339, %v2338
      %v2365 = vpack.c.bf16 %v2341, %v2340
      %v2366 = vpack.c.bf16 %v2343, %v2342
      %v2367 = vpack.c.bf16 %v2345, %v2344
      %v2368 = vpack.c.bf16 %v2347, %v2346
      %v2369 = vpack.c.bf16 %v2349, %v2348
      %v2370 = vpack.c.bf16 %v2351, %v2350
      %v2371 = vpack.c.bf16 %v2353, %v2352
      %s2372 = scalar_lea.vmem %s172, 256
      %v2373 = vld [vmem:[%s2372] sm:$0xf]
      %v2374 = vld [vmem:[%s2372 + $0x4] sm:$0xf]
      %v2375 = vld [vmem:[%s2372 + $0x8] sm:$0xf]
      %v2376 = vld [vmem:[%s2372 + $0xc] sm:$0xf]
      %v2377 = vld [vmem:[%s2372 + $0x10] sm:$0xf]
      %v2378 = vld [vmem:[%s2372 + $0x14] sm:$0xf]
      %v2379 = vld [vmem:[%s2372 + $0x18] sm:$0xf]
      %v2380 = vld [vmem:[%s2372 + $0x1c] sm:$0xf]
      %v2389 = vunpack.c.l.b16 %v2373
      %v2390 = vunpack.c.l.b16 %v2374
      %v2391 = vunpack.c.l.b16 %v2375
      %v2392 = vunpack.c.l.b16 %v2376
      %v2393 = vunpack.c.l.b16 %v2377
      %v2394 = vunpack.c.l.b16 %v2378
      %v2395 = vunpack.c.l.b16 %v2379
      %v2396 = vunpack.c.l.b16 %v2380
      %v2397 = vpack.c.b16 %v2390, %v2389
      %v2398 = vpack.c.b16 %v2392, %v2391
      %v2399 = vpack.c.b16 %v2394, %v2393
      %v2400 = vpack.c.b16 %v2396, %v2395
      %v2406 = vsel %vm331, %v2354, 0
      %v2409 = vsel %vm331, %v2355, 0
      %v2412 = vsel %vm331, %v2356, 0
      %v2415 = vsel %vm331, %v2357, 0
      %v2418 = vsel %vm331, %v2358, 0
      %v2421 = vsel %vm331, %v2359, 0
      %v2424 = vsel %vm331, %v2360, 0
      %v2427 = vsel %vm331, %v2361, 0
      %v2430 = vsel %vm331, %v2362, 0
      %v2433 = vsel %vm331, %v2363, 0
      %v2436 = vsel %vm331, %v2364, 0
      %v2439 = vsel %vm331, %v2365, 0
      %v2442 = vsel %vm331, %v2366, 0
      %v2445 = vsel %vm331, %v2367, 0
      %v2448 = vsel %vm331, %v2368, 0
      %v2451 = vsel %vm331, %v2369, 0
      %v2454 = vsel %vm331, %v2370, 0
      %v2457 = vsel %vm331, %v2371, 0
      %2459 = vmatpush.bf16.msra.mxu0 0
      %2460 = vmatpush.bf16.msra.mxu0 0
      %2461 = vmatpush.bf16.msra.mxu0 0
      %2462 = vmatpush.bf16.msra.mxu0 0
      %2463 = vmatpush.bf16.msra.mxu0 %v2400
      %2464 = vmatpush.bf16.msra.mxu0 %v2399
      %2465 = vmatpush.bf16.msra.mxu0 %v2398
      %2466 = vmatpush.bf16.msra.mxu0 %v2397
      %2467 = vmatmul.bf16.gmra.mxu0 %v2406
      %v2468 = vpop.f32.mrf.mxu0
      %v2469 = vadd.f32 0.0, %v2468
      %v2470 = vpop.f32.mrf.mxu0
      %v2471 = vadd.f32 0.0, %v2470
      %2472 = vmatmul.bf16.gmra.mxu0 %v2409
      %v2473 = vpop.f32.mrf.mxu0
      %v2474 = vadd.f32 0.0, %v2473
      %v2475 = vpop.f32.mrf.mxu0
      %v2476 = vadd.f32 0.0, %v2475
      %2477 = vmatmul.bf16.gmra.mxu0 %v2412
      %v2478 = vpop.f32.mrf.mxu0
      %v2479 = vadd.f32 0.0, %v2478
      %v2480 = vpop.f32.mrf.mxu0
      %v2481 = vadd.f32 0.0, %v2480
      %2482 = vmatmul.bf16.gmra.mxu0 %v2415
      %v2483 = vpop.f32.mrf.mxu0
      %v2484 = vadd.f32 0.0, %v2483
      %v2485 = vpop.f32.mrf.mxu0
      %v2486 = vadd.f32 0.0, %v2485
      %2487 = vmatmul.bf16.gmra.mxu0 %v2418
      %v2488 = vpop.f32.mrf.mxu0
      %v2489 = vadd.f32 0.0, %v2488
      %v2490 = vpop.f32.mrf.mxu0
      %v2491 = vadd.f32 0.0, %v2490
      %2492 = vmatmul.bf16.gmra.mxu0 %v2421
      %v2493 = vpop.f32.mrf.mxu0
      %v2494 = vadd.f32 0.0, %v2493
      %v2495 = vpop.f32.mrf.mxu0
      %v2496 = vadd.f32 0.0, %v2495
      %2497 = vmatmul.bf16.gmra.mxu0 %v2424
      %v2498 = vpop.f32.mrf.mxu0
      %v2499 = vadd.f32 0.0, %v2498
      %v2500 = vpop.f32.mrf.mxu0
      %v2501 = vadd.f32 0.0, %v2500
      %2502 = vmatmul.bf16.gmra.mxu0 %v2427
      %v2503 = vpop.f32.mrf.mxu0
      %v2504 = vadd.f32 0.0, %v2503
      %v2505 = vpop.f32.mrf.mxu0
      %v2506 = vadd.f32 0.0, %v2505
      %2507 = vmatmul.bf16.gmra.mxu0 %v2430
      %v2508 = vpop.f32.mrf.mxu0
      %v2509 = vadd.f32 0.0, %v2508
      %v2510 = vpop.f32.mrf.mxu0
      %v2511 = vadd.f32 0.0, %v2510
      %2512 = vmatmul.bf16.gmra.mxu0 %v2433
      %v2513 = vpop.f32.mrf.mxu0
      %v2514 = vadd.f32 0.0, %v2513
      %v2515 = vpop.f32.mrf.mxu0
      %v2516 = vadd.f32 0.0, %v2515
      %2517 = vmatmul.bf16.gmra.mxu0 %v2436
      %v2518 = vpop.f32.mrf.mxu0
      %v2519 = vadd.f32 0.0, %v2518
      %v2520 = vpop.f32.mrf.mxu0
      %v2521 = vadd.f32 0.0, %v2520
      %2522 = vmatmul.bf16.gmra.mxu0 %v2439
      %v2523 = vpop.f32.mrf.mxu0
      %v2524 = vadd.f32 0.0, %v2523
      %v2525 = vpop.f32.mrf.mxu0
      %v2526 = vadd.f32 0.0, %v2525
      %2527 = vmatmul.bf16.gmra.mxu0 %v2442
      %v2528 = vpop.f32.mrf.mxu0
      %v2529 = vadd.f32 0.0, %v2528
      %v2530 = vpop.f32.mrf.mxu0
      %v2531 = vadd.f32 0.0, %v2530
      %2532 = vmatmul.bf16.gmra.mxu0 %v2445
      %v2533 = vpop.f32.mrf.mxu0
      %v2534 = vadd.f32 0.0, %v2533
      %v2535 = vpop.f32.mrf.mxu0
      %v2536 = vadd.f32 0.0, %v2535
      %2537 = vmatmul.bf16.gmra.mxu0 %v2448
      %v2538 = vpop.f32.mrf.mxu0
      %v2539 = vadd.f32 0.0, %v2538
      %v2540 = vpop.f32.mrf.mxu0
      %v2541 = vadd.f32 0.0, %v2540
      %2542 = vmatmul.bf16.gmra.mxu0 %v2451
      %v2543 = vpop.f32.mrf.mxu0
      %v2544 = vadd.f32 0.0, %v2543
      %v2545 = vpop.f32.mrf.mxu0
      %v2546 = vadd.f32 0.0, %v2545
      %2547 = vmatmul.bf16.gmra.mxu0 %v2454
      %v2548 = vpop.f32.mrf.mxu0
      %v2549 = vadd.f32 0.0, %v2548
      %v2550 = vpop.f32.mrf.mxu0
      %v2551 = vadd.f32 0.0, %v2550
      %2552 = vmatmul.bf16.gmra.mxu0 %v2457
      %v2553 = vpop.f32.mrf.mxu0
      %v2554 = vadd.f32 0.0, %v2553
      %v2555 = vpop.f32.mrf.mxu0
      %v2556 = vadd.f32 0.0, %v2555
      %2557 = vdwg.mxu0
      %v2558 = vadd.f32 %v2282, %v2469
      %v2559 = vadd.f32 %v2283, %v2471
      %v2560 = vadd.f32 %v2284, %v2474
      %v2561 = vadd.f32 %v2285, %v2476
      %v2562 = vadd.f32 %v2286, %v2479
      %v2563 = vadd.f32 %v2287, %v2481
      %v2564 = vadd.f32 %v2288, %v2484
      %v2565 = vadd.f32 %v2289, %v2486
      %v2566 = vadd.f32 %v2290, %v2489
      %v2567 = vadd.f32 %v2291, %v2491
      %v2568 = vadd.f32 %v2292, %v2494
      %v2569 = vadd.f32 %v2293, %v2496
      %v2570 = vadd.f32 %v2294, %v2499
      %v2571 = vadd.f32 %v2295, %v2501
      %v2572 = vadd.f32 %v2296, %v2504
      %v2573 = vadd.f32 %v2297, %v2506
      %v2574 = vadd.f32 %v2298, %v2509
      %v2575 = vadd.f32 %v2299, %v2511
      %v2576 = vadd.f32 %v2300, %v2514
      %v2577 = vadd.f32 %v2301, %v2516
      %v2578 = vadd.f32 %v2302, %v2519
      %v2579 = vadd.f32 %v2303, %v2521
      %v2580 = vadd.f32 %v2304, %v2524
      %v2581 = vadd.f32 %v2305, %v2526
      %v2582 = vadd.f32 %v2306, %v2529
      %v2583 = vadd.f32 %v2307, %v2531
      %v2584 = vadd.f32 %v2308, %v2534
      %v2585 = vadd.f32 %v2309, %v2536
      %v2586 = vadd.f32 %v2310, %v2539
      %v2587 = vadd.f32 %v2311, %v2541
      %v2588 = vadd.f32 %v2312, %v2544
      %v2589 = vadd.f32 %v2313, %v2546
      %v2590 = vadd.f32 %v2314, %v2549
      %v2591 = vadd.f32 %v2315, %v2551
      %v2592 = vadd.f32 %v2316, %v2554
      %v2593 = vadd.f32 %v2317, %v2556
      %2594 = vst.msk [vmem:[%s180] sm:$0xff] %vm331, %v2558
      %2595 = vst.msk [vmem:[%s180 + $0x8] sm:$0xff] %vm331, %v2559
      %2596 = vst.msk [vmem:[%s180 + $0x10] sm:$0xff] %vm331, %v2560
      %2597 = vst.msk [vmem:[%s180 + $0x18] sm:$0xff] %vm331, %v2561
      %2598 = vst.msk [vmem:[%s180 + $0x20] sm:$0xff] %vm331, %v2562
      %2599 = vst.msk [vmem:[%s180 + $0x28] sm:$0xff] %vm331, %v2563
      %2600 = vst.msk [vmem:[%s180 + $0x30] sm:$0xff] %vm331, %v2564
      %2601 = vst.msk [vmem:[%s180 + $0x38] sm:$0xff] %vm331, %v2565
      %2602 = vst.msk [vmem:[%s180 + $0x40] sm:$0xff] %vm331, %v2566
      %2603 = vst.msk [vmem:[%s180 + $0x48] sm:$0xff] %vm331, %v2567
      %2604 = vst.msk [vmem:[%s180 + $0x50] sm:$0xff] %vm331, %v2568
      %2605 = vst.msk [vmem:[%s180 + $0x58] sm:$0xff] %vm331, %v2569
      %2606 = vst.msk [vmem:[%s180 + $0x60] sm:$0xff] %vm331, %v2570
      %2607 = vst.msk [vmem:[%s180 + $0x68] sm:$0xff] %vm331, %v2571
      %2608 = vst.msk [vmem:[%s180 + $0x70] sm:$0xff] %vm331, %v2572
      %2609 = vst.msk [vmem:[%s180 + $0x78] sm:$0xff] %vm331, %v2573
      %2610 = vst.msk [vmem:[%s180 + $0x80] sm:$0xff] %vm331, %v2574
      %2611 = vst.msk [vmem:[%s180 + $0x88] sm:$0xff] %vm331, %v2575
      %2612 = vst.msk [vmem:[%s180 + $0x90] sm:$0xff] %vm331, %v2576
      %2613 = vst.msk [vmem:[%s180 + $0x98] sm:$0xff] %vm331, %v2577
      %2614 = vst.msk [vmem:[%s180 + $0xa0] sm:$0xff] %vm331, %v2578
      %2615 = vst.msk [vmem:[%s180 + $0xa8] sm:$0xff] %vm331, %v2579
      %2616 = vst.msk [vmem:[%s180 + $0xb0] sm:$0xff] %vm331, %v2580
      %2617 = vst.msk [vmem:[%s180 + $0xb8] sm:$0xff] %vm331, %v2581
      %2618 = vst.msk [vmem:[%s180 + $0xc0] sm:$0xff] %vm331, %v2582
      %2619 = vst.msk [vmem:[%s180 + $0xc8] sm:$0xff] %vm331, %v2583
      %2620 = vst.msk [vmem:[%s180 + $0xd0] sm:$0xff] %vm331, %v2584
      %2621 = vst.msk [vmem:[%s180 + $0xd8] sm:$0xff] %vm331, %v2585
      %2622 = vst.msk [vmem:[%s180 + $0xe0] sm:$0xff] %vm331, %v2586
      %2623 = vst.msk [vmem:[%s180 + $0xe8] sm:$0xff] %vm331, %v2587
      %2624 = vst.msk [vmem:[%s180 + $0xf0] sm:$0xff] %vm331, %v2588
      %2625 = vst.msk [vmem:[%s180 + $0xf8] sm:$0xff] %vm331, %v2589
      %2626 = vst.msk [vmem:[%s180 + $0x100] sm:$0xff] %vm331, %v2590
      %2627 = vst.msk [vmem:[%s180 + $0x108] sm:$0xff] %vm331, %v2591
      %2628 = vst.msk [vmem:[%s180 + $0x110] sm:$0xff] %vm331, %v2592
      %2629 = vst.msk [vmem:[%s180 + $0x118] sm:$0xff] %vm331, %v2593
      %p2630 = scmp.lt.s32.totalorder %s17, 1
      %s2631 = scalar_select %p2630, %s17, 1
      %p2632 = scmp.lt.s32.totalorder %s18, 0
      %s2633 = scalar_select %p2632, %s18, 0
      %s2634 = smul.addr %s2631, 36
      %s2635 = sadd.s32 %s2633, %s2634
      %s2636 = smul.addr %s2635, 8
      %s2637 = scalar_lea.vmem %s2, %s2636
      // Predicated region
      $region29: #{double_conv.9} parent=27 // pred_check
        %p2638 = pneg %p97
      $region30: #{double_conv.9} parent=27 // pred_check_branch
        %2640 = sbr.rel (%p2638) target = $region32
      $region31: #{double_conv.9} parent=27 // pred_region
        _
      $region32: #{double_conv.9} parent=27 // pred_fallthru
        _
    $region28: #{double_conv.9} parent=5 // pred_fallthru
      _
    %p2641 = scmp.le.s32.totalorder 2, %s8
    // Predicated region
    $region33: #{double_conv.9} parent=5 // pred_check
      %p2642 = pneg %p2641
    $region34: #{double_conv.9} parent=5 // pred_check_branch
      %2644 = sbr.rel (%p2642) target = $region36
    $region35: #{double_conv.9} parent=5 // pred_region
      %s2645 = ssub.s32 %s8, 2
      // Predicated region
      $region37: #{double_conv.9} parent=35 // pred_check
        %p2646 = pneg %p103
      $region38: #{double_conv.9} parent=35 // pred_check_branch
        %2648 = sbr.rel (%p2646) target = $region40
      $region39: #{double_conv.9} parent=35 // pred_region
        %p2649 = scmp.lt.s32.totalorder %s19, 1
        %s2650 = scalar_select %p2649, %s19, 1
        %p2651 = scmp.lt.s32.totalorder %s20, 0
        %s2652 = scalar_select %p2651, %s20, 0
        %s2653 = smul.addr %s2650, 36
        %s2654 = sadd.s32 %s2652, %s2653
        %s2655 = smul.addr %s2654, 8
        %s2656 = scalar_lea.vmem %s2, %s2655
      $region40: #{double_conv.9} parent=35 // pred_fallthru
        _
    $region36: #{double_conv.9} parent=5 // pred_fallthru
      _
  $region6: #{double_conv.9} parent=0 // loop_footer
    %s12 = sadd.s32 1, %s8
  $region7: #{double_conv.9} parent=0 // loop_footer_branch
    %7 = sbr.rel target = $region3
  $region8: #{double_conv.9} parent=0 // loop_exit
    _

</llo_original>
